<compile_context>
chip_gen: v7x
topology: tpu7x:2x2x1
jax: 0.10.0
libtpu: 0.0.40
codegen_flags: <defaults>
</compile_context>

<pallas_src>
import jax
import jax.numpy as jnp
from jax import lax
from jax.experimental import pallas as pl
from jax.experimental.pallas import tpu as pltpu

# ---- LatentModel hyper-params for mod == 'a' --------------------------------
SEQ_LEN = 220
FEAT_DIM = 73
D_OUT = 32
KERNEL = 28
STRIDE = 3
L_OUT = (SEQ_LEN - KERNEL) // STRIDE + 1      # 65  (== self.u)
BN_EPS = 1e-5

# lane-friendly padded sizes
D_PAD = 128                                   # output channels 32 -> 128
C_PAD = 128                                   # input features 73 -> 128
N_PHASE = STRIDE                              # 3 stride phases
J_ROWS = -(-SEQ_LEN // STRIDE)                # 74 rows per phase
L_ROWS_PAD = J_ROWS * STRIDE                  # 222 padded input rows


# ---- kernel 1: fused conv (as K contiguous matmuls) + bias + BN partials ----
def _conv_stats_kernel(srcp_ref, w_ref, bias_ref, conv_ref, psum_ref, pssq_ref):
    # srcp_ref: (N_PHASE, J_ROWS, C_PAD) bf16  stride-phase rows of one batch
    # w_ref:    (KERNEL, C_PAD, D_PAD)   bf16
    # bias_ref: (1, D_PAD) f32
    # conv_ref: (L_OUT, D_PAD) f32   conv+bias of this batch element
    # psum_ref / pssq_ref: (1, D_PAD) f32 per-batch partial BN stats
    acc = jnp.zeros((L_OUT, D_PAD), jnp.float32)
    for k in range(KERNEL):                   # static unroll: 28 MXU pushes
        r, m = k % STRIDE, k // STRIDE
        xk = srcp_ref[r, m:m + L_OUT, :]      # contiguous (L_OUT, C_PAD) slice
        acc = acc + jnp.dot(xk, w_ref[k], preferred_element_type=jnp.float32)
    conv = acc + bias_ref[...]
    conv_ref[...] = conv                      # lane-dense (L_OUT, 128) store
    psum_ref[...] = jnp.sum(conv, axis=0, keepdims=True)
    pssq_ref[...] = jnp.sum(conv * conv, axis=0, keepdims=True)


# ---- kernel 2: apply folded BatchNorm + ReLU, store real 32 channels --------
def _bn_relu_kernel(conv_ref, scale_ref, shift_ref, out_ref):
    y = conv_ref[...] * scale_ref[...] + shift_ref[...]
    y = jnp.maximum(y, 0.0)
    out_ref[...] = y[:, :D_OUT]


@jax.jit
def latent_model_forward(src, w, bias, gamma, beta):
    """src: (B, SEQ_LEN, FEAT_DIM) f32 -> (B, L_OUT, D_OUT) f32."""
    B = src.shape[0]

    # stride-phase layout: src_phase[b, r, j, c] = src[b, STRIDE*j + r, c]
    src_p = jnp.pad(src, ((0, 0),
                          (0, L_ROWS_PAD - SEQ_LEN),
                          (0, C_PAD - FEAT_DIM)))
    src_phase = jnp.transpose(
        src_p.reshape(B, J_ROWS, STRIDE, C_PAD), (0, 2, 1, 3)
    ).astype(jnp.bfloat16)

    # weight (D_OUT, FEAT, KERNEL) -> (KERNEL, C_PAD, D_PAD): w2[k,c,d]=w[d,c,k]
    w2 = jnp.transpose(w, (2, 1, 0))
    w2 = jnp.pad(w2, ((0, 0), (0, C_PAD - FEAT_DIM), (0, D_PAD - D_OUT)))
    w2 = w2.astype(jnp.bfloat16)

    bias2 = jnp.pad(bias, (0, D_PAD - D_OUT)).reshape(1, D_PAD)

    flops1 = 2 * B * L_OUT * KERNEL * C_PAD * D_PAD
    bytes1 = (src_phase.size * 2 + w2.size * 2 + bias2.size * 4
              + B * L_OUT * D_PAD * 4 + 2 * B * D_PAD * 4)

    conv, psum, pssq = pl.pallas_call(
        _conv_stats_kernel,
        grid=(B,),
        in_specs=(
            pl.BlockSpec((None, N_PHASE, J_ROWS, C_PAD),
                         lambda b: (b, 0, 0, 0)),
            pl.BlockSpec((KERNEL, C_PAD, D_PAD), lambda b: (0, 0, 0)),
            pl.BlockSpec((1, D_PAD), lambda b: (0, 0)),
        ),
        out_specs=(
            pl.BlockSpec((None, L_OUT, D_PAD), lambda b: (b, 0, 0)),
            pl.BlockSpec((None, 1, D_PAD), lambda b: (b, 0, 0)),
            pl.BlockSpec((None, 1, D_PAD), lambda b: (b, 0, 0)),
        ),
        out_shape=(
            jax.ShapeDtypeStruct((B, L_OUT, D_PAD), jnp.float32),
            jax.ShapeDtypeStruct((B, 1, D_PAD), jnp.float32),
            jax.ShapeDtypeStruct((B, 1, D_PAD), jnp.float32),
        ),
        compiler_params=pltpu.CompilerParams(
            dimension_semantics=("parallel",),
            vmem_limit_bytes=32 * 1024 * 1024),
        cost_estimate=pl.CostEstimate(
            flops=flops1, transcendentals=0, bytes_accessed=bytes1),
    )(src_phase, w2, bias2)

    # tiny per-channel stats merge + fold BN affine into scale/shift (128 lanes)
    n = B * L_OUT
    mean = jnp.sum(psum, axis=0) / n                    # (1, D_PAD)
    var = jnp.maximum(jnp.sum(pssq, axis=0) / n - mean * mean, 0.0)
    rstd = lax.rsqrt(var + BN_EPS)
    gamma2 = jnp.pad(gamma, (0, D_PAD - D_OUT)).reshape(1, D_PAD)
    beta2 = jnp.pad(beta, (0, D_PAD - D_OUT)).reshape(1, D_PAD)
    scale = gamma2 * rstd
    shift = beta2 - mean * scale

    flops2 = 3 * B * L_OUT * D_PAD
    bytes2 = B * L_OUT * D_PAD * 4 + B * L_OUT * D_OUT * 4 + 2 * D_PAD * 4

    out = pl.pallas_call(
        _bn_relu_kernel,
        grid=(B,),
        in_specs=(
            pl.BlockSpec((None, L_OUT, D_PAD), lambda b: (b, 0, 0)),
            pl.BlockSpec((1, D_PAD), lambda b: (0, 0)),
            pl.BlockSpec((1, D_PAD), lambda b: (0, 0)),
        ),
        out_specs=pl.BlockSpec((None, L_OUT, D_OUT), lambda b: (b, 0, 0)),
        out_shape=jax.ShapeDtypeStruct((B, L_OUT, D_OUT), jnp.float32),
        compiler_params=pltpu.CompilerParams(
            dimension_semantics=("parallel",),
            vmem_limit_bytes=32 * 1024 * 1024),
        cost_estimate=pl.CostEstimate(
            flops=flops2, transcendentals=0, bytes_accessed=bytes2),
    )(conv, scale, shift)

    return out


# ---- pure-JAX reference (f32, highest precision conv) -----------------------
def _reference(src, w, bias, gamma, beta):
    x = jnp.transpose(src, (0, 2, 1))                   # (B, C, L)
    conv = lax.conv_general_dilated(
        x, w, window_strides=(STRIDE,), padding="VALID",
        dimension_numbers=("NCH", "OIH", "NCH"),
        precision=lax.Precision.HIGHEST)
    conv = conv + bias[None, :, None]                   # (B, D, L_OUT)
    mean = jnp.mean(conv, axis=(0, 2), keepdims=True)
    var = jnp.mean((conv - mean) ** 2, axis=(0, 2), keepdims=True)
    y = (conv - mean) * lax.rsqrt(var + BN_EPS)
    y = y * gamma[None, :, None] + beta[None, :, None]
    y = jnp.maximum(y, 0.0)
    return jnp.transpose(y, (0, 2, 1))                  # (B, L_OUT, D)


if __name__ == "__main__":
    key = jax.random.PRNGKey(0)
    k_src, k_w, k_b = jax.random.split(key, 3)

    B = 2
    src = jax.random.normal(k_src, (B, SEQ_LEN, FEAT_DIM), dtype=jnp.float32)

    # deterministic parameter init (Conv1d-style kaiming-uniform bounds)
    fan_in = FEAT_DIM * KERNEL
    bound = 1.0 / (fan_in ** 0.5)
    w = jax.random.uniform(k_w, (D_OUT, FEAT_DIM, KERNEL),
                           minval=-bound, maxval=bound, dtype=jnp.float32)
    bias = jax.random.uniform(k_b, (D_OUT,),
                              minval=-bound, maxval=bound, dtype=jnp.float32)
    gamma = jnp.ones((D_OUT,), jnp.float32)    # BN default affine init
    beta = jnp.zeros((D_OUT,), jnp.float32)

    out = jax.block_until_ready(latent_model_forward(src, w, bias, gamma, beta))
    assert out.shape == (B, L_OUT, D_OUT), out.shape

    ref = _reference(src, w, bias, gamma, beta)
    err = float(jnp.max(jnp.abs(out - ref)))
    # bf16 MXU operands with f32 accumulation vs full-f32 reference conv
    assert err < 2e-2, err

    print("KERNEL_OK")
</pallas_src>

<mosaic_0001>
module attributes {stable_mosaic.version = 11 : i64} {
  func.func @_bn_relu_kernel(%arg0: i32, %arg1: memref<1x65x128xf32, #tpu.memory_space<vmem>>, %arg2: memref<1x128xf32, #tpu.memory_space<vmem>>, %arg3: memref<1x128xf32, #tpu.memory_space<vmem>>, %arg4: memref<1x65x32xf32, #tpu.memory_space<vmem>>) attributes {dimension_semantics = [#tpu.dimension_semantics<parallel>], iteration_bounds = array<i64: 2>, scalar_prefetch = 0 : i64, scratch_operands = 0 : i64, tpu.core_type = #tpu.core_type<tc>, window_params = [{transform_indices = @transform_0, window_bounds = array<i64: 1, 65, 128>}, {pipeline_mode = #tpu.pipeline_mode<synchronous>, transform_indices = @transform_1, window_bounds = array<i64: 1, 128>}, {pipeline_mode = #tpu.pipeline_mode<synchronous>, transform_indices = @transform_2, window_bounds = array<i64: 1, 128>}, {transform_indices = @transform_3, window_bounds = array<i64: 1, 65, 32>}]} {
    %c0 = arith.constant 0 : index
    %c0_0 = arith.constant 0 : index
    %c0_1 = arith.constant 0 : index
    %0 = vector.load %arg1[%c0, %c0_0, %c0_1] : memref<1x65x128xf32, #tpu.memory_space<vmem>>, vector<1x65x128xf32>
    %1 = vector.shape_cast %0 : vector<1x65x128xf32> to vector<65x128xf32>
    %c0_2 = arith.constant 0 : index
    %c0_3 = arith.constant 0 : index
    %2 = vector.load %arg2[%c0_2, %c0_3] : memref<1x128xf32, #tpu.memory_space<vmem>>, vector<1x128xf32>
    %3 = vector.broadcast %2 : vector<1x128xf32> to vector<65x128xf32>
    %4 = arith.mulf %1, %3 : vector<65x128xf32>
    %c0_4 = arith.constant 0 : index
    %c0_5 = arith.constant 0 : index
    %5 = vector.load %arg3[%c0_4, %c0_5] : memref<1x128xf32, #tpu.memory_space<vmem>>, vector<1x128xf32>
    %6 = vector.broadcast %5 : vector<1x128xf32> to vector<65x128xf32>
    %7 = arith.addf %4, %6 : vector<65x128xf32>
    %cst = arith.constant 0.000000e+00 : f32
    %8 = vector.broadcast %cst : f32 to vector<65x128xf32>
    %9 = arith.maximumf %7, %8 : vector<65x128xf32>
    %10 = vector.extract_strided_slice %9 {offsets = [0, 0], sizes = [65, 32], strides = [1, 1]} : vector<65x128xf32> to vector<65x32xf32>
    %c0_6 = arith.constant 0 : index
    %c0_7 = arith.constant 0 : index
    %c0_8 = arith.constant 0 : index
    %11 = vector.load %arg4[%c0_6, %c0_7, %c0_8] : memref<1x65x32xf32, #tpu.memory_space<vmem>>, vector<1x65x32xf32>
    %12 = vector.shape_cast %11 : vector<1x65x32xf32> to vector<65x32xf32>
    %13 = vector.shape_cast %10 : vector<65x32xf32> to vector<1x65x32xf32>
    tpu.vector_store %arg4[%c0_6, %c0_7, %c0_8], %13 {strides = array<i32>} : memref<1x65x32xf32, #tpu.memory_space<vmem>>, vector<1x65x32xf32>,
    return
  }
  func.func @transform_0(%arg0: i32) -> (i32, i32, i32) {
    %c0_i32 = arith.constant 0 : i32
    %c0_i32_0 = arith.constant 0 : i32
    %c0_i32_1 = arith.constant 0 : i32
    return %arg0, %c0_i32, %c0_i32_0 : i32, i32, i32
  }
  func.func @transform_1(%arg0: i32) -> (i32, i32) {
    %c0_i32 = arith.constant 0 : i32
    %c0_i32_0 = arith.constant 0 : i32
    %c0_i32_1 = arith.constant 0 : i32
    return %c0_i32, %c0_i32_0 : i32, i32
  }
  func.func @transform_2(%arg0: i32) -> (i32, i32) {
    %c0_i32 = arith.constant 0 : i32
    %c0_i32_0 = arith.constant 0 : i32
    %c0_i32_1 = arith.constant 0 : i32
    return %c0_i32, %c0_i32_0 : i32, i32
  }
  func.func @transform_3(%arg0: i32) -> (i32, i32, i32) {
    %c0_i32 = arith.constant 0 : i32
    %c0_i32_0 = arith.constant 0 : i32
    %c0_i32_1 = arith.constant 0 : i32
    return %arg0, %c0_i32, %c0_i32_0 : i32, i32, i32
  }
}

module attributes {stable_mosaic.version = 11 : i64} {
  func.func @_conv_stats_kernel(%arg0: i32, %arg1: memref<1x3x74x128xbf16, #tpu.memory_space<vmem>>, %arg2: memref<28x128x128xbf16, #tpu.memory_space<vmem>>, %arg3: memref<1x128xf32, #tpu.memory_space<vmem>>, %arg4: memref<1x65x128xf32, #tpu.memory_space<vmem>>, %arg5: memref<1x1x128xf32, #tpu.memory_space<vmem>>, %arg6: memref<1x1x128xf32, #tpu.memory_space<vmem>>) attributes {dimension_semantics = [#tpu.dimension_semantics<parallel>], iteration_bounds = array<i64: 2>, scalar_prefetch = 0 : i64, scratch_operands = 0 : i64, tpu.core_type = #tpu.core_type<tc>, window_params = [{transform_indices = @transform_0, window_bounds = array<i64: 1, 3, 74, 128>}, {pipeline_mode = #tpu.pipeline_mode<synchronous>, transform_indices = @transform_1, window_bounds = array<i64: 28, 128, 128>}, {pipeline_mode = #tpu.pipeline_mode<synchronous>, transform_indices = @transform_2, window_bounds = array<i64: 1, 128>}, {transform_indices = @transform_3, window_bounds = array<i64: 1, 65, 128>}, {transform_indices = @transform_4, window_bounds = array<i64: 1, 1, 128>}, {transform_indices = @transform_5, window_bounds = array<i64: 1, 1, 128>}]} {
    %cst = arith.constant 0.000000e+00 : f32
    %0 = vector.broadcast %cst : f32 to vector<65x128xf32>
    %c0 = arith.constant 0 : index
    %c0_0 = arith.constant 0 : index
    %c0_1 = arith.constant 0 : index
    %c0_2 = arith.constant 0 : index
    %1 = vector.load %arg1[%c0, %c0_0, %c0_1, %c0_2] : memref<1x3x74x128xbf16, #tpu.memory_space<vmem>>, vector<1x1x65x128xbf16>
    %2 = vector.shape_cast %1 : vector<1x1x65x128xbf16> to vector<65x128xbf16>
    %c0_3 = arith.constant 0 : index
    %c0_4 = arith.constant 0 : index
    %c0_5 = arith.constant 0 : index
    %3 = vector.load %arg2[%c0_3, %c0_4, %c0_5] : memref<28x128x128xbf16, #tpu.memory_space<vmem>>, vector<1x128x128xbf16>
    %4 = vector.shape_cast %3 : vector<1x128x128xbf16> to vector<128x128xbf16>
    %cst_6 = arith.constant dense<0.000000e+00> : vector<65x128xf32>
    %5 = tpu.matmul %2, %4, %cst_6 {dimension_numbers = #tpu.dot_dimension_numbers<[1], [0], [0], [1], [0, 0, 1, 1], [], []>} : vector<65x128xbf16>, vector<128x128xbf16>, vector<65x128xf32> -> vector<65x128xf32>
    %6 = arith.addf %0, %5 : vector<65x128xf32>
    %c0_7 = arith.constant 0 : index
    %c1 = arith.constant 1 : index
    %c0_8 = arith.constant 0 : index
    %c0_9 = arith.constant 0 : index
    %7 = vector.load %arg1[%c0_7, %c1, %c0_8, %c0_9] : memref<1x3x74x128xbf16, #tpu.memory_space<vmem>>, vector<1x1x65x128xbf16>
    %8 = vector.shape_cast %7 : vector<1x1x65x128xbf16> to vector<65x128xbf16>
    %c1_10 = arith.constant 1 : index
    %c0_11 = arith.constant 0 : index
    %c0_12 = arith.constant 0 : index
    %9 = vector.load %arg2[%c1_10, %c0_11, %c0_12] : memref<28x128x128xbf16, #tpu.memory_space<vmem>>, vector<1x128x128xbf16>
    %10 = vector.shape_cast %9 : vector<1x128x128xbf16> to vector<128x128xbf16>
    %cst_13 = arith.constant dense<0.000000e+00> : vector<65x128xf32>
    %11 = tpu.matmul %8, %10, %cst_13 {dimension_numbers = #tpu.dot_dimension_numbers<[1], [0], [0], [1], [0, 0, 1, 1], [], []>} : vector<65x128xbf16>, vector<128x128xbf16>, vector<65x128xf32> -> vector<65x128xf32>
    %12 = arith.addf %6, %11 : vector<65x128xf32>
    %c0_14 = arith.constant 0 : index
    %c2 = arith.constant 2 : index
    %c0_15 = arith.constant 0 : index
    %c0_16 = arith.constant 0 : index
    %13 = vector.load %arg1[%c0_14, %c2, %c0_15, %c0_16] : memref<1x3x74x128xbf16, #tpu.memory_space<vmem>>, vector<1x1x65x128xbf16>
    %14 = vector.shape_cast %13 : vector<1x1x65x128xbf16> to vector<65x128xbf16>
    %c2_17 = arith.constant 2 : index
    %c0_18 = arith.constant 0 : index
    %c0_19 = arith.constant 0 : index
    %15 = vector.load %arg2[%c2_17, %c0_18, %c0_19] : memref<28x128x128xbf16, #tpu.memory_space<vmem>>, vector<1x128x128xbf16>
    %16 = vector.shape_cast %15 : vector<1x128x128xbf16> to vector<128x128xbf16>
    %cst_20 = arith.constant dense<0.000000e+00> : vector<65x128xf32>
    %17 = tpu.matmul %14, %16, %cst_20 {dimension_numbers = #tpu.dot_dimension_numbers<[1], [0], [0], [1], [0, 0, 1, 1], [], []>} : vector<65x128xbf16>, vector<128x128xbf16>, vector<65x128xf32> -> vector<65x128xf32>
    %18 = arith.addf %12, %17 : vector<65x128xf32>
    %c0_21 = arith.constant 0 : index
    %c0_22 = arith.constant 0 : index
    %c1_23 = arith.constant 1 : index
    %c0_24 = arith.constant 0 : index
    %19 = vector.load %arg1[%c0_21, %c0_22, %c1_23, %c0_24] : memref<1x3x74x128xbf16, #tpu.memory_space<vmem>>, vector<1x1x65x128xbf16>
    %20 = vector.shape_cast %19 : vector<1x1x65x128xbf16> to vector<65x128xbf16>
    %c3 = arith.constant 3 : index
    %c0_25 = arith.constant 0 : index
    %c0_26 = arith.constant 0 : index
    %21 = vector.load %arg2[%c3, %c0_25, %c0_26] : memref<28x128x128xbf16, #tpu.memory_space<vmem>>, vector<1x128x128xbf16>
    %22 = vector.shape_cast %21 : vector<1x128x128xbf16> to vector<128x128xbf16>
    %cst_27 = arith.constant dense<0.000000e+00> : vector<65x128xf32>
    %23 = tpu.matmul %20, %22, %cst_27 {dimension_numbers = #tpu.dot_dimension_numbers<[1], [0], [0], [1], [0, 0, 1, 1], [], []>} : vector<65x128xbf16>, vector<128x128xbf16>, vector<65x128xf32> -> vector<65x128xf32>
    %24 = arith.addf %18, %23 : vector<65x128xf32>
    %c0_28 = arith.constant 0 : index
    %c1_29 = arith.constant 1 : index
    %c1_30 = arith.constant 1 : index
    %c0_31 = arith.constant 0 : index
    %25 = vector.load %arg1[%c0_28, %c1_29, %c1_30, %c0_31] : memref<1x3x74x128xbf16, #tpu.memory_space<vmem>>, vector<1x1x65x128xbf16>
    %26 = vector.shape_cast %25 : vector<1x1x65x128xbf16> to vector<65x128xbf16>
    %c4 = arith.constant 4 : index
    %c0_32 = arith.constant 0 : index
    %c0_33 = arith.constant 0 : index
    %27 = vector.load %arg2[%c4, %c0_32, %c0_33] : memref<28x128x128xbf16, #tpu.memory_space<vmem>>, vector<1x128x128xbf16>
    %28 = vector.shape_cast %27 : vector<1x128x128xbf16> to vector<128x128xbf16>
    %cst_34 = arith.constant dense<0.000000e+00> : vector<65x128xf32>
    %29 = tpu.matmul %26, %28, %cst_34 {dimension_numbers = #tpu.dot_dimension_numbers<[1], [0], [0], [1], [0, 0, 1, 1], [], []>} : vector<65x128xbf16>, vector<128x128xbf16>, vector<65x128xf32> -> vector<65x128xf32>
    %30 = arith.addf %24, %29 : vector<65x128xf32>
    %c0_35 = arith.constant 0 : index
    %c2_36 = arith.constant 2 : index
    %c1_37 = arith.constant 1 : index
    %c0_38 = arith.constant 0 : index
    %31 = vector.load %arg1[%c0_35, %c2_36, %c1_37, %c0_38] : memref<1x3x74x128xbf16, #tpu.memory_space<vmem>>, vector<1x1x65x128xbf16>
    %32 = vector.shape_cast %31 : vector<1x1x65x128xbf16> to vector<65x128xbf16>
    %c5 = arith.constant 5 : index
    %c0_39 = arith.constant 0 : index
    %c0_40 = arith.constant 0 : index
    %33 = vector.load %arg2[%c5, %c0_39, %c0_40] : memref<28x128x128xbf16, #tpu.memory_space<vmem>>, vector<1x128x128xbf16>
    %34 = vector.shape_cast %33 : vector<1x128x128xbf16> to vector<128x128xbf16>
    %cst_41 = arith.constant dense<0.000000e+00> : vector<65x128xf32>
    %35 = tpu.matmul %32, %34, %cst_41 {dimension_numbers = #tpu.dot_dimension_numbers<[1], [0], [0], [1], [0, 0, 1, 1], [], []>} : vector<65x128xbf16>, vector<128x128xbf16>, vector<65x128xf32> -> vector<65x128xf32>
    %36 = arith.addf %30, %35 : vector<65x128xf32>
    %c0_42 = arith.constant 0 : index
    %c0_43 = arith.constant 0 : index
    %c2_44 = arith.constant 2 : index
    %c0_45 = arith.constant 0 : index
    %37 = vector.load %arg1[%c0_42, %c0_43, %c2_44, %c0_45] : memref<1x3x74x128xbf16, #tpu.memory_space<vmem>>, vector<1x1x65x128xbf16>
    %38 = vector.shape_cast %37 : vector<1x1x65x128xbf16> to vector<65x128xbf16>
    %c6 = arith.constant 6 : index
    %c0_46 = arith.constant 0 : index
    %c0_47 = arith.constant 0 : index
    %39 = vector.load %arg2[%c6, %c0_46, %c0_47] : memref<28x128x128xbf16, #tpu.memory_space<vmem>>, vector<1x128x128xbf16>
    %40 = vector.shape_cast %39 : vector<1x128x128xbf16> to vector<128x128xbf16>
    %cst_48 = arith.constant dense<0.000000e+00> : vector<65x128xf32>
    %41 = tpu.matmul %38, %40, %cst_48 {dimension_numbers = #tpu.dot_dimension_numbers<[1], [0], [0], [1], [0, 0, 1, 1], [], []>} : vector<65x128xbf16>, vector<128x128xbf16>, vector<65x128xf32> -> vector<65x128xf32>
    %42 = arith.addf %36, %41 : vector<65x128xf32>
    %c0_49 = arith.constant 0 : index
    %c1_50 = arith.constant 1 : index
    %c2_51 = arith.constant 2 : index
    %c0_52 = arith.constant 0 : index
    %43 = vector.load %arg1[%c0_49, %c1_50, %c2_51, %c0_52] : memref<1x3x74x128xbf16, #tpu.memory_space<vmem>>, vector<1x1x65x128xbf16>
    %44 = vector.shape_cast %43 : vector<1x1x65x128xbf16> to vector<65x128xbf16>
    %c7 = arith.constant 7 : index
    %c0_53 = arith.constant 0 : index
    %c0_54 = arith.constant 0 : index
    %45 = vector.load %arg2[%c7, %c0_53, %c0_54] : memref<28x128x128xbf16, #tpu.memory_space<vmem>>, vector<1x128x128xbf16>
    %46 = vector.shape_cast %45 : vector<1x128x128xbf16> to vector<128x128xbf16>
    %cst_55 = arith.constant dense<0.000000e+00> : vector<65x128xf32>
    %47 = tpu.matmul %44, %46, %cst_55 {dimension_numbers = #tpu.dot_dimension_numbers<[1], [0], [0], [1], [0, 0, 1, 1], [], []>} : vector<65x128xbf16>, vector<128x128xbf16>, vector<65x128xf32> -> vector<65x128xf32>
    %48 = arith.addf %42, %47 : vector<65x128xf32>
    %c0_56 = arith.constant 0 : index
    %c2_57 = arith.constant 2 : index
    %c2_58 = arith.constant 2 : index
    %c0_59 = arith.constant 0 : index
    %49 = vector.load %arg1[%c0_56, %c2_57, %c2_58, %c0_59] : memref<1x3x74x128xbf16, #tpu.memory_space<vmem>>, vector<1x1x65x128xbf16>
    %50 = vector.shape_cast %49 : vector<1x1x65x128xbf16> to vector<65x128xbf16>
    %c8 = arith.constant 8 : index
    %c0_60 = arith.constant 0 : index
    %c0_61 = arith.constant 0 : index
    %51 = vector.load %arg2[%c8, %c0_60, %c0_61] : memref<28x128x128xbf16, #tpu.memory_space<vmem>>, vector<1x128x128xbf16>
    %52 = vector.shape_cast %51 : vector<1x128x128xbf16> to vector<128x128xbf16>
    %cst_62 = arith.constant dense<0.000000e+00> : vector<65x128xf32>
    %53 = tpu.matmul %50, %52, %cst_62 {dimension_numbers = #tpu.dot_dimension_numbers<[1], [0], [0], [1], [0, 0, 1, 1], [], []>} : vector<65x128xbf16>, vector<128x128xbf16>, vector<65x128xf32> -> vector<65x128xf32>
    %54 = arith.addf %48, %53 : vector<65x128xf32>
    %c0_63 = arith.constant 0 : index
    %c0_64 = arith.constant 0 : index
    %c3_65 = arith.constant 3 : index
    %c0_66 = arith.constant 0 : index
    %55 = vector.load %arg1[%c0_63, %c0_64, %c3_65, %c0_66] : memref<1x3x74x128xbf16, #tpu.memory_space<vmem>>, vector<1x1x65x128xbf16>
    %56 = vector.shape_cast %55 : vector<1x1x65x128xbf16> to vector<65x128xbf16>
    %c9 = arith.constant 9 : index
    %c0_67 = arith.constant 0 : index
    %c0_68 = arith.constant 0 : index
    %57 = vector.load %arg2[%c9, %c0_67, %c0_68] : memref<28x128x128xbf16, #tpu.memory_space<vmem>>, vector<1x128x128xbf16>
    %58 = vector.shape_cast %57 : vector<1x128x128xbf16> to vector<128x128xbf16>
    %cst_69 = arith.constant dense<0.000000e+00> : vector<65x128xf32>
    %59 = tpu.matmul %56, %58, %cst_69 {dimension_numbers = #tpu.dot_dimension_numbers<[1], [0], [0], [1], [0, 0, 1, 1], [], []>} : vector<65x128xbf16>, vector<128x128xbf16>, vector<65x128xf32> -> vector<65x128xf32>
    %60 = arith.addf %54, %59 : vector<65x128xf32>
    %c0_70 = arith.constant 0 : index
    %c1_71 = arith.constant 1 : index
    %c3_72 = arith.constant 3 : index
    %c0_73 = arith.constant 0 : index
    %61 = vector.load %arg1[%c0_70, %c1_71, %c3_72, %c0_73] : memref<1x3x74x128xbf16, #tpu.memory_space<vmem>>, vector<1x1x65x128xbf16>
    %62 = vector.shape_cast %61 : vector<1x1x65x128xbf16> to vector<65x128xbf16>
    %c10 = arith.constant 10 : index
    %c0_74 = arith.constant 0 : index
    %c0_75 = arith.constant 0 : index
    %63 = vector.load %arg2[%c10, %c0_74, %c0_75] : memref<28x128x128xbf16, #tpu.memory_space<vmem>>, vector<1x128x128xbf16>
    %64 = vector.shape_cast %63 : vector<1x128x128xbf16> to vector<128x128xbf16>
    %cst_76 = arith.constant dense<0.000000e+00> : vector<65x128xf32>
    %65 = tpu.matmul %62, %64, %cst_76 {dimension_numbers = #tpu.dot_dimension_numbers<[1], [0], [0], [1], [0, 0, 1, 1], [], []>} : vector<65x128xbf16>, vector<128x128xbf16>, vector<65x128xf32> -> vector<65x128xf32>
    %66 = arith.addf %60, %65 : vector<65x128xf32>
    %c0_77 = arith.constant 0 : index
    %c2_78 = arith.constant 2 : index
    %c3_79 = arith.constant 3 : index
    %c0_80 = arith.constant 0 : index
    %67 = vector.load %arg1[%c0_77, %c2_78, %c3_79, %c0_80] : memref<1x3x74x128xbf16, #tpu.memory_space<vmem>>, vector<1x1x65x128xbf16>
    %68 = vector.shape_cast %67 : vector<1x1x65x128xbf16> to vector<65x128xbf16>
    %c11 = arith.constant 11 : index
    %c0_81 = arith.constant 0 : index
    %c0_82 = arith.constant 0 : index
    %69 = vector.load %arg2[%c11, %c0_81, %c0_82] : memref<28x128x128xbf16, #tpu.memory_space<vmem>>, vector<1x128x128xbf16>
    %70 = vector.shape_cast %69 : vector<1x128x128xbf16> to vector<128x128xbf16>
    %cst_83 = arith.constant dense<0.000000e+00> : vector<65x128xf32>
    %71 = tpu.matmul %68, %70, %cst_83 {dimension_numbers = #tpu.dot_dimension_numbers<[1], [0], [0], [1], [0, 0, 1, 1], [], []>} : vector<65x128xbf16>, vector<128x128xbf16>, vector<65x128xf32> -> vector<65x128xf32>
    %72 = arith.addf %66, %71 : vector<65x128xf32>
    %c0_84 = arith.constant 0 : index
    %c0_85 = arith.constant 0 : index
    %c4_86 = arith.constant 4 : index
    %c0_87 = arith.constant 0 : index
    %73 = vector.load %arg1[%c0_84, %c0_85, %c4_86, %c0_87] : memref<1x3x74x128xbf16, #tpu.memory_space<vmem>>, vector<1x1x65x128xbf16>
    %74 = vector.shape_cast %73 : vector<1x1x65x128xbf16> to vector<65x128xbf16>
    %c12 = arith.constant 12 : index
    %c0_88 = arith.constant 0 : index
    %c0_89 = arith.constant 0 : index
    %75 = vector.load %arg2[%c12, %c0_88, %c0_89] : memref<28x128x128xbf16, #tpu.memory_space<vmem>>, vector<1x128x128xbf16>
    %76 = vector.shape_cast %75 : vector<1x128x128xbf16> to vector<128x128xbf16>
    %cst_90 = arith.constant dense<0.000000e+00> : vector<65x128xf32>
    %77 = tpu.matmul %74, %76, %cst_90 {dimension_numbers = #tpu.dot_dimension_numbers<[1], [0], [0], [1], [0, 0, 1, 1], [], []>} : vector<65x128xbf16>, vector<128x128xbf16>, vector<65x128xf32> -> vector<65x128xf32>
    %78 = arith.addf %72, %77 : vector<65x128xf32>
    %c0_91 = arith.constant 0 : index
    %c1_92 = arith.constant 1 : index
    %c4_93 = arith.constant 4 : index
    %c0_94 = arith.constant 0 : index
    %79 = vector.load %arg1[%c0_91, %c1_92, %c4_93, %c0_94] : memref<1x3x74x128xbf16, #tpu.memory_space<vmem>>, vector<1x1x65x128xbf16>
    %80 = vector.shape_cast %79 : vector<1x1x65x128xbf16> to vector<65x128xbf16>
    %c13 = arith.constant 13 : index
    %c0_95 = arith.constant 0 : index
    %c0_96 = arith.constant 0 : index
    %81 = vector.load %arg2[%c13, %c0_95, %c0_96] : memref<28x128x128xbf16, #tpu.memory_space<vmem>>, vector<1x128x128xbf16>
    %82 = vector.shape_cast %81 : vector<1x128x128xbf16> to vector<128x128xbf16>
    %cst_97 = arith.constant dense<0.000000e+00> : vector<65x128xf32>
    %83 = tpu.matmul %80, %82, %cst_97 {dimension_numbers = #tpu.dot_dimension_numbers<[1], [0], [0], [1], [0, 0, 1, 1], [], []>} : vector<65x128xbf16>, vector<128x128xbf16>, vector<65x128xf32> -> vector<65x128xf32>
    %84 = arith.addf %78, %83 : vector<65x128xf32>
    %c0_98 = arith.constant 0 : index
    %c2_99 = arith.constant 2 : index
    %c4_100 = arith.constant 4 : index
    %c0_101 = arith.constant 0 : index
    %85 = vector.load %arg1[%c0_98, %c2_99, %c4_100, %c0_101] : memref<1x3x74x128xbf16, #tpu.memory_space<vmem>>, vector<1x1x65x128xbf16>
    %86 = vector.shape_cast %85 : vector<1x1x65x128xbf16> to vector<65x128xbf16>
    %c14 = arith.constant 14 : index
    %c0_102 = arith.constant 0 : index
    %c0_103 = arith.constant 0 : index
    %87 = vector.load %arg2[%c14, %c0_102, %c0_103] : memref<28x128x128xbf16, #tpu.memory_space<vmem>>, vector<1x128x128xbf16>
    %88 = vector.shape_cast %87 : vector<1x128x128xbf16> to vector<128x128xbf16>
    %cst_104 = arith.constant dense<0.000000e+00> : vector<65x128xf32>
    %89 = tpu.matmul %86, %88, %cst_104 {dimension_numbers = #tpu.dot_dimension_numbers<[1], [0], [0], [1], [0, 0, 1, 1], [], []>} : vector<65x128xbf16>, vector<128x128xbf16>, vector<65x128xf32> -> vector<65x128xf32>
    %90 = arith.addf %84, %89 : vector<65x128xf32>
    %c0_105 = arith.constant 0 : index
    %c0_106 = arith.constant 0 : index
    %c5_107 = arith.constant 5 : index
    %c0_108 = arith.constant 0 : index
    %91 = vector.load %arg1[%c0_105, %c0_106, %c5_107, %c0_108] : memref<1x3x74x128xbf16, #tpu.memory_space<vmem>>, vector<1x1x65x128xbf16>
    %92 = vector.shape_cast %91 : vector<1x1x65x128xbf16> to vector<65x128xbf16>
    %c15 = arith.constant 15 : index
    %c0_109 = arith.constant 0 : index
    %c0_110 = arith.constant 0 : index
    %93 = vector.load %arg2[%c15, %c0_109, %c0_110] : memref<28x128x128xbf16, #tpu.memory_space<vmem>>, vector<1x128x128xbf16>
    %94 = vector.shape_cast %93 : vector<1x128x128xbf16> to vector<128x128xbf16>
    %cst_111 = arith.constant dense<0.000000e+00> : vector<65x128xf32>
    %95 = tpu.matmul %92, %94, %cst_111 {dimension_numbers = #tpu.dot_dimension_numbers<[1], [0], [0], [1], [0, 0, 1, 1], [], []>} : vector<65x128xbf16>, vector<128x128xbf16>, vector<65x128xf32> -> vector<65x128xf32>
    %96 = arith.addf %90, %95 : vector<65x128xf32>
    %c0_112 = arith.constant 0 : index
    %c1_113 = arith.constant 1 : index
    %c5_114 = arith.constant 5 : index
    %c0_115 = arith.constant 0 : index
    %97 = vector.load %arg1[%c0_112, %c1_113, %c5_114, %c0_115] : memref<1x3x74x128xbf16, #tpu.memory_space<vmem>>, vector<1x1x65x128xbf16>
    %98 = vector.shape_cast %97 : vector<1x1x65x128xbf16> to vector<65x128xbf16>
    %c16 = arith.constant 16 : index
    %c0_116 = arith.constant 0 : index
    %c0_117 = arith.constant 0 : index
    %99 = vector.load %arg2[%c16, %c0_116, %c0_117] : memref<28x128x128xbf16, #tpu.memory_space<vmem>>, vector<1x128x128xbf16>
    %100 = vector.shape_cast %99 : vector<1x128x128xbf16> to vector<128x128xbf16>
    %cst_118 = arith.constant dense<0.000000e+00> : vector<65x128xf32>
    %101 = tpu.matmul %98, %100, %cst_118 {dimension_numbers = #tpu.dot_dimension_numbers<[1], [0], [0], [1], [0, 0, 1, 1], [], []>} : vector<65x128xbf16>, vector<128x128xbf16>, vector<65x128xf32> -> vector<65x128xf32>
    %102 = arith.addf %96, %101 : vector<65x128xf32>
    %c0_119 = arith.constant 0 : index
    %c2_120 = arith.constant 2 : index
    %c5_121 = arith.constant 5 : index
    %c0_122 = arith.constant 0 : index
    %103 = vector.load %arg1[%c0_119, %c2_120, %c5_121, %c0_122] : memref<1x3x74x128xbf16, #tpu.memory_space<vmem>>, vector<1x1x65x128xbf16>
    %104 = vector.shape_cast %103 : vector<1x1x65x128xbf16> to vector<65x128xbf16>
    %c17 = arith.constant 17 : index
    %c0_123 = arith.constant 0 : index
    %c0_124 = arith.constant 0 : index
    %105 = vector.load %arg2[%c17, %c0_123, %c0_124] : memref<28x128x128xbf16, #tpu.memory_space<vmem>>, vector<1x128x128xbf16>
    %106 = vector.shape_cast %105 : vector<1x128x128xbf16> to vector<128x128xbf16>
    %cst_125 = arith.constant dense<0.000000e+00> : vector<65x128xf32>
    %107 = tpu.matmul %104, %106, %cst_125 {dimension_numbers = #tpu.dot_dimension_numbers<[1], [0], [0], [1], [0, 0, 1, 1], [], []>} : vector<65x128xbf16>, vector<128x128xbf16>, vector<65x128xf32> -> vector<65x128xf32>
    %108 = arith.addf %102, %107 : vector<65x128xf32>
    %c0_126 = arith.constant 0 : index
    %c0_127 = arith.constant 0 : index
    %c6_128 = arith.constant 6 : index
    %c0_129 = arith.constant 0 : index
    %109 = vector.load %arg1[%c0_126, %c0_127, %c6_128, %c0_129] : memref<1x3x74x128xbf16, #tpu.memory_space<vmem>>, vector<1x1x65x128xbf16>
    %110 = vector.shape_cast %109 : vector<1x1x65x128xbf16> to vector<65x128xbf16>
    %c18 = arith.constant 18 : index
    %c0_130 = arith.constant 0 : index
    %c0_131 = arith.constant 0 : index
    %111 = vector.load %arg2[%c18, %c0_130, %c0_131] : memref<28x128x128xbf16, #tpu.memory_space<vmem>>, vector<1x128x128xbf16>
    %112 = vector.shape_cast %111 : vector<1x128x128xbf16> to vector<128x128xbf16>
    %cst_132 = arith.constant dense<0.000000e+00> : vector<65x128xf32>
    %113 = tpu.matmul %110, %112, %cst_132 {dimension_numbers = #tpu.dot_dimension_numbers<[1], [0], [0], [1], [0, 0, 1, 1], [], []>} : vector<65x128xbf16>, vector<128x128xbf16>, vector<65x128xf32> -> vector<65x128xf32>
    %114 = arith.addf %108, %113 : vector<65x128xf32>
    %c0_133 = arith.constant 0 : index
    %c1_134 = arith.constant 1 : index
    %c6_135 = arith.constant 6 : index
    %c0_136 = arith.constant 0 : index
    %115 = vector.load %arg1[%c0_133, %c1_134, %c6_135, %c0_136] : memref<1x3x74x128xbf16, #tpu.memory_space<vmem>>, vector<1x1x65x128xbf16>
    %116 = vector.shape_cast %115 : vector<1x1x65x128xbf16> to vector<65x128xbf16>
    %c19 = arith.constant 19 : index
    %c0_137 = arith.constant 0 : index
    %c0_138 = arith.constant 0 : index
    %117 = vector.load %arg2[%c19, %c0_137, %c0_138] : memref<28x128x128xbf16, #tpu.memory_space<vmem>>, vector<1x128x128xbf16>
    %118 = vector.shape_cast %117 : vector<1x128x128xbf16> to vector<128x128xbf16>
    %cst_139 = arith.constant dense<0.000000e+00> : vector<65x128xf32>
    %119 = tpu.matmul %116, %118, %cst_139 {dimension_numbers = #tpu.dot_dimension_numbers<[1], [0], [0], [1], [0, 0, 1, 1], [], []>} : vector<65x128xbf16>, vector<128x128xbf16>, vector<65x128xf32> -> vector<65x128xf32>
    %120 = arith.addf %114, %119 : vector<65x128xf32>
    %c0_140 = arith.constant 0 : index
    %c2_141 = arith.constant 2 : index
    %c6_142 = arith.constant 6 : index
    %c0_143 = arith.constant 0 : index
    %121 = vector.load %arg1[%c0_140, %c2_141, %c6_142, %c0_143] : memref<1x3x74x128xbf16, #tpu.memory_space<vmem>>, vector<1x1x65x128xbf16>
    %122 = vector.shape_cast %121 : vector<1x1x65x128xbf16> to vector<65x128xbf16>
    %c20 = arith.constant 20 : index
    %c0_144 = arith.constant 0 : index
    %c0_145 = arith.constant 0 : index
    %123 = vector.load %arg2[%c20, %c0_144, %c0_145] : memref<28x128x128xbf16, #tpu.memory_space<vmem>>, vector<1x128x128xbf16>
    %124 = vector.shape_cast %123 : vector<1x128x128xbf16> to vector<128x128xbf16>
    %cst_146 = arith.constant dense<0.000000e+00> : vector<65x128xf32>
    %125 = tpu.matmul %122, %124, %cst_146 {dimension_numbers = #tpu.dot_dimension_numbers<[1], [0], [0], [1], [0, 0, 1, 1], [], []>} : vector<65x128xbf16>, vector<128x128xbf16>, vector<65x128xf32> -> vector<65x128xf32>
    %126 = arith.addf %120, %125 : vector<65x128xf32>
    %c0_147 = arith.constant 0 : index
    %c0_148 = arith.constant 0 : index
    %c7_149 = arith.constant 7 : index
    %c0_150 = arith.constant 0 : index
    %127 = vector.load %arg1[%c0_147, %c0_148, %c7_149, %c0_150] : memref<1x3x74x128xbf16, #tpu.memory_space<vmem>>, vector<1x1x65x128xbf16>
    %128 = vector.shape_cast %127 : vector<1x1x65x128xbf16> to vector<65x128xbf16>
    %c21 = arith.constant 21 : index
    %c0_151 = arith.constant 0 : index
    %c0_152 = arith.constant 0 : index
    %129 = vector.load %arg2[%c21, %c0_151, %c0_152] : memref<28x128x128xbf16, #tpu.memory_space<vmem>>, vector<1x128x128xbf16>
    %130 = vector.shape_cast %129 : vector<1x128x128xbf16> to vector<128x128xbf16>
    %cst_153 = arith.constant dense<0.000000e+00> : vector<65x128xf32>
    %131 = tpu.matmul %128, %130, %cst_153 {dimension_numbers = #tpu.dot_dimension_numbers<[1], [0], [0], [1], [0, 0, 1, 1], [], []>} : vector<65x128xbf16>, vector<128x128xbf16>, vector<65x128xf32> -> vector<65x128xf32>
    %132 = arith.addf %126, %131 : vector<65x128xf32>
    %c0_154 = arith.constant 0 : index
    %c1_155 = arith.constant 1 : index
    %c7_156 = arith.constant 7 : index
    %c0_157 = arith.constant 0 : index
    %133 = vector.load %arg1[%c0_154, %c1_155, %c7_156, %c0_157] : memref<1x3x74x128xbf16, #tpu.memory_space<vmem>>, vector<1x1x65x128xbf16>
    %134 = vector.shape_cast %133 : vector<1x1x65x128xbf16> to vector<65x128xbf16>
    %c22 = arith.constant 22 : index
    %c0_158 = arith.constant 0 : index
    %c0_159 = arith.constant 0 : index
    %135 = vector.load %arg2[%c22, %c0_158, %c0_159] : memref<28x128x128xbf16, #tpu.memory_space<vmem>>, vector<1x128x128xbf16>
    %136 = vector.shape_cast %135 : vector<1x128x128xbf16> to vector<128x128xbf16>
    %cst_160 = arith.constant dense<0.000000e+00> : vector<65x128xf32>
    %137 = tpu.matmul %134, %136, %cst_160 {dimension_numbers = #tpu.dot_dimension_numbers<[1], [0], [0], [1], [0, 0, 1, 1], [], []>} : vector<65x128xbf16>, vector<128x128xbf16>, vector<65x128xf32> -> vector<65x128xf32>
    %138 = arith.addf %132, %137 : vector<65x128xf32>
    %c0_161 = arith.constant 0 : index
    %c2_162 = arith.constant 2 : index
    %c7_163 = arith.constant 7 : index
    %c0_164 = arith.constant 0 : index
    %139 = vector.load %arg1[%c0_161, %c2_162, %c7_163, %c0_164] : memref<1x3x74x128xbf16, #tpu.memory_space<vmem>>, vector<1x1x65x128xbf16>
    %140 = vector.shape_cast %139 : vector<1x1x65x128xbf16> to vector<65x128xbf16>
    %c23 = arith.constant 23 : index
    %c0_165 = arith.constant 0 : index
    %c0_166 = arith.constant 0 : index
    %141 = vector.load %arg2[%c23, %c0_165, %c0_166] : memref<28x128x128xbf16, #tpu.memory_space<vmem>>, vector<1x128x128xbf16>
    %142 = vector.shape_cast %141 : vector<1x128x128xbf16> to vector<128x128xbf16>
    %cst_167 = arith.constant dense<0.000000e+00> : vector<65x128xf32>
    %143 = tpu.matmul %140, %142, %cst_167 {dimension_numbers = #tpu.dot_dimension_numbers<[1], [0], [0], [1], [0, 0, 1, 1], [], []>} : vector<65x128xbf16>, vector<128x128xbf16>, vector<65x128xf32> -> vector<65x128xf32>
    %144 = arith.addf %138, %143 : vector<65x128xf32>
    %c0_168 = arith.constant 0 : index
    %c0_169 = arith.constant 0 : index
    %c8_170 = arith.constant 8 : index
    %c0_171 = arith.constant 0 : index
    %145 = vector.load %arg1[%c0_168, %c0_169, %c8_170, %c0_171] : memref<1x3x74x128xbf16, #tpu.memory_space<vmem>>, vector<1x1x65x128xbf16>
    %146 = vector.shape_cast %145 : vector<1x1x65x128xbf16> to vector<65x128xbf16>
    %c24 = arith.constant 24 : index
    %c0_172 = arith.constant 0 : index
    %c0_173 = arith.constant 0 : index
    %147 = vector.load %arg2[%c24, %c0_172, %c0_173] : memref<28x128x128xbf16, #tpu.memory_space<vmem>>, vector<1x128x128xbf16>
    %148 = vector.shape_cast %147 : vector<1x128x128xbf16> to vector<128x128xbf16>
    %cst_174 = arith.constant dense<0.000000e+00> : vector<65x128xf32>
    %149 = tpu.matmul %146, %148, %cst_174 {dimension_numbers = #tpu.dot_dimension_numbers<[1], [0], [0], [1], [0, 0, 1, 1], [], []>} : vector<65x128xbf16>, vector<128x128xbf16>, vector<65x128xf32> -> vector<65x128xf32>
    %150 = arith.addf %144, %149 : vector<65x128xf32>
    %c0_175 = arith.constant 0 : index
    %c1_176 = arith.constant 1 : index
    %c8_177 = arith.constant 8 : index
    %c0_178 = arith.constant 0 : index
    %151 = vector.load %arg1[%c0_175, %c1_176, %c8_177, %c0_178] : memref<1x3x74x128xbf16, #tpu.memory_space<vmem>>, vector<1x1x65x128xbf16>
    %152 = vector.shape_cast %151 : vector<1x1x65x128xbf16> to vector<65x128xbf16>
    %c25 = arith.constant 25 : index
    %c0_179 = arith.constant 0 : index
    %c0_180 = arith.constant 0 : index
    %153 = vector.load %arg2[%c25, %c0_179, %c0_180] : memref<28x128x128xbf16, #tpu.memory_space<vmem>>, vector<1x128x128xbf16>
    %154 = vector.shape_cast %153 : vector<1x128x128xbf16> to vector<128x128xbf16>
    %cst_181 = arith.constant dense<0.000000e+00> : vector<65x128xf32>
    %155 = tpu.matmul %152, %154, %cst_181 {dimension_numbers = #tpu.dot_dimension_numbers<[1], [0], [0], [1], [0, 0, 1, 1], [], []>} : vector<65x128xbf16>, vector<128x128xbf16>, vector<65x128xf32> -> vector<65x128xf32>
    %156 = arith.addf %150, %155 : vector<65x128xf32>
    %c0_182 = arith.constant 0 : index
    %c2_183 = arith.constant 2 : index
    %c8_184 = arith.constant 8 : index
    %c0_185 = arith.constant 0 : index
    %157 = vector.load %arg1[%c0_182, %c2_183, %c8_184, %c0_185] : memref<1x3x74x128xbf16, #tpu.memory_space<vmem>>, vector<1x1x65x128xbf16>
    %158 = vector.shape_cast %157 : vector<1x1x65x128xbf16> to vector<65x128xbf16>
    %c26 = arith.constant 26 : index
    %c0_186 = arith.constant 0 : index
    %c0_187 = arith.constant 0 : index
    %159 = vector.load %arg2[%c26, %c0_186, %c0_187] : memref<28x128x128xbf16, #tpu.memory_space<vmem>>, vector<1x128x128xbf16>
    %160 = vector.shape_cast %159 : vector<1x128x128xbf16> to vector<128x128xbf16>
    %cst_188 = arith.constant dense<0.000000e+00> : vector<65x128xf32>
    %161 = tpu.matmul %158, %160, %cst_188 {dimension_numbers = #tpu.dot_dimension_numbers<[1], [0], [0], [1], [0, 0, 1, 1], [], []>} : vector<65x128xbf16>, vector<128x128xbf16>, vector<65x128xf32> -> vector<65x128xf32>
    %162 = arith.addf %156, %161 : vector<65x128xf32>
    %c0_189 = arith.constant 0 : index
    %c0_190 = arith.constant 0 : index
    %c9_191 = arith.constant 9 : index
    %c0_192 = arith.constant 0 : index
    %163 = vector.load %arg1[%c0_189, %c0_190, %c9_191, %c0_192] : memref<1x3x74x128xbf16, #tpu.memory_space<vmem>>, vector<1x1x65x128xbf16>
    %164 = vector.shape_cast %163 : vector<1x1x65x128xbf16> to vector<65x128xbf16>
    %c27 = arith.constant 27 : index
    %c0_193 = arith.constant 0 : index
    %c0_194 = arith.constant 0 : index
    %165 = vector.load %arg2[%c27, %c0_193, %c0_194] : memref<28x128x128xbf16, #tpu.memory_space<vmem>>, vector<1x128x128xbf16>
    %166 = vector.shape_cast %165 : vector<1x128x128xbf16> to vector<128x128xbf16>
    %cst_195 = arith.constant dense<0.000000e+00> : vector<65x128xf32>
    %167 = tpu.matmul %164, %166, %cst_195 {dimension_numbers = #tpu.dot_dimension_numbers<[1], [0], [0], [1], [0, 0, 1, 1], [], []>} : vector<65x128xbf16>, vector<128x128xbf16>, vector<65x128xf32> -> vector<65x128xf32>
    %168 = arith.addf %162, %167 : vector<65x128xf32>
    %c0_196 = arith.constant 0 : index
    %c0_197 = arith.constant 0 : index
    %169 = vector.load %arg3[%c0_196, %c0_197] : memref<1x128xf32, #tpu.memory_space<vmem>>, vector<1x128xf32>
    %170 = vector.broadcast %169 : vector<1x128xf32> to vector<65x128xf32>
    %171 = arith.addf %168, %170 : vector<65x128xf32>
    %c0_198 = arith.constant 0 : index
    %c0_199 = arith.constant 0 : index
    %c0_200 = arith.constant 0 : index
    %172 = vector.load %arg4[%c0_198, %c0_199, %c0_200] : memref<1x65x128xf32, #tpu.memory_space<vmem>>, vector<1x65x128xf32>
    %173 = vector.shape_cast %172 : vector<1x65x128xf32> to vector<65x128xf32>
    %174 = vector.shape_cast %171 : vector<65x128xf32> to vector<1x65x128xf32>
    tpu.vector_store %arg4[%c0_198, %c0_199, %c0_200], %174 {strides = array<i32>} : memref<1x65x128xf32, #tpu.memory_space<vmem>>, vector<1x65x128xf32>,
    %cst_201 = arith.constant dense<0.000000e+00> : vector<128xf32>
    %175 = vector.multi_reduction <add>, %171, %cst_201 [0] : vector<65x128xf32> to vector<128xf32>
    %176 = vector.shape_cast %175 : vector<128xf32> to vector<1x128xf32>
    %c0_202 = arith.constant 0 : index
    %c0_203 = arith.constant 0 : index
    %c0_204 = arith.constant 0 : index
    %177 = vector.load %arg5[%c0_202, %c0_203, %c0_204] : memref<1x1x128xf32, #tpu.memory_space<vmem>>, vector<1x1x128xf32>
    %178 = vector.shape_cast %177 : vector<1x1x128xf32> to vector<1x128xf32>
    %179 = vector.shape_cast %176 : vector<1x128xf32> to vector<1x1x128xf32>
    tpu.vector_store %arg5[%c0_202, %c0_203, %c0_204], %179 {strides = array<i32>} : memref<1x1x128xf32, #tpu.memory_space<vmem>>, vector<1x1x128xf32>,
    %180 = arith.mulf %171, %171 : vector<65x128xf32>
    %cst_205 = arith.constant dense<0.000000e+00> : vector<128xf32>
    %181 = vector.multi_reduction <add>, %180, %cst_205 [0] : vector<65x128xf32> to vector<128xf32>
    %182 = vector.shape_cast %181 : vector<128xf32> to vector<1x128xf32>
    %c0_206 = arith.constant 0 : index
    %c0_207 = arith.constant 0 : index
    %c0_208 = arith.constant 0 : index
    %183 = vector.load %arg6[%c0_206, %c0_207, %c0_208] : memref<1x1x128xf32, #tpu.memory_space<vmem>>, vector<1x1x128xf32>
    %184 = vector.shape_cast %183 : vector<1x1x128xf32> to vector<1x128xf32>
    %185 = vector.shape_cast %182 : vector<1x128xf32> to vector<1x1x128xf32>
    tpu.vector_store %arg6[%c0_206, %c0_207, %c0_208], %185 {strides = array<i32>} : memref<1x1x128xf32, #tpu.memory_space<vmem>>, vector<1x1x128xf32>,
    return
  }
  func.func @transform_0(%arg0: i32) -> (i32, i32, i32, i32) {
    %c0_i32 = arith.constant 0 : i32
    %c0_i32_0 = arith.constant 0 : i32
    %c0_i32_1 = arith.constant 0 : i32
    %c0_i32_2 = arith.constant 0 : i32
    return %arg0, %c0_i32, %c0_i32_0, %c0_i32_1 : i32, i32, i32, i32
  }
  func.func @transform_1(%arg0: i32) -> (i32, i32, i32) {
    %c0_i32 = arith.constant 0 : i32
    %c0_i32_0 = arith.constant 0 : i32
    %c0_i32_1 = arith.constant 0 : i32
    %c0_i32_2 = arith.constant 0 : i32
    return %c0_i32, %c0_i32_0, %c0_i32_1 : i32, i32, i32
  }
  func.func @transform_2(%arg0: i32) -> (i32, i32) {
    %c0_i32 = arith.constant 0 : i32
    %c0_i32_0 = arith.constant 0 : i32
    %c0_i32_1 = arith.constant 0 : i32
    return %c0_i32, %c0_i32_0 : i32, i32
  }
  func.func @transform_3(%arg0: i32) -> (i32, i32, i32) {
    %c0_i32 = arith.constant 0 : i32
    %c0_i32_0 = arith.constant 0 : i32
    %c0_i32_1 = arith.constant 0 : i32
    return %arg0, %c0_i32, %c0_i32_0 : i32, i32, i32
  }
  func.func @transform_4(%arg0: i32) -> (i32, i32, i32) {
    %c0_i32 = arith.constant 0 : i32
    %c0_i32_0 = arith.constant 0 : i32
    %c0_i32_1 = arith.constant 0 : i32
    return %arg0, %c0_i32, %c0_i32_0 : i32, i32, i32
  }
  func.func @transform_5(%arg0: i32) -> (i32, i32, i32) {
    %c0_i32 = arith.constant 0 : i32
    %c0_i32_0 = arith.constant 0 : i32
    %c0_i32_1 = arith.constant 0 : i32
    return %arg0, %c0_i32, %c0_i32_0 : i32, i32, i32
  }
}

</mosaic_0001>

<llo_original>
// kernel: latent_model_forward.3
$region0: #{latent_model_forward.3}
  #allocation0 [shape = 'u32[]', space=smem, size = 0x4, offset = 0x4, fixed_abs, tag = 'smem constant byte address 0x4 - core index']
  #allocation1 [shape = 'u32[144,128]{1,0:T(1,128)}', space=vmem, size = 0x12000, scoped, tag = 'internal scratch']
  %s0 = inlined_call_operand.vmem [shape: f32[2,65,128], index: 0, kind: input, shape index: {}]
  %s1 = inlined_call_operand.vmem [shape: f32[1,128], index: 1, kind: input, shape index: {}]
  %s2 = inlined_call_operand.vmem [shape: f32[1,128], index: 2, kind: input, shape index: {}]
  %s3 = inlined_call_operand.vmem [shape: f32[2,65,32], index: 3, kind: output, shape index: {}]
  %s4 = sld [smem:[#allocation0]]
  $region45: #{latent_model_forward.3} parent=0
    _
  %s6 = ssub.s32 1, %s4
  %s7 = scalar_select 0, %s6, %s4
  loop: start=0, step=1, limit=4
  $region2: #{latent_model_forward.3} parent=0 // loop_pre_header
    _
  $region3: #{latent_model_forward.3} parent=0 // loop_header
    %s9 = sphi 0, %s13
    %p10 = scmp.ge.s32.totalorder %s9, 4
    %s19 = sphi 0, %s21
    %s22 = sphi 0, %s19
    %s23 = sphi 0, %s22
    %s39 = sphi 0, %s23
    %s43 = sphi 0, %s43
    %s45 = sphi 0, %s43
    %s46 = sphi 0, %s45
    %s60 = sphi 0, %s46
    %s64 = sphi 0, %s64
    %s66 = sphi 0, %s64
    %s67 = sphi 0, %s66
    %s81 = sphi 0, %s67
    %s87 = sphi 0, %s89
    %s90 = sphi 0, %s87
    %s91 = sphi 0, %s90
    %s107 = sphi 0, %s91
  $region4: #{latent_model_forward.3} parent=0 // loop_header_branch
    %12 = sbr.rel (%p10) target = $region8
  $region5: #{latent_model_forward.3} parent=0 // loop_body
    %s14 = ssub.s32 %s9, 1
    %s15 = ssub.s32 %s9, 2
    %s16 = sadd.s32 %s9, 1
    %s17 = ssub.s32 %s9, %s16
    %p18 = scmp.eq.s32.totalorder %s17, 0
    %s20 = sadd.s32 %s19, 1
    %s21 = scalar_select %p18, %s19, %s20
    %p24 = pneg %p18
    %p25 = scmp.eq.s32.totalorder %s9, 1
    %p26 = por %p24, %p25
    %p27 = scmp.ne.s32.totalorder %s19, %s22
    %p28 = scmp.eq.s32.totalorder %s9, 0
    %p29 = por %p27, %p28
    %p30 = scmp.ne.s32.totalorder %s19, %s22
    %p31 = scmp.eq.s32.totalorder %s14, 1
    %p32 = por %p30, %p31
    %p33 = scmp.ne.s32.totalorder %s22, %s23
    %p34 = scmp.eq.s32.totalorder %s14, 0
    %p35 = por %p33, %p34
    %p36 = scmp.ne.s32.totalorder %s22, %s23
    %p37 = scmp.eq.s32.totalorder %s15, 1
    %p38 = por %p36, %p37
    %p40 = scmp.ne.s32.totalorder %s23, %s39
    %p41 = scmp.eq.s32.totalorder %s15, 0
    %p42 = por %p40, %p41
    %s44 = sadd.s32 %s43, 1
    %p47 = scmp.eq.s32.totalorder %s9, 1
    %p48 = scmp.ne.s32.totalorder %s43, %s45
    %p49 = scmp.eq.s32.totalorder %s9, 0
    %p50 = por %p48, %p49
    %p51 = scmp.ne.s32.totalorder %s43, %s45
    %p52 = scmp.eq.s32.totalorder %s14, 1
    %p53 = por %p51, %p52
    %p54 = scmp.ne.s32.totalorder %s45, %s46
    %p55 = scmp.eq.s32.totalorder %s14, 0
    %p56 = por %p54, %p55
    %p57 = scmp.ne.s32.totalorder %s45, %s46
    %p58 = scmp.eq.s32.totalorder %s15, 1
    %p59 = por %p57, %p58
    %p61 = scmp.ne.s32.totalorder %s46, %s60
    %p62 = scmp.eq.s32.totalorder %s15, 0
    %p63 = por %p61, %p62
    %s65 = sadd.s32 %s64, 1
    %p68 = scmp.eq.s32.totalorder %s9, 1
    %p69 = scmp.ne.s32.totalorder %s64, %s66
    %p70 = scmp.eq.s32.totalorder %s9, 0
    %p71 = por %p69, %p70
    %p72 = scmp.ne.s32.totalorder %s64, %s66
    %p73 = scmp.eq.s32.totalorder %s14, 1
    %p74 = por %p72, %p73
    %p75 = scmp.ne.s32.totalorder %s66, %s67
    %p76 = scmp.eq.s32.totalorder %s14, 0
    %p77 = por %p75, %p76
    %p78 = scmp.ne.s32.totalorder %s66, %s67
    %p79 = scmp.eq.s32.totalorder %s15, 1
    %p80 = por %p78, %p79
    %p82 = scmp.ne.s32.totalorder %s67, %s81
    %p83 = scmp.eq.s32.totalorder %s15, 0
    %p84 = por %p82, %p83
    %s85 = ssub.s32 %s9, %s16
    %p86 = scmp.eq.s32.totalorder %s85, 0
    %s88 = sadd.s32 %s87, 1
    %s89 = scalar_select %p86, %s87, %s88
    %p92 = pneg %p86
    %p93 = scmp.eq.s32.totalorder %s9, 1
    %p94 = por %p92, %p93
    %p95 = scmp.ne.s32.totalorder %s87, %s90
    %p96 = scmp.eq.s32.totalorder %s9, 0
    %p97 = por %p95, %p96
    %p98 = scmp.ne.s32.totalorder %s87, %s90
    %p99 = scmp.eq.s32.totalorder %s14, 1
    %p100 = por %p98, %p99
    %p101 = scmp.ne.s32.totalorder %s90, %s91
    %p102 = scmp.eq.s32.totalorder %s14, 0
    %p103 = por %p101, %p102
    %p104 = scmp.ne.s32.totalorder %s90, %s91
    %p105 = scmp.eq.s32.totalorder %s15, 1
    %p106 = por %p104, %p105
    %p108 = scmp.ne.s32.totalorder %s91, %s107
    %p109 = scmp.eq.s32.totalorder %s15, 0
    %p110 = por %p108, %p109
    %p111 = scmp.le.s32.totalorder 1, %s9
    %p112 = scmp.lt.s32.totalorder %s9, 3
    %p113 = pnand %p111, %p112
    %p114 = pneg %p113
    // Predicated region
    $region9: #{latent_model_forward.3} parent=5 // pred_check
      _
    $region10: #{latent_model_forward.3} parent=5 // pred_check_branch
      %116 = sbr.rel (%p113) target = $region12
    $region11: #{latent_model_forward.3} parent=5 // pred_region
      %s117 = ssub.s32 %s9, 1
      // Predicated region
      $region13: #{latent_model_forward.3} parent=11 // pred_check
        %p118 = pneg %p56
      $region14: #{latent_model_forward.3} parent=11 // pred_check_branch
        %120 = sbr.rel (%p118) target = $region16
      $region15: #{latent_model_forward.3} parent=11 // pred_region
        _
      $region16: #{latent_model_forward.3} parent=11 // pred_fallthru
        _
      // Predicated region
      $region17: #{latent_model_forward.3} parent=11 // pred_check
        %p121 = pneg %p77
      $region18: #{latent_model_forward.3} parent=11 // pred_check_branch
        %123 = sbr.rel (%p121) target = $region20
      $region19: #{latent_model_forward.3} parent=11 // pred_region
        _
      $region20: #{latent_model_forward.3} parent=11 // pred_fallthru
        _
    $region12: #{latent_model_forward.3} parent=5 // pred_fallthru
      _
    %p124 = scmp.lt.s32.totalorder %s9, 2
    // Predicated region
    $region21: #{latent_model_forward.3} parent=5 // pred_check
      %p125 = pneg %p124
    $region22: #{latent_model_forward.3} parent=5 // pred_check_branch
      %127 = sbr.rel (%p125) target = $region24
    $region23: #{latent_model_forward.3} parent=5 // pred_region
      // Predicated region
      $region25: #{latent_model_forward.3} parent=23 // pred_check
        %p128 = pneg %p29
      $region26: #{latent_model_forward.3} parent=23 // pred_check_branch
        %130 = sbr.rel (%p128) target = $region28
      $region27: #{latent_model_forward.3} parent=23 // pred_region
        %p131 = scmp.lt.s32.totalorder %s9, 1
        %s132 = scalar_select %p131, %s9, 1
        %s133 = smul.addr %s132, 9
        %s134 = smul.addr %s133, 8
        %s135 = scalar_lea.vmem %s0, %s134
      $region28: #{latent_model_forward.3} parent=23 // pred_fallthru
        _
    $region24: #{latent_model_forward.3} parent=5 // pred_fallthru
      _
    %p136 = scmp.le.s32.totalorder 1, %s9
    %p137 = scmp.lt.s32.totalorder %s9, 3
    %p138 = pnand %p136, %p137
    %p139 = pneg %p138
    // Predicated region
    $region29: #{latent_model_forward.3} parent=5 // pred_check
      _
    $region30: #{latent_model_forward.3} parent=5 // pred_check_branch
      %141 = sbr.rel (%p138) target = $region32
    $region31: #{latent_model_forward.3} parent=5 // pred_region
      %s142 = ssub.s32 %s9, 1
      %p143 = scmp.lt.s32.totalorder %s14, 1
      %s144 = scalar_select %p143, %s14, 1
      %s145 = smul.addr %s144, 9
      %s146 = smul.addr %s145, 8
      %s147 = scalar_lea.vmem %s0, %s146
      %p148 = pneg %p35
      %p149 = pneg %p32
      %p150 = pneg %p56
      %p151 = pneg %p53
      %p152 = pneg %p77
      %p153 = pneg %p74
      %p154 = pneg %p103
      %p155 = pneg %p100
      %p156 = scmp.lt.s32.totalorder %s14, 1
      %s157 = scalar_select %p156, %s14, 1
      %s158 = smul.addr %s157, 9
      %s159 = smul.addr %s158, 8
      %s160 = scalar_lea.vmem %s3, %s159
      %p161 = scmp.lt.s32.totalorder %s14, 1
      %s162 = scalar_select %p161, %s14, 1
      %s163 = smul.addr %s162, 9
      %s164 = smul.addr %s163, 8
      %s165 = scalar_lea.vmem %s0, %s164
      %p166 = scmp.lt.s32.totalorder %s14, 1
      %s167 = scalar_select %p166, %s14, 1
      %s168 = smul.addr %s167, 9
      %s169 = smul.addr %s168, 8
      %s170 = scalar_lea.vmem %s3, %s169
      %v171 = vld [vmem:[%s165] sm:$0xff]
      %v172 = vld [vmem:[%s165 + $0x8] sm:$0xff]
      %v173 = vld [vmem:[%s165 + $0x10] sm:$0xff]
      %v174 = vld [vmem:[%s165 + $0x18] sm:$0xff]
      %v175 = vld [vmem:[%s165 + $0x20] sm:$0xff]
      %v176 = vld [vmem:[%s165 + $0x28] sm:$0xff]
      %v177 = vld [vmem:[%s165 + $0x30] sm:$0xff]
      %v178 = vld [vmem:[%s165 + $0x38] sm:$0xff]
      %v179 = vld [vmem:[%s165 + $0x40] sm:$0x1]
      %v180 = vld [vmem:[%s1] sm:$0x1]
      %v182 = vlaneseq
      %v183 = vshrl.u32 %v182, 7
      %v184 = vsub.s32 0, %v183
      %v185 = vrot.slane %v180, %v184
      %v187 = vmul.f32 %v171, %v185
      %v188 = vmul.f32 %v172, %v185
      %v189 = vmul.f32 %v173, %v185
      %v190 = vmul.f32 %v174, %v185
      %v191 = vmul.f32 %v175, %v185
      %v192 = vmul.f32 %v176, %v185
      %v193 = vmul.f32 %v177, %v185
      %v194 = vmul.f32 %v178, %v185
      %v195 = vmul.f32 %v179, %v185
      %v196 = vld [vmem:[%s2] sm:$0x1]
      %v198 = vlaneseq
      %v199 = vshrl.u32 %v198, 7
      %v200 = vsub.s32 0, %v199
      %v201 = vrot.slane %v196, %v200
      %v203 = vadd.f32 %v187, %v201
      %v204 = vadd.f32 %v188, %v201
      %v205 = vadd.f32 %v189, %v201
      %v206 = vadd.f32 %v190, %v201
      %v207 = vadd.f32 %v191, %v201
      %v208 = vadd.f32 %v192, %v201
      %v209 = vadd.f32 %v193, %v201
      %v210 = vadd.f32 %v194, %v201
      %v211 = vadd.f32 %v195, %v201
      %v212 = vmax.f32 %v203, 0.0
      %v213 = vmax.f32 %v204, 0.0
      %v214 = vmax.f32 %v205, 0.0
      %v215 = vmax.f32 %v206, 0.0
      %v216 = vmax.f32 %v207, 0.0
      %v217 = vmax.f32 %v208, 0.0
      %v218 = vmax.f32 %v209, 0.0
      %v219 = vmax.f32 %v210, 0.0
      %v220 = vmax.f32 %v211, 0.0
      %vm221 = vcmask 261120
      %222 = vst.msk [vmem:[%s170] sm:$0xff] %vm221, %v212
      %223 = vst.msk [vmem:[%s170 + $0x8] sm:$0xff] %vm221, %v213
      %224 = vst.msk [vmem:[%s170 + $0x10] sm:$0xff] %vm221, %v214
      %225 = vst.msk [vmem:[%s170 + $0x18] sm:$0xff] %vm221, %v215
      %226 = vst.msk [vmem:[%s170 + $0x20] sm:$0xff] %vm221, %v216
      %227 = vst.msk [vmem:[%s170 + $0x28] sm:$0xff] %vm221, %v217
      %228 = vst.msk [vmem:[%s170 + $0x30] sm:$0xff] %vm221, %v218
      %229 = vst.msk [vmem:[%s170 + $0x38] sm:$0xff] %vm221, %v219
      %vm230 = vcmask 253952
      %231 = vst.msk [vmem:[%s170 + $0x40] sm:$0x1] %vm230, %v220
      %p232 = scmp.lt.s32.totalorder %s14, 1
      %s233 = scalar_select %p232, %s14, 1
      %s234 = smul.addr %s233, 9
      %s235 = smul.addr %s234, 8
      %s236 = scalar_lea.vmem %s3, %s235
      // Predicated region
      $region33: #{latent_model_forward.3} parent=31 // pred_check
        %p237 = pneg %p100
      $region34: #{latent_model_forward.3} parent=31 // pred_check_branch
        %239 = sbr.rel (%p237) target = $region36
      $region35: #{latent_model_forward.3} parent=31 // pred_region
        _
      $region36: #{latent_model_forward.3} parent=31 // pred_fallthru
        _
    $region32: #{latent_model_forward.3} parent=5 // pred_fallthru
      _
    %p240 = scmp.le.s32.totalorder 2, %s9
    // Predicated region
    $region37: #{latent_model_forward.3} parent=5 // pred_check
      %p241 = pneg %p240
    $region38: #{latent_model_forward.3} parent=5 // pred_check_branch
      %243 = sbr.rel (%p241) target = $region40
    $region39: #{latent_model_forward.3} parent=5 // pred_region
      %s244 = ssub.s32 %s9, 2
      // Predicated region
      $region41: #{latent_model_forward.3} parent=39 // pred_check
        %p245 = pneg %p106
      $region42: #{latent_model_forward.3} parent=39 // pred_check_branch
        %247 = sbr.rel (%p245) target = $region44
      $region43: #{latent_model_forward.3} parent=39 // pred_region
        %p248 = scmp.lt.s32.totalorder %s15, 1
        %s249 = scalar_select %p248, %s15, 1
        %s250 = smul.addr %s249, 9
        %s251 = smul.addr %s250, 8
        %s252 = scalar_lea.vmem %s3, %s251
      $region44: #{latent_model_forward.3} parent=39 // pred_fallthru
        _
    $region40: #{latent_model_forward.3} parent=5 // pred_fallthru
      _
  $region6: #{latent_model_forward.3} parent=0 // loop_footer
    %s13 = sadd.s32 1, %s9
  $region7: #{latent_model_forward.3} parent=0 // loop_footer_branch
    %8 = sbr.rel target = $region3
  $region8: #{latent_model_forward.3} parent=0 // loop_exit
    _

// kernel: latent_model_forward.2
$region0: #{latent_model_forward.2}
  #allocation0 [shape = 'u32[]', space=smem, size = 0x4, offset = 0x4, fixed_abs, tag = 'smem constant byte address 0x4 - core index']
  #allocation1 [shape = 'u32[144,128]{1,0:T(1,128)}', space=vmem, size = 0x12000, scoped, tag = 'internal scratch']
  %s0 = inlined_call_operand.vmem [shape: bf16[2,3,74,128], index: 0, kind: input, shape index: {}]
  %s1 = inlined_call_operand.vmem [shape: bf16[28,128,128], index: 1, kind: input, shape index: {}]
  %s2 = inlined_call_operand.vmem [shape: f32[1,128], index: 2, kind: input, shape index: {}]
  %s3 = inlined_call_operand.vmem [shape: f32[2,65,128], index: 3, kind: output, shape index: {0}]
  %s4 = inlined_call_operand.vmem [shape: f32[2,1,128], index: 4, kind: output, shape index: {1}]
  %s5 = inlined_call_operand.vmem [shape: f32[2,1,128], index: 5, kind: output, shape index: {2}]
  %6 = xla_tuple %s3, %s4, %s5
  %s7 = sld [smem:[#allocation0]]
  $region61: #{latent_model_forward.2} parent=0
    _
  %s9 = ssub.s32 1, %s7
  %s10 = scalar_select 0, %s9, %s7
  loop: start=0, step=1, limit=4
  $region2: #{latent_model_forward.2} parent=0 // loop_pre_header
    _
  $region3: #{latent_model_forward.2} parent=0 // loop_header
    %s12 = sphi 0, %s16
    %p13 = scmp.ge.s32.totalorder %s12, 4
    %s22 = sphi 0, %s24
    %s25 = sphi 0, %s22
    %s26 = sphi 0, %s25
    %s42 = sphi 0, %s26
    %s46 = sphi 0, %s46
    %s48 = sphi 0, %s46
    %s49 = sphi 0, %s48
    %s63 = sphi 0, %s49
    %s67 = sphi 0, %s67
    %s69 = sphi 0, %s67
    %s70 = sphi 0, %s69
    %s84 = sphi 0, %s70
    %s90 = sphi 0, %s92
    %s93 = sphi 0, %s90
    %s94 = sphi 0, %s93
    %s110 = sphi 0, %s94
    %s116 = sphi 0, %s118
    %s119 = sphi 0, %s116
    %s120 = sphi 0, %s119
    %s136 = sphi 0, %s120
    %s142 = sphi 0, %s144
    %s145 = sphi 0, %s142
    %s146 = sphi 0, %s145
    %s162 = sphi 0, %s146
  $region4: #{latent_model_forward.2} parent=0 // loop_header_branch
    %15 = sbr.rel (%p13) target = $region8
  $region5: #{latent_model_forward.2} parent=0 // loop_body
    %s17 = ssub.s32 %s12, 1
    %s18 = ssub.s32 %s12, 2
    %s19 = sadd.s32 %s12, 1
    %s20 = ssub.s32 %s12, %s19
    %p21 = scmp.eq.s32.totalorder %s20, 0
    %s23 = sadd.s32 %s22, 1
    %s24 = scalar_select %p21, %s22, %s23
    %p27 = pneg %p21
    %p28 = scmp.eq.s32.totalorder %s12, 1
    %p29 = por %p27, %p28
    %p30 = scmp.ne.s32.totalorder %s22, %s25
    %p31 = scmp.eq.s32.totalorder %s12, 0
    %p32 = por %p30, %p31
    %p33 = scmp.ne.s32.totalorder %s22, %s25
    %p34 = scmp.eq.s32.totalorder %s17, 1
    %p35 = por %p33, %p34
    %p36 = scmp.ne.s32.totalorder %s25, %s26
    %p37 = scmp.eq.s32.totalorder %s17, 0
    %p38 = por %p36, %p37
    %p39 = scmp.ne.s32.totalorder %s25, %s26
    %p40 = scmp.eq.s32.totalorder %s18, 1
    %p41 = por %p39, %p40
    %p43 = scmp.ne.s32.totalorder %s26, %s42
    %p44 = scmp.eq.s32.totalorder %s18, 0
    %p45 = por %p43, %p44
    %s47 = sadd.s32 %s46, 1
    %p50 = scmp.eq.s32.totalorder %s12, 1
    %p51 = scmp.ne.s32.totalorder %s46, %s48
    %p52 = scmp.eq.s32.totalorder %s12, 0
    %p53 = por %p51, %p52
    %p54 = scmp.ne.s32.totalorder %s46, %s48
    %p55 = scmp.eq.s32.totalorder %s17, 1
    %p56 = por %p54, %p55
    %p57 = scmp.ne.s32.totalorder %s48, %s49
    %p58 = scmp.eq.s32.totalorder %s17, 0
    %p59 = por %p57, %p58
    %p60 = scmp.ne.s32.totalorder %s48, %s49
    %p61 = scmp.eq.s32.totalorder %s18, 1
    %p62 = por %p60, %p61
    %p64 = scmp.ne.s32.totalorder %s49, %s63
    %p65 = scmp.eq.s32.totalorder %s18, 0
    %p66 = por %p64, %p65
    %s68 = sadd.s32 %s67, 1
    %p71 = scmp.eq.s32.totalorder %s12, 1
    %p72 = scmp.ne.s32.totalorder %s67, %s69
    %p73 = scmp.eq.s32.totalorder %s12, 0
    %p74 = por %p72, %p73
    %p75 = scmp.ne.s32.totalorder %s67, %s69
    %p76 = scmp.eq.s32.totalorder %s17, 1
    %p77 = por %p75, %p76
    %p78 = scmp.ne.s32.totalorder %s69, %s70
    %p79 = scmp.eq.s32.totalorder %s17, 0
    %p80 = por %p78, %p79
    %p81 = scmp.ne.s32.totalorder %s69, %s70
    %p82 = scmp.eq.s32.totalorder %s18, 1
    %p83 = por %p81, %p82
    %p85 = scmp.ne.s32.totalorder %s70, %s84
    %p86 = scmp.eq.s32.totalorder %s18, 0
    %p87 = por %p85, %p86
    %s88 = ssub.s32 %s12, %s19
    %p89 = scmp.eq.s32.totalorder %s88, 0
    %s91 = sadd.s32 %s90, 1
    %s92 = scalar_select %p89, %s90, %s91
    %p95 = pneg %p89
    %p96 = scmp.eq.s32.totalorder %s12, 1
    %p97 = por %p95, %p96
    %p98 = scmp.ne.s32.totalorder %s90, %s93
    %p99 = scmp.eq.s32.totalorder %s12, 0
    %p100 = por %p98, %p99
    %p101 = scmp.ne.s32.totalorder %s90, %s93
    %p102 = scmp.eq.s32.totalorder %s17, 1
    %p103 = por %p101, %p102
    %p104 = scmp.ne.s32.totalorder %s93, %s94
    %p105 = scmp.eq.s32.totalorder %s17, 0
    %p106 = por %p104, %p105
    %p107 = scmp.ne.s32.totalorder %s93, %s94
    %p108 = scmp.eq.s32.totalorder %s18, 1
    %p109 = por %p107, %p108
    %p111 = scmp.ne.s32.totalorder %s94, %s110
    %p112 = scmp.eq.s32.totalorder %s18, 0
    %p113 = por %p111, %p112
    %s114 = ssub.s32 %s12, %s19
    %p115 = scmp.eq.s32.totalorder %s114, 0
    %s117 = sadd.s32 %s116, 1
    %s118 = scalar_select %p115, %s116, %s117
    %p121 = pneg %p115
    %p122 = scmp.eq.s32.totalorder %s12, 1
    %p123 = por %p121, %p122
    %p124 = scmp.ne.s32.totalorder %s116, %s119
    %p125 = scmp.eq.s32.totalorder %s12, 0
    %p126 = por %p124, %p125
    %p127 = scmp.ne.s32.totalorder %s116, %s119
    %p128 = scmp.eq.s32.totalorder %s17, 1
    %p129 = por %p127, %p128
    %p130 = scmp.ne.s32.totalorder %s119, %s120
    %p131 = scmp.eq.s32.totalorder %s17, 0
    %p132 = por %p130, %p131
    %p133 = scmp.ne.s32.totalorder %s119, %s120
    %p134 = scmp.eq.s32.totalorder %s18, 1
    %p135 = por %p133, %p134
    %p137 = scmp.ne.s32.totalorder %s120, %s136
    %p138 = scmp.eq.s32.totalorder %s18, 0
    %p139 = por %p137, %p138
    %s140 = ssub.s32 %s12, %s19
    %p141 = scmp.eq.s32.totalorder %s140, 0
    %s143 = sadd.s32 %s142, 1
    %s144 = scalar_select %p141, %s142, %s143
    %p147 = pneg %p141
    %p148 = scmp.eq.s32.totalorder %s12, 1
    %p149 = por %p147, %p148
    %p150 = scmp.ne.s32.totalorder %s142, %s145
    %p151 = scmp.eq.s32.totalorder %s12, 0
    %p152 = por %p150, %p151
    %p153 = scmp.ne.s32.totalorder %s142, %s145
    %p154 = scmp.eq.s32.totalorder %s17, 1
    %p155 = por %p153, %p154
    %p156 = scmp.ne.s32.totalorder %s145, %s146
    %p157 = scmp.eq.s32.totalorder %s17, 0
    %p158 = por %p156, %p157
    %p159 = scmp.ne.s32.totalorder %s145, %s146
    %p160 = scmp.eq.s32.totalorder %s18, 1
    %p161 = por %p159, %p160
    %p163 = scmp.ne.s32.totalorder %s146, %s162
    %p164 = scmp.eq.s32.totalorder %s18, 0
    %p165 = por %p163, %p164
    %p166 = scmp.le.s32.totalorder 1, %s12
    %p167 = scmp.lt.s32.totalorder %s12, 3
    %p168 = pnand %p166, %p167
    %p169 = pneg %p168
    // Predicated region
    $region9: #{latent_model_forward.2} parent=5 // pred_check
      _
    $region10: #{latent_model_forward.2} parent=5 // pred_check_branch
      %171 = sbr.rel (%p168) target = $region12
    $region11: #{latent_model_forward.2} parent=5 // pred_region
      %s172 = ssub.s32 %s12, 1
      // Predicated region
      $region13: #{latent_model_forward.2} parent=11 // pred_check
        %p173 = pneg %p59
      $region14: #{latent_model_forward.2} parent=11 // pred_check_branch
        %175 = sbr.rel (%p173) target = $region16
      $region15: #{latent_model_forward.2} parent=11 // pred_region
        _
      $region16: #{latent_model_forward.2} parent=11 // pred_fallthru
        _
      // Predicated region
      $region17: #{latent_model_forward.2} parent=11 // pred_check
        %p176 = pneg %p80
      $region18: #{latent_model_forward.2} parent=11 // pred_check_branch
        %178 = sbr.rel (%p176) target = $region20
      $region19: #{latent_model_forward.2} parent=11 // pred_region
        _
      $region20: #{latent_model_forward.2} parent=11 // pred_fallthru
        _
    $region12: #{latent_model_forward.2} parent=5 // pred_fallthru
      _
    %p179 = scmp.lt.s32.totalorder %s12, 2
    // Predicated region
    $region21: #{latent_model_forward.2} parent=5 // pred_check
      %p180 = pneg %p179
    $region22: #{latent_model_forward.2} parent=5 // pred_check_branch
      %182 = sbr.rel (%p180) target = $region24
    $region23: #{latent_model_forward.2} parent=5 // pred_region
      // Predicated region
      $region25: #{latent_model_forward.2} parent=23 // pred_check
        %p183 = pneg %p32
      $region26: #{latent_model_forward.2} parent=23 // pred_check_branch
        %185 = sbr.rel (%p183) target = $region28
      $region27: #{latent_model_forward.2} parent=23 // pred_region
        %p186 = scmp.lt.s32.totalorder %s12, 1
        %s187 = scalar_select %p186, %s12, 1
        %s188 = smul.addr %s187, 30
        %s189 = smul.addr %s188, 4
        %s190 = scalar_lea.vmem %s0, %s189
      $region28: #{latent_model_forward.2} parent=23 // pred_fallthru
        _
    $region24: #{latent_model_forward.2} parent=5 // pred_fallthru
      _
    %p191 = scmp.le.s32.totalorder 1, %s12
    %p192 = scmp.lt.s32.totalorder %s12, 3
    %p193 = pnand %p191, %p192
    %p194 = pneg %p193
    // Predicated region
    $region29: #{latent_model_forward.2} parent=5 // pred_check
      _
    $region30: #{latent_model_forward.2} parent=5 // pred_check_branch
      %196 = sbr.rel (%p193) target = $region32
    $region31: #{latent_model_forward.2} parent=5 // pred_region
      %s197 = ssub.s32 %s12, 1
      %p198 = scmp.lt.s32.totalorder %s17, 1
      %s199 = scalar_select %p198, %s17, 1
      %s200 = smul.addr %s199, 30
      %s201 = smul.addr %s200, 4
      %s202 = scalar_lea.vmem %s0, %s201
      %p203 = pneg %p38
      %p204 = pneg %p35
      %p205 = pneg %p59
      %p206 = pneg %p56
      %p207 = pneg %p80
      %p208 = pneg %p77
      %p209 = pneg %p106
      %p210 = pneg %p103
      %p211 = scmp.lt.s32.totalorder %s17, 1
      %s212 = scalar_select %p211, %s17, 1
      %s213 = smul.addr %s212, 9
      %s214 = smul.addr %s213, 8
      %s215 = scalar_lea.vmem %s3, %s214
      %p216 = pneg %p132
      %p217 = pneg %p129
      %p218 = scmp.lt.s32.totalorder %s17, 1
      %s219 = scalar_select %p218, %s17, 1
      %s220 = scalar_lea.vmem %s4, %s219
      %p221 = pneg %p158
      %p222 = pneg %p155
      %p223 = scmp.lt.s32.totalorder %s17, 1
      %s224 = scalar_select %p223, %s17, 1
      %s225 = scalar_lea.vmem %s5, %s224
      %p226 = scmp.lt.s32.totalorder %s17, 1
      %s227 = scalar_select %p226, %s17, 1
      %s228 = smul.addr %s227, 30
      %s229 = smul.addr %s228, 4
      %s230 = scalar_lea.vmem %s0, %s229
      %p231 = scmp.lt.s32.totalorder %s17, 1
      %s232 = scalar_select %p231, %s17, 1
      %s233 = smul.addr %s232, 9
      %s234 = smul.addr %s233, 8
      %s235 = scalar_lea.vmem %s3, %s234
      %p236 = scmp.lt.s32.totalorder %s17, 1
      %s237 = scalar_select %p236, %s17, 1
      %s238 = scalar_lea.vmem %s4, %s237
      %p239 = scmp.lt.s32.totalorder %s17, 1
      %s240 = scalar_select %p239, %s17, 1
      %s241 = scalar_lea.vmem %s5, %s240
      %v243 = vld [vmem:[%s230] sm:$0xf]
      %v244 = vld [vmem:[%s230 + $0x4] sm:$0xf]
      %v245 = vld [vmem:[%s230 + $0x8] sm:$0xf]
      %v246 = vld [vmem:[%s230 + $0xc] sm:$0xf]
      %v247 = vld [vmem:[%s230 + $0x10] sm:$0xf]
      %v248 = vld [vmem:[%s230 + $0x14] sm:$0xf]
      %v249 = vld [vmem:[%s230 + $0x18] sm:$0xf]
      %v250 = vld [vmem:[%s230 + $0x1c] sm:$0xf]
      %v251 = vld [vmem:[%s230 + $0x20] sm:$0x1]
      %v252 = vld [vmem:[%s1] sm:$0xf]
      %v253 = vld [vmem:[%s1 + $0x4] sm:$0xf]
      %v254 = vld [vmem:[%s1 + $0x8] sm:$0xf]
      %v255 = vld [vmem:[%s1 + $0xc] sm:$0xf]
      %v256 = vld [vmem:[%s1 + $0x10] sm:$0xf]
      %v257 = vld [vmem:[%s1 + $0x14] sm:$0xf]
      %v258 = vld [vmem:[%s1 + $0x18] sm:$0xf]
      %v259 = vld [vmem:[%s1 + $0x1c] sm:$0xf]
      %v260 = vld [vmem:[%s1 + $0x20] sm:$0xf]
      %v261 = vld [vmem:[%s1 + $0x24] sm:$0xf]
      %v262 = vld [vmem:[%s1 + $0x28] sm:$0xf]
      %v263 = vld [vmem:[%s1 + $0x2c] sm:$0xf]
      %v264 = vld [vmem:[%s1 + $0x30] sm:$0xf]
      %v265 = vld [vmem:[%s1 + $0x34] sm:$0xf]
      %v266 = vld [vmem:[%s1 + $0x38] sm:$0xf]
      %v267 = vld [vmem:[%s1 + $0x3c] sm:$0xf]
      %s268 = scalar_lea.vmem %s230, 40
      %v269 = vld [vmem:[%s268] sm:$0xf]
      %v270 = vld [vmem:[%s268 + $0x4] sm:$0xf]
      %v271 = vld [vmem:[%s268 + $0x8] sm:$0xf]
      %v272 = vld [vmem:[%s268 + $0xc] sm:$0xf]
      %v273 = vld [vmem:[%s268 + $0x10] sm:$0xf]
      %v274 = vld [vmem:[%s268 + $0x14] sm:$0xf]
      %v275 = vld [vmem:[%s268 + $0x18] sm:$0xf]
      %v276 = vld [vmem:[%s268 + $0x1c] sm:$0xf]
      %v277 = vld [vmem:[%s268 + $0x20] sm:$0x1]
      %s278 = scalar_lea.vmem %s1, 64
      %v279 = vld [vmem:[%s278] sm:$0xf]
      %v280 = vld [vmem:[%s278 + $0x4] sm:$0xf]
      %v281 = vld [vmem:[%s278 + $0x8] sm:$0xf]
      %v282 = vld [vmem:[%s278 + $0xc] sm:$0xf]
      %v283 = vld [vmem:[%s278 + $0x10] sm:$0xf]
      %v284 = vld [vmem:[%s278 + $0x14] sm:$0xf]
      %v285 = vld [vmem:[%s278 + $0x18] sm:$0xf]
      %v286 = vld [vmem:[%s278 + $0x1c] sm:$0xf]
      %v287 = vld [vmem:[%s278 + $0x20] sm:$0xf]
      %v288 = vld [vmem:[%s278 + $0x24] sm:$0xf]
      %v289 = vld [vmem:[%s278 + $0x28] sm:$0xf]
      %v290 = vld [vmem:[%s278 + $0x2c] sm:$0xf]
      %v291 = vld [vmem:[%s278 + $0x30] sm:$0xf]
      %v292 = vld [vmem:[%s278 + $0x34] sm:$0xf]
      %v293 = vld [vmem:[%s278 + $0x38] sm:$0xf]
      %v294 = vld [vmem:[%s278 + $0x3c] sm:$0xf]
      %v304 = vunpack.c.l.b16 %v269
      %v305 = vunpack.c.l.b16 %v270
      %v306 = vunpack.c.l.b16 %v271
      %v307 = vunpack.c.l.b16 %v272
      %v308 = vunpack.c.l.b16 %v273
      %v309 = vunpack.c.l.b16 %v274
      %v310 = vunpack.c.l.b16 %v275
      %v311 = vunpack.c.l.b16 %v276
      %v312 = vunpack.c.l.b16 %v277
      %v313 = vpack.c.b16 %v305, %v304
      %v314 = vpack.c.b16 %v307, %v306
      %v315 = vpack.c.b16 %v309, %v308
      %v316 = vpack.c.b16 %v311, %v310
      %v317 = vpack.c.b16 %v312, %v312
      %v339 = vunpack.c.l.b16 %v279
      %v340 = vunpack.c.l.b16 %v280
      %v341 = vunpack.c.l.b16 %v281
      %v342 = vunpack.c.l.b16 %v282
      %v343 = vunpack.c.l.b16 %v283
      %v344 = vunpack.c.l.b16 %v284
      %v345 = vunpack.c.l.b16 %v285
      %v346 = vunpack.c.l.b16 %v286
      %v347 = vunpack.c.l.b16 %v287
      %v348 = vunpack.c.l.b16 %v288
      %v349 = vunpack.c.l.b16 %v289
      %v350 = vunpack.c.l.b16 %v290
      %v351 = vunpack.c.l.b16 %v291
      %v352 = vunpack.c.l.b16 %v292
      %v353 = vunpack.c.l.b16 %v293
      %v354 = vunpack.c.l.b16 %v294
      %v355 = vpack.c.b16 %v340, %v339
      %v356 = vpack.c.b16 %v342, %v341
      %v357 = vpack.c.b16 %v344, %v343
      %v358 = vpack.c.b16 %v346, %v345
      %v359 = vpack.c.b16 %v348, %v347
      %v360 = vpack.c.b16 %v350, %v349
      %v361 = vpack.c.b16 %v352, %v351
      %v362 = vpack.c.b16 %v354, %v353
      %371 = vmatprep.subr.bf16.mxu0 0
      %372 = vmatpush1.bf16.msra.mxu0 %v355
      %373 = vmatprep.subr.bf16.mxu0 0
      %374 = vmatpush1.bf16.msra.mxu0 %v356
      %375 = vmatprep.subr.bf16.mxu0 0
      %376 = vmatpush1.bf16.msra.mxu0 %v357
      %377 = vmatprep.subr.bf16.mxu0 0
      %378 = vmatpush1.bf16.msra.mxu0 %v358
      %379 = vmatprep.subr.bf16.mxu0 0
      %380 = vmatpush1.bf16.msra.mxu0 %v359
      %381 = vmatprep.subr.bf16.mxu0 0
      %382 = vmatpush1.bf16.msra.mxu0 %v360
      %383 = vmatprep.subr.bf16.mxu0 0
      %384 = vmatpush1.bf16.msra.mxu0 %v361
      %385 = vmatprep.subr.bf16.mxu0 0
      %386 = vmatpush1.bf16.msra.mxu0 %v362
      %387 = vmatprep.subr.bf16.mxu0 0
      %388 = vmatpush1.bf16.msra.mxu0 0
      %389 = vmatprep.subr.bf16.mxu0 0
      %390 = vmatpush1.bf16.msra.mxu0 0
      %391 = vmatprep.subr.bf16.mxu0 0
      %392 = vmatpush1.bf16.msra.mxu0 0
      %393 = vmatprep.subr.bf16.mxu0 0
      %394 = vmatpush1.bf16.msra.mxu0 0
      %395 = vmatprep.subr.bf16.mxu0 0
      %396 = vmatpush1.bf16.msra.mxu0 0
      %397 = vmatprep.subr.bf16.mxu0 0
      %398 = vmatpush1.bf16.msra.mxu0 0
      %399 = vmatprep.subr.bf16.mxu0 0
      %400 = vmatpush1.bf16.msra.mxu0 0
      %401 = vmatprep.subr.bf16.mxu0 0
      %402 = vmatpush1.bf16.msra.mxu0 0
      %403 = vmatprep.mubr.bf16.mxu0 0
      %404 = vmatmul.mubr.bf16.gmra.mrb[0].mxu0 %v313
      %v405 = vpop.f32.mrb[0].mxu0
      %v406 = vadd.f32 0.0, %v405
      %v407 = vpop.f32.mrb[0].mxu0
      %v408 = vpop.f32.mrb[0].mxu0
      %v409 = vadd.f32 0.0, %v408
      %v410 = vpop.f32.mrb[0].mxu0
      %411 = vmatprep.mubr.bf16.mxu0 0
      %412 = vmatmul.mubr.bf16.gmra.mrb[0].mxu0 %v314
      %v413 = vpop.f32.mrb[0].mxu0
      %v414 = vadd.f32 0.0, %v413
      %v415 = vpop.f32.mrb[0].mxu0
      %v416 = vpop.f32.mrb[0].mxu0
      %v417 = vadd.f32 0.0, %v416
      %v418 = vpop.f32.mrb[0].mxu0
      %419 = vmatprep.mubr.bf16.mxu0 0
      %420 = vmatmul.mubr.bf16.gmra.mrb[0].mxu0 %v315
      %v421 = vpop.f32.mrb[0].mxu0
      %v422 = vadd.f32 0.0, %v421
      %v423 = vpop.f32.mrb[0].mxu0
      %v424 = vpop.f32.mrb[0].mxu0
      %v425 = vadd.f32 0.0, %v424
      %v426 = vpop.f32.mrb[0].mxu0
      %427 = vmatprep.mubr.bf16.mxu0 0
      %428 = vmatmul.mubr.bf16.gmra.mrb[0].mxu0 %v316
      %v429 = vpop.f32.mrb[0].mxu0
      %v430 = vadd.f32 0.0, %v429
      %v431 = vpop.f32.mrb[0].mxu0
      %v432 = vpop.f32.mrb[0].mxu0
      %v433 = vadd.f32 0.0, %v432
      %v434 = vpop.f32.mrb[0].mxu0
      %435 = vmatprep.mubr.bf16.mxu0 0
      %436 = vmatmul.mubr.bf16.gmra.mrb[0].mxu0 %v317
      %v437 = vpop.f32.mrb[0].mxu0
      %v438 = vadd.f32 0.0, %v437
      %v439 = vpop.f32.mrb[0].mxu0
      %v440 = vpop.f32.mrb[0].mxu0
      %v441 = vpop.f32.mrb[0].mxu0
      %442 = vdwg.mxu0
      %v452 = vunpack.c.l.b16 %v243
      %v453 = vunpack.c.l.b16 %v244
      %v454 = vunpack.c.l.b16 %v245
      %v455 = vunpack.c.l.b16 %v246
      %v456 = vunpack.c.l.b16 %v247
      %v457 = vunpack.c.l.b16 %v248
      %v458 = vunpack.c.l.b16 %v249
      %v459 = vunpack.c.l.b16 %v250
      %v460 = vunpack.c.l.b16 %v251
      %v461 = vpack.c.b16 %v453, %v452
      %v462 = vpack.c.b16 %v455, %v454
      %v463 = vpack.c.b16 %v457, %v456
      %v464 = vpack.c.b16 %v459, %v458
      %v465 = vpack.c.b16 %v460, %v460
      %v487 = vunpack.c.l.b16 %v252
      %v488 = vunpack.c.l.b16 %v253
      %v489 = vunpack.c.l.b16 %v254
      %v490 = vunpack.c.l.b16 %v255
      %v491 = vunpack.c.l.b16 %v256
      %v492 = vunpack.c.l.b16 %v257
      %v493 = vunpack.c.l.b16 %v258
      %v494 = vunpack.c.l.b16 %v259
      %v495 = vunpack.c.l.b16 %v260
      %v496 = vunpack.c.l.b16 %v261
      %v497 = vunpack.c.l.b16 %v262
      %v498 = vunpack.c.l.b16 %v263
      %v499 = vunpack.c.l.b16 %v264
      %v500 = vunpack.c.l.b16 %v265
      %v501 = vunpack.c.l.b16 %v266
      %v502 = vunpack.c.l.b16 %v267
      %v503 = vpack.c.b16 %v488, %v487
      %v504 = vpack.c.b16 %v490, %v489
      %v505 = vpack.c.b16 %v492, %v491
      %v506 = vpack.c.b16 %v494, %v493
      %v507 = vpack.c.b16 %v496, %v495
      %v508 = vpack.c.b16 %v498, %v497
      %v509 = vpack.c.b16 %v500, %v499
      %v510 = vpack.c.b16 %v502, %v501
      %519 = vmatprep.subr.bf16.mxu0 0
      %520 = vmatpush1.bf16.msra.mxu0 %v503
      %521 = vmatprep.subr.bf16.mxu0 0
      %522 = vmatpush1.bf16.msra.mxu0 %v504
      %523 = vmatprep.subr.bf16.mxu0 0
      %524 = vmatpush1.bf16.msra.mxu0 %v505
      %525 = vmatprep.subr.bf16.mxu0 0
      %526 = vmatpush1.bf16.msra.mxu0 %v506
      %527 = vmatprep.subr.bf16.mxu0 0
      %528 = vmatpush1.bf16.msra.mxu0 %v507
      %529 = vmatprep.subr.bf16.mxu0 0
      %530 = vmatpush1.bf16.msra.mxu0 %v508
      %531 = vmatprep.subr.bf16.mxu0 0
      %532 = vmatpush1.bf16.msra.mxu0 %v509
      %533 = vmatprep.subr.bf16.mxu0 0
      %534 = vmatpush1.bf16.msra.mxu0 %v510
      %535 = vmatprep.subr.bf16.mxu0 0
      %536 = vmatpush1.bf16.msra.mxu0 0
      %537 = vmatprep.subr.bf16.mxu0 0
      %538 = vmatpush1.bf16.msra.mxu0 0
      %539 = vmatprep.subr.bf16.mxu0 0
      %540 = vmatpush1.bf16.msra.mxu0 0
      %541 = vmatprep.subr.bf16.mxu0 0
      %542 = vmatpush1.bf16.msra.mxu0 0
      %543 = vmatprep.subr.bf16.mxu0 0
      %544 = vmatpush1.bf16.msra.mxu0 0
      %545 = vmatprep.subr.bf16.mxu0 0
      %546 = vmatpush1.bf16.msra.mxu0 0
      %547 = vmatprep.subr.bf16.mxu0 0
      %548 = vmatpush1.bf16.msra.mxu0 0
      %549 = vmatprep.subr.bf16.mxu0 0
      %550 = vmatpush1.bf16.msra.mxu0 0
      %551 = vmatprep.mubr.bf16.mxu0 0
      %552 = vmatmul.mubr.bf16.gmra.mrb[0].mxu0 %v461
      %v553 = vpop.f32.mrb[0].mxu0
      %v554 = vadd.f32 %v406, %v553
      %v555 = vpop.f32.mrb[0].mxu0
      %v556 = vpop.f32.mrb[0].mxu0
      %v557 = vadd.f32 %v409, %v556
      %v558 = vpop.f32.mrb[0].mxu0
      %559 = vmatprep.mubr.bf16.mxu0 0
      %560 = vmatmul.mubr.bf16.gmra.mrb[0].mxu0 %v462
      %v561 = vpop.f32.mrb[0].mxu0
      %v562 = vadd.f32 %v414, %v561
      %v563 = vpop.f32.mrb[0].mxu0
      %v564 = vpop.f32.mrb[0].mxu0
      %v565 = vadd.f32 %v417, %v564
      %v566 = vpop.f32.mrb[0].mxu0
      %567 = vmatprep.mubr.bf16.mxu0 0
      %568 = vmatmul.mubr.bf16.gmra.mrb[0].mxu0 %v463
      %v569 = vpop.f32.mrb[0].mxu0
      %v570 = vadd.f32 %v422, %v569
      %v571 = vpop.f32.mrb[0].mxu0
      %v572 = vpop.f32.mrb[0].mxu0
      %v573 = vadd.f32 %v425, %v572
      %v574 = vpop.f32.mrb[0].mxu0
      %575 = vmatprep.mubr.bf16.mxu0 0
      %576 = vmatmul.mubr.bf16.gmra.mrb[0].mxu0 %v464
      %v577 = vpop.f32.mrb[0].mxu0
      %v578 = vadd.f32 %v430, %v577
      %v579 = vpop.f32.mrb[0].mxu0
      %v580 = vpop.f32.mrb[0].mxu0
      %v581 = vadd.f32 %v433, %v580
      %v582 = vpop.f32.mrb[0].mxu0
      %583 = vmatprep.mubr.bf16.mxu0 0
      %584 = vmatmul.mubr.bf16.gmra.mrb[0].mxu0 %v465
      %v585 = vpop.f32.mrb[0].mxu0
      %v586 = vadd.f32 %v438, %v585
      %v587 = vpop.f32.mrb[0].mxu0
      %v588 = vpop.f32.mrb[0].mxu0
      %v589 = vpop.f32.mrb[0].mxu0
      %590 = vdwg.mxu0
      %s591 = scalar_lea.vmem %s230, 80
      %v592 = vld [vmem:[%s591] sm:$0xf]
      %v593 = vld [vmem:[%s591 + $0x4] sm:$0xf]
      %v594 = vld [vmem:[%s591 + $0x8] sm:$0xf]
      %v595 = vld [vmem:[%s591 + $0xc] sm:$0xf]
      %v596 = vld [vmem:[%s591 + $0x10] sm:$0xf]
      %v597 = vld [vmem:[%s591 + $0x14] sm:$0xf]
      %v598 = vld [vmem:[%s591 + $0x18] sm:$0xf]
      %v599 = vld [vmem:[%s591 + $0x1c] sm:$0xf]
      %v600 = vld [vmem:[%s591 + $0x20] sm:$0x1]
      %s601 = scalar_lea.vmem %s1, 128
      %v602 = vld [vmem:[%s601] sm:$0xf]
      %v603 = vld [vmem:[%s601 + $0x4] sm:$0xf]
      %v604 = vld [vmem:[%s601 + $0x8] sm:$0xf]
      %v605 = vld [vmem:[%s601 + $0xc] sm:$0xf]
      %v606 = vld [vmem:[%s601 + $0x10] sm:$0xf]
      %v607 = vld [vmem:[%s601 + $0x14] sm:$0xf]
      %v608 = vld [vmem:[%s601 + $0x18] sm:$0xf]
      %v609 = vld [vmem:[%s601 + $0x1c] sm:$0xf]
      %v610 = vld [vmem:[%s601 + $0x20] sm:$0xf]
      %v611 = vld [vmem:[%s601 + $0x24] sm:$0xf]
      %v612 = vld [vmem:[%s601 + $0x28] sm:$0xf]
      %v613 = vld [vmem:[%s601 + $0x2c] sm:$0xf]
      %v614 = vld [vmem:[%s601 + $0x30] sm:$0xf]
      %v615 = vld [vmem:[%s601 + $0x34] sm:$0xf]
      %v616 = vld [vmem:[%s601 + $0x38] sm:$0xf]
      %v617 = vld [vmem:[%s601 + $0x3c] sm:$0xf]
      %v627 = vunpack.c.l.b16 %v592
      %v628 = vunpack.c.l.b16 %v593
      %v629 = vunpack.c.l.b16 %v594
      %v630 = vunpack.c.l.b16 %v595
      %v631 = vunpack.c.l.b16 %v596
      %v632 = vunpack.c.l.b16 %v597
      %v633 = vunpack.c.l.b16 %v598
      %v634 = vunpack.c.l.b16 %v599
      %v635 = vunpack.c.l.b16 %v600
      %v636 = vpack.c.b16 %v628, %v627
      %v637 = vpack.c.b16 %v630, %v629
      %v638 = vpack.c.b16 %v632, %v631
      %v639 = vpack.c.b16 %v634, %v633
      %v640 = vpack.c.b16 %v635, %v635
      %v662 = vunpack.c.l.b16 %v602
      %v663 = vunpack.c.l.b16 %v603
      %v664 = vunpack.c.l.b16 %v604
      %v665 = vunpack.c.l.b16 %v605
      %v666 = vunpack.c.l.b16 %v606
      %v667 = vunpack.c.l.b16 %v607
      %v668 = vunpack.c.l.b16 %v608
      %v669 = vunpack.c.l.b16 %v609
      %v670 = vunpack.c.l.b16 %v610
      %v671 = vunpack.c.l.b16 %v611
      %v672 = vunpack.c.l.b16 %v612
      %v673 = vunpack.c.l.b16 %v613
      %v674 = vunpack.c.l.b16 %v614
      %v675 = vunpack.c.l.b16 %v615
      %v676 = vunpack.c.l.b16 %v616
      %v677 = vunpack.c.l.b16 %v617
      %v678 = vpack.c.b16 %v663, %v662
      %v679 = vpack.c.b16 %v665, %v664
      %v680 = vpack.c.b16 %v667, %v666
      %v681 = vpack.c.b16 %v669, %v668
      %v682 = vpack.c.b16 %v671, %v670
      %v683 = vpack.c.b16 %v673, %v672
      %v684 = vpack.c.b16 %v675, %v674
      %v685 = vpack.c.b16 %v677, %v676
      %694 = vmatprep.subr.bf16.mxu0 0
      %695 = vmatpush1.bf16.msra.mxu0 %v678
      %696 = vmatprep.subr.bf16.mxu0 0
      %697 = vmatpush1.bf16.msra.mxu0 %v679
      %698 = vmatprep.subr.bf16.mxu0 0
      %699 = vmatpush1.bf16.msra.mxu0 %v680
      %700 = vmatprep.subr.bf16.mxu0 0
      %701 = vmatpush1.bf16.msra.mxu0 %v681
      %702 = vmatprep.subr.bf16.mxu0 0
      %703 = vmatpush1.bf16.msra.mxu0 %v682
      %704 = vmatprep.subr.bf16.mxu0 0
      %705 = vmatpush1.bf16.msra.mxu0 %v683
      %706 = vmatprep.subr.bf16.mxu0 0
      %707 = vmatpush1.bf16.msra.mxu0 %v684
      %708 = vmatprep.subr.bf16.mxu0 0
      %709 = vmatpush1.bf16.msra.mxu0 %v685
      %710 = vmatprep.subr.bf16.mxu0 0
      %711 = vmatpush1.bf16.msra.mxu0 0
      %712 = vmatprep.subr.bf16.mxu0 0
      %713 = vmatpush1.bf16.msra.mxu0 0
      %714 = vmatprep.subr.bf16.mxu0 0
      %715 = vmatpush1.bf16.msra.mxu0 0
      %716 = vmatprep.subr.bf16.mxu0 0
      %717 = vmatpush1.bf16.msra.mxu0 0
      %718 = vmatprep.subr.bf16.mxu0 0
      %719 = vmatpush1.bf16.msra.mxu0 0
      %720 = vmatprep.subr.bf16.mxu0 0
      %721 = vmatpush1.bf16.msra.mxu0 0
      %722 = vmatprep.subr.bf16.mxu0 0
      %723 = vmatpush1.bf16.msra.mxu0 0
      %724 = vmatprep.subr.bf16.mxu0 0
      %725 = vmatpush1.bf16.msra.mxu0 0
      %726 = vmatprep.mubr.bf16.mxu0 0
      %727 = vmatmul.mubr.bf16.gmra.mrb[0].mxu0 %v636
      %v728 = vpop.f32.mrb[0].mxu0
      %v729 = vadd.f32 0.0, %v728
      %v730 = vpop.f32.mrb[0].mxu0
      %v731 = vpop.f32.mrb[0].mxu0
      %v732 = vadd.f32 0.0, %v731
      %v733 = vpop.f32.mrb[0].mxu0
      %734 = vmatprep.mubr.bf16.mxu0 0
      %735 = vmatmul.mubr.bf16.gmra.mrb[0].mxu0 %v637
      %v736 = vpop.f32.mrb[0].mxu0
      %v737 = vadd.f32 0.0, %v736
      %v738 = vpop.f32.mrb[0].mxu0
      %v739 = vpop.f32.mrb[0].mxu0
      %v740 = vadd.f32 0.0, %v739
      %v741 = vpop.f32.mrb[0].mxu0
      %742 = vmatprep.mubr.bf16.mxu0 0
      %743 = vmatmul.mubr.bf16.gmra.mrb[0].mxu0 %v638
      %v744 = vpop.f32.mrb[0].mxu0
      %v745 = vadd.f32 0.0, %v744
      %v746 = vpop.f32.mrb[0].mxu0
      %v747 = vpop.f32.mrb[0].mxu0
      %v748 = vadd.f32 0.0, %v747
      %v749 = vpop.f32.mrb[0].mxu0
      %750 = vmatprep.mubr.bf16.mxu0 0
      %751 = vmatmul.mubr.bf16.gmra.mrb[0].mxu0 %v639
      %v752 = vpop.f32.mrb[0].mxu0
      %v753 = vadd.f32 0.0, %v752
      %v754 = vpop.f32.mrb[0].mxu0
      %v755 = vpop.f32.mrb[0].mxu0
      %v756 = vadd.f32 0.0, %v755
      %v757 = vpop.f32.mrb[0].mxu0
      %758 = vmatprep.mubr.bf16.mxu0 0
      %759 = vmatmul.mubr.bf16.gmra.mrb[0].mxu0 %v640
      %v760 = vpop.f32.mrb[0].mxu0
      %v761 = vadd.f32 0.0, %v760
      %v762 = vpop.f32.mrb[0].mxu0
      %v763 = vpop.f32.mrb[0].mxu0
      %v764 = vpop.f32.mrb[0].mxu0
      %765 = vdwg.mxu0
      %v766 = vadd.f32 %v554, %v729
      %v767 = vadd.f32 %v557, %v732
      %v768 = vadd.f32 %v562, %v737
      %v769 = vadd.f32 %v565, %v740
      %v770 = vadd.f32 %v570, %v745
      %v771 = vadd.f32 %v573, %v748
      %v772 = vadd.f32 %v578, %v753
      %v773 = vadd.f32 %v581, %v756
      %v774 = vadd.f32 %v586, %v761
      %s775 = scalar_lea.vmem %s1, 192
      %v776 = vld [vmem:[%s775] sm:$0xf]
      %v777 = vld [vmem:[%s775 + $0x4] sm:$0xf]
      %v778 = vld [vmem:[%s775 + $0x8] sm:$0xf]
      %v779 = vld [vmem:[%s775 + $0xc] sm:$0xf]
      %v780 = vld [vmem:[%s775 + $0x10] sm:$0xf]
      %v781 = vld [vmem:[%s775 + $0x14] sm:$0xf]
      %v782 = vld [vmem:[%s775 + $0x18] sm:$0xf]
      %v783 = vld [vmem:[%s775 + $0x1c] sm:$0xf]
      %v784 = vld [vmem:[%s775 + $0x20] sm:$0xf]
      %v785 = vld [vmem:[%s775 + $0x24] sm:$0xf]
      %v786 = vld [vmem:[%s775 + $0x28] sm:$0xf]
      %v787 = vld [vmem:[%s775 + $0x2c] sm:$0xf]
      %v788 = vld [vmem:[%s775 + $0x30] sm:$0xf]
      %v789 = vld [vmem:[%s775 + $0x34] sm:$0xf]
      %v790 = vld [vmem:[%s775 + $0x38] sm:$0xf]
      %v791 = vld [vmem:[%s775 + $0x3c] sm:$0xf]
      %vm792 = vsmask.f32 7424
      %v794 = vshrl.u32 %v461, 16
      %v796 = vshll.u32 %v461, 16
      %v798 = vrot.slane %v796, 1
      %v799 = vor.u32 %v794, %v798
      %v801 = vshll.u32 %v462, 16
      %v803 = vrot.slane %v801, 1
      %v804 = vsel %vm792, %v799, %v803
      %v805 = vshrl.u32 %v462, 16
      %v807 = vor.u32 %v805, %v803
      %v809 = vshll.u32 %v463, 16
      %v811 = vrot.slane %v809, 1
      %v812 = vsel %vm792, %v807, %v811
      %v813 = vshrl.u32 %v463, 16
      %v815 = vor.u32 %v813, %v811
      %v817 = vshll.u32 %v464, 16
      %v819 = vrot.slane %v817, 1
      %v820 = vsel %vm792, %v815, %v819
      %v821 = vshrl.u32 %v464, 16
      %v823 = vor.u32 %v821, %v819
      %v825 = vshll.u32 %v465, 16
      %v827 = vrot.slane %v825, 1
      %v828 = vsel %vm792, %v823, %v827
      %v829 = vshrl.u32 %v465, 16
      %v852 = vunpack.c.l.b16 %v776
      %v853 = vunpack.c.l.b16 %v777
      %v854 = vunpack.c.l.b16 %v778
      %v855 = vunpack.c.l.b16 %v779
      %v856 = vunpack.c.l.b16 %v780
      %v857 = vunpack.c.l.b16 %v781
      %v858 = vunpack.c.l.b16 %v782
      %v859 = vunpack.c.l.b16 %v783
      %v860 = vunpack.c.l.b16 %v784
      %v861 = vunpack.c.l.b16 %v785
      %v862 = vunpack.c.l.b16 %v786
      %v863 = vunpack.c.l.b16 %v787
      %v864 = vunpack.c.l.b16 %v788
      %v865 = vunpack.c.l.b16 %v789
      %v866 = vunpack.c.l.b16 %v790
      %v867 = vunpack.c.l.b16 %v791
      %v868 = vpack.c.b16 %v853, %v852
      %v869 = vpack.c.b16 %v855, %v854
      %v870 = vpack.c.b16 %v857, %v856
      %v871 = vpack.c.b16 %v859, %v858
      %v872 = vpack.c.b16 %v861, %v860
      %v873 = vpack.c.b16 %v863, %v862
      %v874 = vpack.c.b16 %v865, %v864
      %v875 = vpack.c.b16 %v867, %v866
      %884 = vmatprep.subr.bf16.mxu0 0
      %885 = vmatpush1.bf16.msra.mxu0 %v868
      %886 = vmatprep.subr.bf16.mxu0 0
      %887 = vmatpush1.bf16.msra.mxu0 %v869
      %888 = vmatprep.subr.bf16.mxu0 0
      %889 = vmatpush1.bf16.msra.mxu0 %v870
      %890 = vmatprep.subr.bf16.mxu0 0
      %891 = vmatpush1.bf16.msra.mxu0 %v871
      %892 = vmatprep.subr.bf16.mxu0 0
      %893 = vmatpush1.bf16.msra.mxu0 %v872
      %894 = vmatprep.subr.bf16.mxu0 0
      %895 = vmatpush1.bf16.msra.mxu0 %v873
      %896 = vmatprep.subr.bf16.mxu0 0
      %897 = vmatpush1.bf16.msra.mxu0 %v874
      %898 = vmatprep.subr.bf16.mxu0 0
      %899 = vmatpush1.bf16.msra.mxu0 %v875
      %900 = vmatprep.subr.bf16.mxu0 0
      %901 = vmatpush1.bf16.msra.mxu0 0
      %902 = vmatprep.subr.bf16.mxu0 0
      %903 = vmatpush1.bf16.msra.mxu0 0
      %904 = vmatprep.subr.bf16.mxu0 0
      %905 = vmatpush1.bf16.msra.mxu0 0
      %906 = vmatprep.subr.bf16.mxu0 0
      %907 = vmatpush1.bf16.msra.mxu0 0
      %908 = vmatprep.subr.bf16.mxu0 0
      %909 = vmatpush1.bf16.msra.mxu0 0
      %910 = vmatprep.subr.bf16.mxu0 0
      %911 = vmatpush1.bf16.msra.mxu0 0
      %912 = vmatprep.subr.bf16.mxu0 0
      %913 = vmatpush1.bf16.msra.mxu0 0
      %914 = vmatprep.subr.bf16.mxu0 0
      %915 = vmatpush1.bf16.msra.mxu0 0
      %916 = vmatprep.mubr.bf16.mxu0 0
      %917 = vmatmul.mubr.bf16.gmra.mrb[0].mxu0 %v804
      %v918 = vpop.f32.mrb[0].mxu0
      %v919 = vadd.f32 0.0, %v918
      %v920 = vpop.f32.mrb[0].mxu0
      %v921 = vpop.f32.mrb[0].mxu0
      %v922 = vadd.f32 0.0, %v921
      %v923 = vpop.f32.mrb[0].mxu0
      %924 = vmatprep.mubr.bf16.mxu0 0
      %925 = vmatmul.mubr.bf16.gmra.mrb[0].mxu0 %v812
      %v926 = vpop.f32.mrb[0].mxu0
      %v927 = vadd.f32 0.0, %v926
      %v928 = vpop.f32.mrb[0].mxu0
      %v929 = vpop.f32.mrb[0].mxu0
      %v930 = vadd.f32 0.0, %v929
      %v931 = vpop.f32.mrb[0].mxu0
      %932 = vmatprep.mubr.bf16.mxu0 0
      %933 = vmatmul.mubr.bf16.gmra.mrb[0].mxu0 %v820
      %v934 = vpop.f32.mrb[0].mxu0
      %v935 = vadd.f32 0.0, %v934
      %v936 = vpop.f32.mrb[0].mxu0
      %v937 = vpop.f32.mrb[0].mxu0
      %v938 = vadd.f32 0.0, %v937
      %v939 = vpop.f32.mrb[0].mxu0
      %940 = vmatprep.mubr.bf16.mxu0 0
      %941 = vmatmul.mubr.bf16.gmra.mrb[0].mxu0 %v828
      %v942 = vpop.f32.mrb[0].mxu0
      %v943 = vadd.f32 0.0, %v942
      %v944 = vpop.f32.mrb[0].mxu0
      %v945 = vpop.f32.mrb[0].mxu0
      %v946 = vadd.f32 0.0, %v945
      %v947 = vpop.f32.mrb[0].mxu0
      %948 = vmatprep.mubr.bf16.mxu0 0
      %949 = vmatmul.mubr.bf16.gmra.mrb[0].mxu0 %v829
      %v950 = vpop.f32.mrb[0].mxu0
      %v951 = vadd.f32 0.0, %v950
      %v952 = vpop.f32.mrb[0].mxu0
      %v953 = vpop.f32.mrb[0].mxu0
      %v954 = vpop.f32.mrb[0].mxu0
      %955 = vdwg.mxu0
      %v956 = vadd.f32 %v766, %v919
      %v957 = vadd.f32 %v767, %v922
      %v958 = vadd.f32 %v768, %v927
      %v959 = vadd.f32 %v769, %v930
      %v960 = vadd.f32 %v770, %v935
      %v961 = vadd.f32 %v771, %v938
      %v962 = vadd.f32 %v772, %v943
      %v963 = vadd.f32 %v773, %v946
      %v964 = vadd.f32 %v774, %v951
      %s965 = scalar_lea.vmem %s1, 256
      %v966 = vld [vmem:[%s965] sm:$0xf]
      %v967 = vld [vmem:[%s965 + $0x4] sm:$0xf]
      %v968 = vld [vmem:[%s965 + $0x8] sm:$0xf]
      %v969 = vld [vmem:[%s965 + $0xc] sm:$0xf]
      %v970 = vld [vmem:[%s965 + $0x10] sm:$0xf]
      %v971 = vld [vmem:[%s965 + $0x14] sm:$0xf]
      %v972 = vld [vmem:[%s965 + $0x18] sm:$0xf]
      %v973 = vld [vmem:[%s965 + $0x1c] sm:$0xf]
      %v974 = vld [vmem:[%s965 + $0x20] sm:$0xf]
      %v975 = vld [vmem:[%s965 + $0x24] sm:$0xf]
      %v976 = vld [vmem:[%s965 + $0x28] sm:$0xf]
      %v977 = vld [vmem:[%s965 + $0x2c] sm:$0xf]
      %v978 = vld [vmem:[%s965 + $0x30] sm:$0xf]
      %v979 = vld [vmem:[%s965 + $0x34] sm:$0xf]
      %v980 = vld [vmem:[%s965 + $0x38] sm:$0xf]
      %v981 = vld [vmem:[%s965 + $0x3c] sm:$0xf]
      %v983 = vshrl.u32 %v313, 16
      %v985 = vshll.u32 %v313, 16
      %v987 = vrot.slane %v985, 1
      %v988 = vor.u32 %v983, %v987
      %v990 = vshll.u32 %v314, 16
      %v992 = vrot.slane %v990, 1
      %v993 = vsel %vm792, %v988, %v992
      %v994 = vshrl.u32 %v314, 16
      %v996 = vor.u32 %v994, %v992
      %v998 = vshll.u32 %v315, 16
      %v1000 = vrot.slane %v998, 1
      %v1001 = vsel %vm792, %v996, %v1000
      %v1002 = vshrl.u32 %v315, 16
      %v1004 = vor.u32 %v1002, %v1000
      %v1006 = vshll.u32 %v316, 16
      %v1008 = vrot.slane %v1006, 1
      %v1009 = vsel %vm792, %v1004, %v1008
      %v1010 = vshrl.u32 %v316, 16
      %v1012 = vor.u32 %v1010, %v1008
      %v1014 = vshll.u32 %v317, 16
      %v1016 = vrot.slane %v1014, 1
      %v1017 = vsel %vm792, %v1012, %v1016
      %v1018 = vshrl.u32 %v317, 16
      %v1041 = vunpack.c.l.b16 %v966
      %v1042 = vunpack.c.l.b16 %v967
      %v1043 = vunpack.c.l.b16 %v968
      %v1044 = vunpack.c.l.b16 %v969
      %v1045 = vunpack.c.l.b16 %v970
      %v1046 = vunpack.c.l.b16 %v971
      %v1047 = vunpack.c.l.b16 %v972
      %v1048 = vunpack.c.l.b16 %v973
      %v1049 = vunpack.c.l.b16 %v974
      %v1050 = vunpack.c.l.b16 %v975
      %v1051 = vunpack.c.l.b16 %v976
      %v1052 = vunpack.c.l.b16 %v977
      %v1053 = vunpack.c.l.b16 %v978
      %v1054 = vunpack.c.l.b16 %v979
      %v1055 = vunpack.c.l.b16 %v980
      %v1056 = vunpack.c.l.b16 %v981
      %v1057 = vpack.c.b16 %v1042, %v1041
      %v1058 = vpack.c.b16 %v1044, %v1043
      %v1059 = vpack.c.b16 %v1046, %v1045
      %v1060 = vpack.c.b16 %v1048, %v1047
      %v1061 = vpack.c.b16 %v1050, %v1049
      %v1062 = vpack.c.b16 %v1052, %v1051
      %v1063 = vpack.c.b16 %v1054, %v1053
      %v1064 = vpack.c.b16 %v1056, %v1055
      %1073 = vmatprep.subr.bf16.mxu0 0
      %1074 = vmatpush1.bf16.msra.mxu0 %v1057
      %1075 = vmatprep.subr.bf16.mxu0 0
      %1076 = vmatpush1.bf16.msra.mxu0 %v1058
      %1077 = vmatprep.subr.bf16.mxu0 0
      %1078 = vmatpush1.bf16.msra.mxu0 %v1059
      %1079 = vmatprep.subr.bf16.mxu0 0
      %1080 = vmatpush1.bf16.msra.mxu0 %v1060
      %1081 = vmatprep.subr.bf16.mxu0 0
      %1082 = vmatpush1.bf16.msra.mxu0 %v1061
      %1083 = vmatprep.subr.bf16.mxu0 0
      %1084 = vmatpush1.bf16.msra.mxu0 %v1062
      %1085 = vmatprep.subr.bf16.mxu0 0
      %1086 = vmatpush1.bf16.msra.mxu0 %v1063
      %1087 = vmatprep.subr.bf16.mxu0 0
      %1088 = vmatpush1.bf16.msra.mxu0 %v1064
      %1089 = vmatprep.subr.bf16.mxu0 0
      %1090 = vmatpush1.bf16.msra.mxu0 0
      %1091 = vmatprep.subr.bf16.mxu0 0
      %1092 = vmatpush1.bf16.msra.mxu0 0
      %1093 = vmatprep.subr.bf16.mxu0 0
      %1094 = vmatpush1.bf16.msra.mxu0 0
      %1095 = vmatprep.subr.bf16.mxu0 0
      %1096 = vmatpush1.bf16.msra.mxu0 0
      %1097 = vmatprep.subr.bf16.mxu0 0
      %1098 = vmatpush1.bf16.msra.mxu0 0
      %1099 = vmatprep.subr.bf16.mxu0 0
      %1100 = vmatpush1.bf16.msra.mxu0 0
      %1101 = vmatprep.subr.bf16.mxu0 0
      %1102 = vmatpush1.bf16.msra.mxu0 0
      %1103 = vmatprep.subr.bf16.mxu0 0
      %1104 = vmatpush1.bf16.msra.mxu0 0
      %1105 = vmatprep.mubr.bf16.mxu0 0
      %1106 = vmatmul.mubr.bf16.gmra.mrb[0].mxu0 %v993
      %v1107 = vpop.f32.mrb[0].mxu0
      %v1108 = vadd.f32 0.0, %v1107
      %v1109 = vpop.f32.mrb[0].mxu0
      %v1110 = vpop.f32.mrb[0].mxu0
      %v1111 = vadd.f32 0.0, %v1110
      %v1112 = vpop.f32.mrb[0].mxu0
      %1113 = vmatprep.mubr.bf16.mxu0 0
      %1114 = vmatmul.mubr.bf16.gmra.mrb[0].mxu0 %v1001
      %v1115 = vpop.f32.mrb[0].mxu0
      %v1116 = vadd.f32 0.0, %v1115
      %v1117 = vpop.f32.mrb[0].mxu0
      %v1118 = vpop.f32.mrb[0].mxu0
      %v1119 = vadd.f32 0.0, %v1118
      %v1120 = vpop.f32.mrb[0].mxu0
      %1121 = vmatprep.mubr.bf16.mxu0 0
      %1122 = vmatmul.mubr.bf16.gmra.mrb[0].mxu0 %v1009
      %v1123 = vpop.f32.mrb[0].mxu0
      %v1124 = vadd.f32 0.0, %v1123
      %v1125 = vpop.f32.mrb[0].mxu0
      %v1126 = vpop.f32.mrb[0].mxu0
      %v1127 = vadd.f32 0.0, %v1126
      %v1128 = vpop.f32.mrb[0].mxu0
      %1129 = vmatprep.mubr.bf16.mxu0 0
      %1130 = vmatmul.mubr.bf16.gmra.mrb[0].mxu0 %v1017
      %v1131 = vpop.f32.mrb[0].mxu0
      %v1132 = vadd.f32 0.0, %v1131
      %v1133 = vpop.f32.mrb[0].mxu0
      %v1134 = vpop.f32.mrb[0].mxu0
      %v1135 = vadd.f32 0.0, %v1134
      %v1136 = vpop.f32.mrb[0].mxu0
      %1137 = vmatprep.mubr.bf16.mxu0 0
      %1138 = vmatmul.mubr.bf16.gmra.mrb[0].mxu0 %v1018
      %v1139 = vpop.f32.mrb[0].mxu0
      %v1140 = vadd.f32 0.0, %v1139
      %v1141 = vpop.f32.mrb[0].mxu0
      %v1142 = vpop.f32.mrb[0].mxu0
      %v1143 = vpop.f32.mrb[0].mxu0
      %1144 = vdwg.mxu0
      %v1145 = vadd.f32 %v956, %v1108
      %v1146 = vadd.f32 %v957, %v1111
      %v1147 = vadd.f32 %v958, %v1116
      %v1148 = vadd.f32 %v959, %v1119
      %v1149 = vadd.f32 %v960, %v1124
      %v1150 = vadd.f32 %v961, %v1127
      %v1151 = vadd.f32 %v962, %v1132
      %v1152 = vadd.f32 %v963, %v1135
      %v1153 = vadd.f32 %v964, %v1140
      %s1154 = scalar_lea.vmem %s1, 320
      %v1155 = vld [vmem:[%s1154] sm:$0xf]
      %v1156 = vld [vmem:[%s1154 + $0x4] sm:$0xf]
      %v1157 = vld [vmem:[%s1154 + $0x8] sm:$0xf]
      %v1158 = vld [vmem:[%s1154 + $0xc] sm:$0xf]
      %v1159 = vld [vmem:[%s1154 + $0x10] sm:$0xf]
      %v1160 = vld [vmem:[%s1154 + $0x14] sm:$0xf]
      %v1161 = vld [vmem:[%s1154 + $0x18] sm:$0xf]
      %v1162 = vld [vmem:[%s1154 + $0x1c] sm:$0xf]
      %v1163 = vld [vmem:[%s1154 + $0x20] sm:$0xf]
      %v1164 = vld [vmem:[%s1154 + $0x24] sm:$0xf]
      %v1165 = vld [vmem:[%s1154 + $0x28] sm:$0xf]
      %v1166 = vld [vmem:[%s1154 + $0x2c] sm:$0xf]
      %v1167 = vld [vmem:[%s1154 + $0x30] sm:$0xf]
      %v1168 = vld [vmem:[%s1154 + $0x34] sm:$0xf]
      %v1169 = vld [vmem:[%s1154 + $0x38] sm:$0xf]
      %v1170 = vld [vmem:[%s1154 + $0x3c] sm:$0xf]
      %v1172 = vshrl.u32 %v636, 16
      %v1174 = vshll.u32 %v636, 16
      %v1176 = vrot.slane %v1174, 1
      %v1177 = vor.u32 %v1172, %v1176
      %v1179 = vshll.u32 %v637, 16
      %v1181 = vrot.slane %v1179, 1
      %v1182 = vsel %vm792, %v1177, %v1181
      %v1183 = vshrl.u32 %v637, 16
      %v1185 = vor.u32 %v1183, %v1181
      %v1187 = vshll.u32 %v638, 16
      %v1189 = vrot.slane %v1187, 1
      %v1190 = vsel %vm792, %v1185, %v1189
      %v1191 = vshrl.u32 %v638, 16
      %v1193 = vor.u32 %v1191, %v1189
      %v1195 = vshll.u32 %v639, 16
      %v1197 = vrot.slane %v1195, 1
      %v1198 = vsel %vm792, %v1193, %v1197
      %v1199 = vshrl.u32 %v639, 16
      %v1201 = vor.u32 %v1199, %v1197
      %v1203 = vshll.u32 %v640, 16
      %v1205 = vrot.slane %v1203, 1
      %v1206 = vsel %vm792, %v1201, %v1205
      %v1207 = vshrl.u32 %v640, 16
      %v1230 = vunpack.c.l.b16 %v1155
      %v1231 = vunpack.c.l.b16 %v1156
      %v1232 = vunpack.c.l.b16 %v1157
      %v1233 = vunpack.c.l.b16 %v1158
      %v1234 = vunpack.c.l.b16 %v1159
      %v1235 = vunpack.c.l.b16 %v1160
      %v1236 = vunpack.c.l.b16 %v1161
      %v1237 = vunpack.c.l.b16 %v1162
      %v1238 = vunpack.c.l.b16 %v1163
      %v1239 = vunpack.c.l.b16 %v1164
      %v1240 = vunpack.c.l.b16 %v1165
      %v1241 = vunpack.c.l.b16 %v1166
      %v1242 = vunpack.c.l.b16 %v1167
      %v1243 = vunpack.c.l.b16 %v1168
      %v1244 = vunpack.c.l.b16 %v1169
      %v1245 = vunpack.c.l.b16 %v1170
      %v1246 = vpack.c.b16 %v1231, %v1230
      %v1247 = vpack.c.b16 %v1233, %v1232
      %v1248 = vpack.c.b16 %v1235, %v1234
      %v1249 = vpack.c.b16 %v1237, %v1236
      %v1250 = vpack.c.b16 %v1239, %v1238
      %v1251 = vpack.c.b16 %v1241, %v1240
      %v1252 = vpack.c.b16 %v1243, %v1242
      %v1253 = vpack.c.b16 %v1245, %v1244
      %1262 = vmatprep.subr.bf16.mxu0 0
      %1263 = vmatpush1.bf16.msra.mxu0 %v1246
      %1264 = vmatprep.subr.bf16.mxu0 0
      %1265 = vmatpush1.bf16.msra.mxu0 %v1247
      %1266 = vmatprep.subr.bf16.mxu0 0
      %1267 = vmatpush1.bf16.msra.mxu0 %v1248
      %1268 = vmatprep.subr.bf16.mxu0 0
      %1269 = vmatpush1.bf16.msra.mxu0 %v1249
      %1270 = vmatprep.subr.bf16.mxu0 0
      %1271 = vmatpush1.bf16.msra.mxu0 %v1250
      %1272 = vmatprep.subr.bf16.mxu0 0
      %1273 = vmatpush1.bf16.msra.mxu0 %v1251
      %1274 = vmatprep.subr.bf16.mxu0 0
      %1275 = vmatpush1.bf16.msra.mxu0 %v1252
      %1276 = vmatprep.subr.bf16.mxu0 0
      %1277 = vmatpush1.bf16.msra.mxu0 %v1253
      %1278 = vmatprep.subr.bf16.mxu0 0
      %1279 = vmatpush1.bf16.msra.mxu0 0
      %1280 = vmatprep.subr.bf16.mxu0 0
      %1281 = vmatpush1.bf16.msra.mxu0 0
      %1282 = vmatprep.subr.bf16.mxu0 0
      %1283 = vmatpush1.bf16.msra.mxu0 0
      %1284 = vmatprep.subr.bf16.mxu0 0
      %1285 = vmatpush1.bf16.msra.mxu0 0
      %1286 = vmatprep.subr.bf16.mxu0 0
      %1287 = vmatpush1.bf16.msra.mxu0 0
      %1288 = vmatprep.subr.bf16.mxu0 0
      %1289 = vmatpush1.bf16.msra.mxu0 0
      %1290 = vmatprep.subr.bf16.mxu0 0
      %1291 = vmatpush1.bf16.msra.mxu0 0
      %1292 = vmatprep.subr.bf16.mxu0 0
      %1293 = vmatpush1.bf16.msra.mxu0 0
      %1294 = vmatprep.mubr.bf16.mxu0 0
      %1295 = vmatmul.mubr.bf16.gmra.mrb[0].mxu0 %v1182
      %v1296 = vpop.f32.mrb[0].mxu0
      %v1297 = vadd.f32 0.0, %v1296
      %v1298 = vpop.f32.mrb[0].mxu0
      %v1299 = vpop.f32.mrb[0].mxu0
      %v1300 = vadd.f32 0.0, %v1299
      %v1301 = vpop.f32.mrb[0].mxu0
      %1302 = vmatprep.mubr.bf16.mxu0 0
      %1303 = vmatmul.mubr.bf16.gmra.mrb[0].mxu0 %v1190
      %v1304 = vpop.f32.mrb[0].mxu0
      %v1305 = vadd.f32 0.0, %v1304
      %v1306 = vpop.f32.mrb[0].mxu0
      %v1307 = vpop.f32.mrb[0].mxu0
      %v1308 = vadd.f32 0.0, %v1307
      %v1309 = vpop.f32.mrb[0].mxu0
      %1310 = vmatprep.mubr.bf16.mxu0 0
      %1311 = vmatmul.mubr.bf16.gmra.mrb[0].mxu0 %v1198
      %v1312 = vpop.f32.mrb[0].mxu0
      %v1313 = vadd.f32 0.0, %v1312
      %v1314 = vpop.f32.mrb[0].mxu0
      %v1315 = vpop.f32.mrb[0].mxu0
      %v1316 = vadd.f32 0.0, %v1315
      %v1317 = vpop.f32.mrb[0].mxu0
      %1318 = vmatprep.mubr.bf16.mxu0 0
      %1319 = vmatmul.mubr.bf16.gmra.mrb[0].mxu0 %v1206
      %v1320 = vpop.f32.mrb[0].mxu0
      %v1321 = vadd.f32 0.0, %v1320
      %v1322 = vpop.f32.mrb[0].mxu0
      %v1323 = vpop.f32.mrb[0].mxu0
      %v1324 = vadd.f32 0.0, %v1323
      %v1325 = vpop.f32.mrb[0].mxu0
      %1326 = vmatprep.mubr.bf16.mxu0 0
      %1327 = vmatmul.mubr.bf16.gmra.mrb[0].mxu0 %v1207
      %v1328 = vpop.f32.mrb[0].mxu0
      %v1329 = vadd.f32 0.0, %v1328
      %v1330 = vpop.f32.mrb[0].mxu0
      %v1331 = vpop.f32.mrb[0].mxu0
      %v1332 = vpop.f32.mrb[0].mxu0
      %1333 = vdwg.mxu0
      %v1334 = vadd.f32 %v1145, %v1297
      %v1335 = vadd.f32 %v1146, %v1300
      %v1336 = vadd.f32 %v1147, %v1305
      %v1337 = vadd.f32 %v1148, %v1308
      %v1338 = vadd.f32 %v1149, %v1313
      %v1339 = vadd.f32 %v1150, %v1316
      %v1340 = vadd.f32 %v1151, %v1321
      %v1341 = vadd.f32 %v1152, %v1324
      %v1342 = vadd.f32 %v1153, %v1329
      %v1343 = vld [vmem:[%s230] sm:$0xe]
      %v1344 = vld [vmem:[%s230 + $0x20] sm:$0x3]
      %s1345 = scalar_lea.vmem %s1, 384
      %v1346 = vld [vmem:[%s1345] sm:$0xf]
      %v1347 = vld [vmem:[%s1345 + $0x4] sm:$0xf]
      %v1348 = vld [vmem:[%s1345 + $0x8] sm:$0xf]
      %v1349 = vld [vmem:[%s1345 + $0xc] sm:$0xf]
      %v1350 = vld [vmem:[%s1345 + $0x10] sm:$0xf]
      %v1351 = vld [vmem:[%s1345 + $0x14] sm:$0xf]
      %v1352 = vld [vmem:[%s1345 + $0x18] sm:$0xf]
      %v1353 = vld [vmem:[%s1345 + $0x1c] sm:$0xf]
      %v1354 = vld [vmem:[%s1345 + $0x20] sm:$0xf]
      %v1355 = vld [vmem:[%s1345 + $0x24] sm:$0xf]
      %v1356 = vld [vmem:[%s1345 + $0x28] sm:$0xf]
      %v1357 = vld [vmem:[%s1345 + $0x2c] sm:$0xf]
      %v1358 = vld [vmem:[%s1345 + $0x30] sm:$0xf]
      %v1359 = vld [vmem:[%s1345 + $0x34] sm:$0xf]
      %v1360 = vld [vmem:[%s1345 + $0x38] sm:$0xf]
      %v1361 = vld [vmem:[%s1345 + $0x3c] sm:$0xf]
      %v1364 = vunpack.c.l.b16 %v1343
      %v1365 = vunpack.c.l.b16 %v1344
      %v1366 = vpack.c.b16 %v453, %v1364
      %v1367 = vpack.c.b16 %v1365, %v1365
      %vm1368 = vcmask 1046528
      %v1369 = vrot.slane %v1366, 1
      %v1370 = vrot.slane %v462, 1
      %v1371 = vsel %vm1368, %v1369, %v1370
      %v1372 = vrot.slane %v463, 1
      %v1373 = vsel %vm1368, %v1370, %v1372
      %v1374 = vrot.slane %v464, 1
      %v1375 = vsel %vm1368, %v1372, %v1374
      %v1376 = vrot.slane %v1367, 1
      %v1377 = vsel %vm1368, %v1374, %v1376
      %v1399 = vunpack.c.l.b16 %v1346
      %v1400 = vunpack.c.l.b16 %v1347
      %v1401 = vunpack.c.l.b16 %v1348
      %v1402 = vunpack.c.l.b16 %v1349
      %v1403 = vunpack.c.l.b16 %v1350
      %v1404 = vunpack.c.l.b16 %v1351
      %v1405 = vunpack.c.l.b16 %v1352
      %v1406 = vunpack.c.l.b16 %v1353
      %v1407 = vunpack.c.l.b16 %v1354
      %v1408 = vunpack.c.l.b16 %v1355
      %v1409 = vunpack.c.l.b16 %v1356
      %v1410 = vunpack.c.l.b16 %v1357
      %v1411 = vunpack.c.l.b16 %v1358
      %v1412 = vunpack.c.l.b16 %v1359
      %v1413 = vunpack.c.l.b16 %v1360
      %v1414 = vunpack.c.l.b16 %v1361
      %v1415 = vpack.c.b16 %v1400, %v1399
      %v1416 = vpack.c.b16 %v1402, %v1401
      %v1417 = vpack.c.b16 %v1404, %v1403
      %v1418 = vpack.c.b16 %v1406, %v1405
      %v1419 = vpack.c.b16 %v1408, %v1407
      %v1420 = vpack.c.b16 %v1410, %v1409
      %v1421 = vpack.c.b16 %v1412, %v1411
      %v1422 = vpack.c.b16 %v1414, %v1413
      %1431 = vmatprep.subr.bf16.mxu0 0
      %1432 = vmatpush1.bf16.msra.mxu0 %v1415
      %1433 = vmatprep.subr.bf16.mxu0 0
      %1434 = vmatpush1.bf16.msra.mxu0 %v1416
      %1435 = vmatprep.subr.bf16.mxu0 0
      %1436 = vmatpush1.bf16.msra.mxu0 %v1417
      %1437 = vmatprep.subr.bf16.mxu0 0
      %1438 = vmatpush1.bf16.msra.mxu0 %v1418
      %1439 = vmatprep.subr.bf16.mxu0 0
      %1440 = vmatpush1.bf16.msra.mxu0 %v1419
      %1441 = vmatprep.subr.bf16.mxu0 0
      %1442 = vmatpush1.bf16.msra.mxu0 %v1420
      %1443 = vmatprep.subr.bf16.mxu0 0
      %1444 = vmatpush1.bf16.msra.mxu0 %v1421
      %1445 = vmatprep.subr.bf16.mxu0 0
      %1446 = vmatpush1.bf16.msra.mxu0 %v1422
      %1447 = vmatprep.subr.bf16.mxu0 0
      %1448 = vmatpush1.bf16.msra.mxu0 0
      %1449 = vmatprep.subr.bf16.mxu0 0
      %1450 = vmatpush1.bf16.msra.mxu0 0
      %1451 = vmatprep.subr.bf16.mxu0 0
      %1452 = vmatpush1.bf16.msra.mxu0 0
      %1453 = vmatprep.subr.bf16.mxu0 0
      %1454 = vmatpush1.bf16.msra.mxu0 0
      %1455 = vmatprep.subr.bf16.mxu0 0
      %1456 = vmatpush1.bf16.msra.mxu0 0
      %1457 = vmatprep.subr.bf16.mxu0 0
      %1458 = vmatpush1.bf16.msra.mxu0 0
      %1459 = vmatprep.subr.bf16.mxu0 0
      %1460 = vmatpush1.bf16.msra.mxu0 0
      %1461 = vmatprep.subr.bf16.mxu0 0
      %1462 = vmatpush1.bf16.msra.mxu0 0
      %1463 = vmatprep.mubr.bf16.mxu0 0
      %1464 = vmatmul.mubr.bf16.gmra.mrb[0].mxu0 %v1371
      %v1465 = vpop.f32.mrb[0].mxu0
      %v1466 = vadd.f32 0.0, %v1465
      %v1467 = vpop.f32.mrb[0].mxu0
      %v1468 = vpop.f32.mrb[0].mxu0
      %v1469 = vadd.f32 0.0, %v1468
      %v1470 = vpop.f32.mrb[0].mxu0
      %1471 = vmatprep.mubr.bf16.mxu0 0
      %1472 = vmatmul.mubr.bf16.gmra.mrb[0].mxu0 %v1373
      %v1473 = vpop.f32.mrb[0].mxu0
      %v1474 = vadd.f32 0.0, %v1473
      %v1475 = vpop.f32.mrb[0].mxu0
      %v1476 = vpop.f32.mrb[0].mxu0
      %v1477 = vadd.f32 0.0, %v1476
      %v1478 = vpop.f32.mrb[0].mxu0
      %1479 = vmatprep.mubr.bf16.mxu0 0
      %1480 = vmatmul.mubr.bf16.gmra.mrb[0].mxu0 %v1375
      %v1481 = vpop.f32.mrb[0].mxu0
      %v1482 = vadd.f32 0.0, %v1481
      %v1483 = vpop.f32.mrb[0].mxu0
      %v1484 = vpop.f32.mrb[0].mxu0
      %v1485 = vadd.f32 0.0, %v1484
      %v1486 = vpop.f32.mrb[0].mxu0
      %1487 = vmatprep.mubr.bf16.mxu0 0
      %1488 = vmatmul.mubr.bf16.gmra.mrb[0].mxu0 %v1377
      %v1489 = vpop.f32.mrb[0].mxu0
      %v1490 = vadd.f32 0.0, %v1489
      %v1491 = vpop.f32.mrb[0].mxu0
      %v1492 = vpop.f32.mrb[0].mxu0
      %v1493 = vadd.f32 0.0, %v1492
      %v1494 = vpop.f32.mrb[0].mxu0
      %1495 = vmatprep.mubr.bf16.mxu0 0
      %1496 = vmatmul.mubr.bf16.gmra.mrb[0].mxu0 %v1376
      %v1497 = vpop.f32.mrb[0].mxu0
      %v1498 = vadd.f32 0.0, %v1497
      %v1499 = vpop.f32.mrb[0].mxu0
      %v1500 = vpop.f32.mrb[0].mxu0
      %v1501 = vpop.f32.mrb[0].mxu0
      %1502 = vdwg.mxu0
      %v1503 = vadd.f32 %v1334, %v1466
      %v1504 = vadd.f32 %v1335, %v1469
      %v1505 = vadd.f32 %v1336, %v1474
      %v1506 = vadd.f32 %v1337, %v1477
      %v1507 = vadd.f32 %v1338, %v1482
      %v1508 = vadd.f32 %v1339, %v1485
      %v1509 = vadd.f32 %v1340, %v1490
      %v1510 = vadd.f32 %v1341, %v1493
      %v1511 = vadd.f32 %v1342, %v1498
      %v1512 = vld [vmem:[%s268] sm:$0xe]
      %v1513 = vld [vmem:[%s268 + $0x20] sm:$0x3]
      %s1514 = scalar_lea.vmem %s1, 448
      %v1515 = vld [vmem:[%s1514] sm:$0xf]
      %v1516 = vld [vmem:[%s1514 + $0x4] sm:$0xf]
      %v1517 = vld [vmem:[%s1514 + $0x8] sm:$0xf]
      %v1518 = vld [vmem:[%s1514 + $0xc] sm:$0xf]
      %v1519 = vld [vmem:[%s1514 + $0x10] sm:$0xf]
      %v1520 = vld [vmem:[%s1514 + $0x14] sm:$0xf]
      %v1521 = vld [vmem:[%s1514 + $0x18] sm:$0xf]
      %v1522 = vld [vmem:[%s1514 + $0x1c] sm:$0xf]
      %v1523 = vld [vmem:[%s1514 + $0x20] sm:$0xf]
      %v1524 = vld [vmem:[%s1514 + $0x24] sm:$0xf]
      %v1525 = vld [vmem:[%s1514 + $0x28] sm:$0xf]
      %v1526 = vld [vmem:[%s1514 + $0x2c] sm:$0xf]
      %v1527 = vld [vmem:[%s1514 + $0x30] sm:$0xf]
      %v1528 = vld [vmem:[%s1514 + $0x34] sm:$0xf]
      %v1529 = vld [vmem:[%s1514 + $0x38] sm:$0xf]
      %v1530 = vld [vmem:[%s1514 + $0x3c] sm:$0xf]
      %v1533 = vunpack.c.l.b16 %v1512
      %v1534 = vunpack.c.l.b16 %v1513
      %v1535 = vpack.c.b16 %v305, %v1533
      %v1536 = vpack.c.b16 %v1534, %v1534
      %v1537 = vrot.slane %v1535, 1
      %v1538 = vrot.slane %v314, 1
      %v1539 = vsel %vm1368, %v1537, %v1538
      %v1540 = vrot.slane %v315, 1
      %v1541 = vsel %vm1368, %v1538, %v1540
      %v1542 = vrot.slane %v316, 1
      %v1543 = vsel %vm1368, %v1540, %v1542
      %v1544 = vrot.slane %v1536, 1
      %v1545 = vsel %vm1368, %v1542, %v1544
      %v1567 = vunpack.c.l.b16 %v1515
      %v1568 = vunpack.c.l.b16 %v1516
      %v1569 = vunpack.c.l.b16 %v1517
      %v1570 = vunpack.c.l.b16 %v1518
      %v1571 = vunpack.c.l.b16 %v1519
      %v1572 = vunpack.c.l.b16 %v1520
      %v1573 = vunpack.c.l.b16 %v1521
      %v1574 = vunpack.c.l.b16 %v1522
      %v1575 = vunpack.c.l.b16 %v1523
      %v1576 = vunpack.c.l.b16 %v1524
      %v1577 = vunpack.c.l.b16 %v1525
      %v1578 = vunpack.c.l.b16 %v1526
      %v1579 = vunpack.c.l.b16 %v1527
      %v1580 = vunpack.c.l.b16 %v1528
      %v1581 = vunpack.c.l.b16 %v1529
      %v1582 = vunpack.c.l.b16 %v1530
      %v1583 = vpack.c.b16 %v1568, %v1567
      %v1584 = vpack.c.b16 %v1570, %v1569
      %v1585 = vpack.c.b16 %v1572, %v1571
      %v1586 = vpack.c.b16 %v1574, %v1573
      %v1587 = vpack.c.b16 %v1576, %v1575
      %v1588 = vpack.c.b16 %v1578, %v1577
      %v1589 = vpack.c.b16 %v1580, %v1579
      %v1590 = vpack.c.b16 %v1582, %v1581
      %1599 = vmatprep.subr.bf16.mxu0 0
      %1600 = vmatpush1.bf16.msra.mxu0 %v1583
      %1601 = vmatprep.subr.bf16.mxu0 0
      %1602 = vmatpush1.bf16.msra.mxu0 %v1584
      %1603 = vmatprep.subr.bf16.mxu0 0
      %1604 = vmatpush1.bf16.msra.mxu0 %v1585
      %1605 = vmatprep.subr.bf16.mxu0 0
      %1606 = vmatpush1.bf16.msra.mxu0 %v1586
      %1607 = vmatprep.subr.bf16.mxu0 0
      %1608 = vmatpush1.bf16.msra.mxu0 %v1587
      %1609 = vmatprep.subr.bf16.mxu0 0
      %1610 = vmatpush1.bf16.msra.mxu0 %v1588
      %1611 = vmatprep.subr.bf16.mxu0 0
      %1612 = vmatpush1.bf16.msra.mxu0 %v1589
      %1613 = vmatprep.subr.bf16.mxu0 0
      %1614 = vmatpush1.bf16.msra.mxu0 %v1590
      %1615 = vmatprep.subr.bf16.mxu0 0
      %1616 = vmatpush1.bf16.msra.mxu0 0
      %1617 = vmatprep.subr.bf16.mxu0 0
      %1618 = vmatpush1.bf16.msra.mxu0 0
      %1619 = vmatprep.subr.bf16.mxu0 0
      %1620 = vmatpush1.bf16.msra.mxu0 0
      %1621 = vmatprep.subr.bf16.mxu0 0
      %1622 = vmatpush1.bf16.msra.mxu0 0
      %1623 = vmatprep.subr.bf16.mxu0 0
      %1624 = vmatpush1.bf16.msra.mxu0 0
      %1625 = vmatprep.subr.bf16.mxu0 0
      %1626 = vmatpush1.bf16.msra.mxu0 0
      %1627 = vmatprep.subr.bf16.mxu0 0
      %1628 = vmatpush1.bf16.msra.mxu0 0
      %1629 = vmatprep.subr.bf16.mxu0 0
      %1630 = vmatpush1.bf16.msra.mxu0 0
      %1631 = vmatprep.mubr.bf16.mxu0 0
      %1632 = vmatmul.mubr.bf16.gmra.mrb[0].mxu0 %v1539
      %v1633 = vpop.f32.mrb[0].mxu0
      %v1634 = vadd.f32 0.0, %v1633
      %v1635 = vpop.f32.mrb[0].mxu0
      %v1636 = vpop.f32.mrb[0].mxu0
      %v1637 = vadd.f32 0.0, %v1636
      %v1638 = vpop.f32.mrb[0].mxu0
      %1639 = vmatprep.mubr.bf16.mxu0 0
      %1640 = vmatmul.mubr.bf16.gmra.mrb[0].mxu0 %v1541
      %v1641 = vpop.f32.mrb[0].mxu0
      %v1642 = vadd.f32 0.0, %v1641
      %v1643 = vpop.f32.mrb[0].mxu0
      %v1644 = vpop.f32.mrb[0].mxu0
      %v1645 = vadd.f32 0.0, %v1644
      %v1646 = vpop.f32.mrb[0].mxu0
      %1647 = vmatprep.mubr.bf16.mxu0 0
      %1648 = vmatmul.mubr.bf16.gmra.mrb[0].mxu0 %v1543
      %v1649 = vpop.f32.mrb[0].mxu0
      %v1650 = vadd.f32 0.0, %v1649
      %v1651 = vpop.f32.mrb[0].mxu0
      %v1652 = vpop.f32.mrb[0].mxu0
      %v1653 = vadd.f32 0.0, %v1652
      %v1654 = vpop.f32.mrb[0].mxu0
      %1655 = vmatprep.mubr.bf16.mxu0 0
      %1656 = vmatmul.mubr.bf16.gmra.mrb[0].mxu0 %v1545
      %v1657 = vpop.f32.mrb[0].mxu0
      %v1658 = vadd.f32 0.0, %v1657
      %v1659 = vpop.f32.mrb[0].mxu0
      %v1660 = vpop.f32.mrb[0].mxu0
      %v1661 = vadd.f32 0.0, %v1660
      %v1662 = vpop.f32.mrb[0].mxu0
      %1663 = vmatprep.mubr.bf16.mxu0 0
      %1664 = vmatmul.mubr.bf16.gmra.mrb[0].mxu0 %v1544
      %v1665 = vpop.f32.mrb[0].mxu0
      %v1666 = vadd.f32 0.0, %v1665
      %v1667 = vpop.f32.mrb[0].mxu0
      %v1668 = vpop.f32.mrb[0].mxu0
      %v1669 = vpop.f32.mrb[0].mxu0
      %1670 = vdwg.mxu0
      %v1671 = vadd.f32 %v1503, %v1634
      %v1672 = vadd.f32 %v1504, %v1637
      %v1673 = vadd.f32 %v1505, %v1642
      %v1674 = vadd.f32 %v1506, %v1645
      %v1675 = vadd.f32 %v1507, %v1650
      %v1676 = vadd.f32 %v1508, %v1653
      %v1677 = vadd.f32 %v1509, %v1658
      %v1678 = vadd.f32 %v1510, %v1661
      %v1679 = vadd.f32 %v1511, %v1666
      %v1680 = vld [vmem:[%s591] sm:$0xe]
      %v1681 = vld [vmem:[%s591 + $0x20] sm:$0x3]
      %s1682 = scalar_lea.vmem %s1, 512
      %v1683 = vld [vmem:[%s1682] sm:$0xf]
      %v1684 = vld [vmem:[%s1682 + $0x4] sm:$0xf]
      %v1685 = vld [vmem:[%s1682 + $0x8] sm:$0xf]
      %v1686 = vld [vmem:[%s1682 + $0xc] sm:$0xf]
      %v1687 = vld [vmem:[%s1682 + $0x10] sm:$0xf]
      %v1688 = vld [vmem:[%s1682 + $0x14] sm:$0xf]
      %v1689 = vld [vmem:[%s1682 + $0x18] sm:$0xf]
      %v1690 = vld [vmem:[%s1682 + $0x1c] sm:$0xf]
      %v1691 = vld [vmem:[%s1682 + $0x20] sm:$0xf]
      %v1692 = vld [vmem:[%s1682 + $0x24] sm:$0xf]
      %v1693 = vld [vmem:[%s1682 + $0x28] sm:$0xf]
      %v1694 = vld [vmem:[%s1682 + $0x2c] sm:$0xf]
      %v1695 = vld [vmem:[%s1682 + $0x30] sm:$0xf]
      %v1696 = vld [vmem:[%s1682 + $0x34] sm:$0xf]
      %v1697 = vld [vmem:[%s1682 + $0x38] sm:$0xf]
      %v1698 = vld [vmem:[%s1682 + $0x3c] sm:$0xf]
      %v1701 = vunpack.c.l.b16 %v1680
      %v1702 = vunpack.c.l.b16 %v1681
      %v1703 = vpack.c.b16 %v628, %v1701
      %v1704 = vpack.c.b16 %v1702, %v1702
      %v1705 = vrot.slane %v1703, 1
      %v1706 = vrot.slane %v637, 1
      %v1707 = vsel %vm1368, %v1705, %v1706
      %v1708 = vrot.slane %v638, 1
      %v1709 = vsel %vm1368, %v1706, %v1708
      %v1710 = vrot.slane %v639, 1
      %v1711 = vsel %vm1368, %v1708, %v1710
      %v1712 = vrot.slane %v1704, 1
      %v1713 = vsel %vm1368, %v1710, %v1712
      %v1735 = vunpack.c.l.b16 %v1683
      %v1736 = vunpack.c.l.b16 %v1684
      %v1737 = vunpack.c.l.b16 %v1685
      %v1738 = vunpack.c.l.b16 %v1686
      %v1739 = vunpack.c.l.b16 %v1687
      %v1740 = vunpack.c.l.b16 %v1688
      %v1741 = vunpack.c.l.b16 %v1689
      %v1742 = vunpack.c.l.b16 %v1690
      %v1743 = vunpack.c.l.b16 %v1691
      %v1744 = vunpack.c.l.b16 %v1692
      %v1745 = vunpack.c.l.b16 %v1693
      %v1746 = vunpack.c.l.b16 %v1694
      %v1747 = vunpack.c.l.b16 %v1695
      %v1748 = vunpack.c.l.b16 %v1696
      %v1749 = vunpack.c.l.b16 %v1697
      %v1750 = vunpack.c.l.b16 %v1698
      %v1751 = vpack.c.b16 %v1736, %v1735
      %v1752 = vpack.c.b16 %v1738, %v1737
      %v1753 = vpack.c.b16 %v1740, %v1739
      %v1754 = vpack.c.b16 %v1742, %v1741
      %v1755 = vpack.c.b16 %v1744, %v1743
      %v1756 = vpack.c.b16 %v1746, %v1745
      %v1757 = vpack.c.b16 %v1748, %v1747
      %v1758 = vpack.c.b16 %v1750, %v1749
      %1767 = vmatprep.subr.bf16.mxu0 0
      %1768 = vmatpush1.bf16.msra.mxu0 %v1751
      %1769 = vmatprep.subr.bf16.mxu0 0
      %1770 = vmatpush1.bf16.msra.mxu0 %v1752
      %1771 = vmatprep.subr.bf16.mxu0 0
      %1772 = vmatpush1.bf16.msra.mxu0 %v1753
      %1773 = vmatprep.subr.bf16.mxu0 0
      %1774 = vmatpush1.bf16.msra.mxu0 %v1754
      %1775 = vmatprep.subr.bf16.mxu0 0
      %1776 = vmatpush1.bf16.msra.mxu0 %v1755
      %1777 = vmatprep.subr.bf16.mxu0 0
      %1778 = vmatpush1.bf16.msra.mxu0 %v1756
      %1779 = vmatprep.subr.bf16.mxu0 0
      %1780 = vmatpush1.bf16.msra.mxu0 %v1757
      %1781 = vmatprep.subr.bf16.mxu0 0
      %1782 = vmatpush1.bf16.msra.mxu0 %v1758
      %1783 = vmatprep.subr.bf16.mxu0 0
      %1784 = vmatpush1.bf16.msra.mxu0 0
      %1785 = vmatprep.subr.bf16.mxu0 0
      %1786 = vmatpush1.bf16.msra.mxu0 0
      %1787 = vmatprep.subr.bf16.mxu0 0
      %1788 = vmatpush1.bf16.msra.mxu0 0
      %1789 = vmatprep.subr.bf16.mxu0 0
      %1790 = vmatpush1.bf16.msra.mxu0 0
      %1791 = vmatprep.subr.bf16.mxu0 0
      %1792 = vmatpush1.bf16.msra.mxu0 0
      %1793 = vmatprep.subr.bf16.mxu0 0
      %1794 = vmatpush1.bf16.msra.mxu0 0
      %1795 = vmatprep.subr.bf16.mxu0 0
      %1796 = vmatpush1.bf16.msra.mxu0 0
      %1797 = vmatprep.subr.bf16.mxu0 0
      %1798 = vmatpush1.bf16.msra.mxu0 0
      %1799 = vmatprep.mubr.bf16.mxu0 0
      %1800 = vmatmul.mubr.bf16.gmra.mrb[0].mxu0 %v1707
      %v1801 = vpop.f32.mrb[0].mxu0
      %v1802 = vadd.f32 0.0, %v1801
      %v1803 = vpop.f32.mrb[0].mxu0
      %v1804 = vpop.f32.mrb[0].mxu0
      %v1805 = vadd.f32 0.0, %v1804
      %v1806 = vpop.f32.mrb[0].mxu0
      %1807 = vmatprep.mubr.bf16.mxu0 0
      %1808 = vmatmul.mubr.bf16.gmra.mrb[0].mxu0 %v1709
      %v1809 = vpop.f32.mrb[0].mxu0
      %v1810 = vadd.f32 0.0, %v1809
      %v1811 = vpop.f32.mrb[0].mxu0
      %v1812 = vpop.f32.mrb[0].mxu0
      %v1813 = vadd.f32 0.0, %v1812
      %v1814 = vpop.f32.mrb[0].mxu0
      %1815 = vmatprep.mubr.bf16.mxu0 0
      %1816 = vmatmul.mubr.bf16.gmra.mrb[0].mxu0 %v1711
      %v1817 = vpop.f32.mrb[0].mxu0
      %v1818 = vadd.f32 0.0, %v1817
      %v1819 = vpop.f32.mrb[0].mxu0
      %v1820 = vpop.f32.mrb[0].mxu0
      %v1821 = vadd.f32 0.0, %v1820
      %v1822 = vpop.f32.mrb[0].mxu0
      %1823 = vmatprep.mubr.bf16.mxu0 0
      %1824 = vmatmul.mubr.bf16.gmra.mrb[0].mxu0 %v1713
      %v1825 = vpop.f32.mrb[0].mxu0
      %v1826 = vadd.f32 0.0, %v1825
      %v1827 = vpop.f32.mrb[0].mxu0
      %v1828 = vpop.f32.mrb[0].mxu0
      %v1829 = vadd.f32 0.0, %v1828
      %v1830 = vpop.f32.mrb[0].mxu0
      %1831 = vmatprep.mubr.bf16.mxu0 0
      %1832 = vmatmul.mubr.bf16.gmra.mrb[0].mxu0 %v1712
      %v1833 = vpop.f32.mrb[0].mxu0
      %v1834 = vadd.f32 0.0, %v1833
      %v1835 = vpop.f32.mrb[0].mxu0
      %v1836 = vpop.f32.mrb[0].mxu0
      %v1837 = vpop.f32.mrb[0].mxu0
      %1838 = vdwg.mxu0
      %v1839 = vadd.f32 %v1671, %v1802
      %v1840 = vadd.f32 %v1672, %v1805
      %v1841 = vadd.f32 %v1673, %v1810
      %v1842 = vadd.f32 %v1674, %v1813
      %v1843 = vadd.f32 %v1675, %v1818
      %v1844 = vadd.f32 %v1676, %v1821
      %v1845 = vadd.f32 %v1677, %v1826
      %v1846 = vadd.f32 %v1678, %v1829
      %v1847 = vadd.f32 %v1679, %v1834
      %s1848 = scalar_lea.vmem %s1, 576
      %v1849 = vld [vmem:[%s1848] sm:$0xf]
      %v1850 = vld [vmem:[%s1848 + $0x4] sm:$0xf]
      %v1851 = vld [vmem:[%s1848 + $0x8] sm:$0xf]
      %v1852 = vld [vmem:[%s1848 + $0xc] sm:$0xf]
      %v1853 = vld [vmem:[%s1848 + $0x10] sm:$0xf]
      %v1854 = vld [vmem:[%s1848 + $0x14] sm:$0xf]
      %v1855 = vld [vmem:[%s1848 + $0x18] sm:$0xf]
      %v1856 = vld [vmem:[%s1848 + $0x1c] sm:$0xf]
      %v1857 = vld [vmem:[%s1848 + $0x20] sm:$0xf]
      %v1858 = vld [vmem:[%s1848 + $0x24] sm:$0xf]
      %v1859 = vld [vmem:[%s1848 + $0x28] sm:$0xf]
      %v1860 = vld [vmem:[%s1848 + $0x2c] sm:$0xf]
      %v1861 = vld [vmem:[%s1848 + $0x30] sm:$0xf]
      %v1862 = vld [vmem:[%s1848 + $0x34] sm:$0xf]
      %v1863 = vld [vmem:[%s1848 + $0x38] sm:$0xf]
      %v1864 = vld [vmem:[%s1848 + $0x3c] sm:$0xf]
      %vm1865 = vsmask.f32 6400
      %v1867 = vshrl.u32 %v1366, 16
      %v1869 = vrot.slane %v1867, 1
      %v1870 = vshll.u32 %v1366, 16
      %v1872 = vrot.slane %v1870, 2
      %v1873 = vor.u32 %v1869, %v1872
      %v1874 = vrot.slane %v805, 1
      %v1875 = vrot.slane %v801, 2
      %v1876 = vor.u32 %v1874, %v1875
      %v1877 = vsel %vm1865, %v1873, %v1876
      %v1878 = vrot.slane %v813, 1
      %v1879 = vrot.slane %v809, 2
      %v1880 = vor.u32 %v1878, %v1879
      %v1881 = vsel %vm1865, %v1876, %v1880
      %v1882 = vrot.slane %v821, 1
      %v1883 = vrot.slane %v817, 2
      %v1884 = vor.u32 %v1882, %v1883
      %v1885 = vsel %vm1865, %v1880, %v1884
      %v1887 = vshrl.u32 %v1367, 16
      %v1889 = vrot.slane %v1887, 1
      %v1890 = vshll.u32 %v1367, 16
      %v1892 = vrot.slane %v1890, 2
      %v1893 = vor.u32 %v1889, %v1892
      %v1894 = vsel %vm1865, %v1884, %v1893
      %v1916 = vunpack.c.l.b16 %v1849
      %v1917 = vunpack.c.l.b16 %v1850
      %v1918 = vunpack.c.l.b16 %v1851
      %v1919 = vunpack.c.l.b16 %v1852
      %v1920 = vunpack.c.l.b16 %v1853
      %v1921 = vunpack.c.l.b16 %v1854
      %v1922 = vunpack.c.l.b16 %v1855
      %v1923 = vunpack.c.l.b16 %v1856
      %v1924 = vunpack.c.l.b16 %v1857
      %v1925 = vunpack.c.l.b16 %v1858
      %v1926 = vunpack.c.l.b16 %v1859
      %v1927 = vunpack.c.l.b16 %v1860
      %v1928 = vunpack.c.l.b16 %v1861
      %v1929 = vunpack.c.l.b16 %v1862
      %v1930 = vunpack.c.l.b16 %v1863
      %v1931 = vunpack.c.l.b16 %v1864
      %v1932 = vpack.c.b16 %v1917, %v1916
      %v1933 = vpack.c.b16 %v1919, %v1918
      %v1934 = vpack.c.b16 %v1921, %v1920
      %v1935 = vpack.c.b16 %v1923, %v1922
      %v1936 = vpack.c.b16 %v1925, %v1924
      %v1937 = vpack.c.b16 %v1927, %v1926
      %v1938 = vpack.c.b16 %v1929, %v1928
      %v1939 = vpack.c.b16 %v1931, %v1930
      %1948 = vmatprep.subr.bf16.mxu0 0
      %1949 = vmatpush1.bf16.msra.mxu0 %v1932
      %1950 = vmatprep.subr.bf16.mxu0 0
      %1951 = vmatpush1.bf16.msra.mxu0 %v1933
      %1952 = vmatprep.subr.bf16.mxu0 0
      %1953 = vmatpush1.bf16.msra.mxu0 %v1934
      %1954 = vmatprep.subr.bf16.mxu0 0
      %1955 = vmatpush1.bf16.msra.mxu0 %v1935
      %1956 = vmatprep.subr.bf16.mxu0 0
      %1957 = vmatpush1.bf16.msra.mxu0 %v1936
      %1958 = vmatprep.subr.bf16.mxu0 0
      %1959 = vmatpush1.bf16.msra.mxu0 %v1937
      %1960 = vmatprep.subr.bf16.mxu0 0
      %1961 = vmatpush1.bf16.msra.mxu0 %v1938
      %1962 = vmatprep.subr.bf16.mxu0 0
      %1963 = vmatpush1.bf16.msra.mxu0 %v1939
      %1964 = vmatprep.subr.bf16.mxu0 0
      %1965 = vmatpush1.bf16.msra.mxu0 0
      %1966 = vmatprep.subr.bf16.mxu0 0
      %1967 = vmatpush1.bf16.msra.mxu0 0
      %1968 = vmatprep.subr.bf16.mxu0 0
      %1969 = vmatpush1.bf16.msra.mxu0 0
      %1970 = vmatprep.subr.bf16.mxu0 0
      %1971 = vmatpush1.bf16.msra.mxu0 0
      %1972 = vmatprep.subr.bf16.mxu0 0
      %1973 = vmatpush1.bf16.msra.mxu0 0
      %1974 = vmatprep.subr.bf16.mxu0 0
      %1975 = vmatpush1.bf16.msra.mxu0 0
      %1976 = vmatprep.subr.bf16.mxu0 0
      %1977 = vmatpush1.bf16.msra.mxu0 0
      %1978 = vmatprep.subr.bf16.mxu0 0
      %1979 = vmatpush1.bf16.msra.mxu0 0
      %1980 = vmatprep.mubr.bf16.mxu0 0
      %1981 = vmatmul.mubr.bf16.gmra.mrb[0].mxu0 %v1877
      %v1982 = vpop.f32.mrb[0].mxu0
      %v1983 = vadd.f32 0.0, %v1982
      %v1984 = vpop.f32.mrb[0].mxu0
      %v1985 = vpop.f32.mrb[0].mxu0
      %v1986 = vadd.f32 0.0, %v1985
      %v1987 = vpop.f32.mrb[0].mxu0
      %1988 = vmatprep.mubr.bf16.mxu0 0
      %1989 = vmatmul.mubr.bf16.gmra.mrb[0].mxu0 %v1881
      %v1990 = vpop.f32.mrb[0].mxu0
      %v1991 = vadd.f32 0.0, %v1990
      %v1992 = vpop.f32.mrb[0].mxu0
      %v1993 = vpop.f32.mrb[0].mxu0
      %v1994 = vadd.f32 0.0, %v1993
      %v1995 = vpop.f32.mrb[0].mxu0
      %1996 = vmatprep.mubr.bf16.mxu0 0
      %1997 = vmatmul.mubr.bf16.gmra.mrb[0].mxu0 %v1885
      %v1998 = vpop.f32.mrb[0].mxu0
      %v1999 = vadd.f32 0.0, %v1998
      %v2000 = vpop.f32.mrb[0].mxu0
      %v2001 = vpop.f32.mrb[0].mxu0
      %v2002 = vadd.f32 0.0, %v2001
      %v2003 = vpop.f32.mrb[0].mxu0
      %2004 = vmatprep.mubr.bf16.mxu0 0
      %2005 = vmatmul.mubr.bf16.gmra.mrb[0].mxu0 %v1894
      %v2006 = vpop.f32.mrb[0].mxu0
      %v2007 = vadd.f32 0.0, %v2006
      %v2008 = vpop.f32.mrb[0].mxu0
      %v2009 = vpop.f32.mrb[0].mxu0
      %v2010 = vadd.f32 0.0, %v2009
      %v2011 = vpop.f32.mrb[0].mxu0
      %2012 = vmatprep.mubr.bf16.mxu0 0
      %2013 = vmatmul.mubr.bf16.gmra.mrb[0].mxu0 %v1889
      %v2014 = vpop.f32.mrb[0].mxu0
      %v2015 = vadd.f32 0.0, %v2014
      %v2016 = vpop.f32.mrb[0].mxu0
      %v2017 = vpop.f32.mrb[0].mxu0
      %v2018 = vpop.f32.mrb[0].mxu0
      %2019 = vdwg.mxu0
      %v2020 = vadd.f32 %v1839, %v1983
      %v2021 = vadd.f32 %v1840, %v1986
      %v2022 = vadd.f32 %v1841, %v1991
      %v2023 = vadd.f32 %v1842, %v1994
      %v2024 = vadd.f32 %v1843, %v1999
      %v2025 = vadd.f32 %v1844, %v2002
      %v2026 = vadd.f32 %v1845, %v2007
      %v2027 = vadd.f32 %v1846, %v2010
      %v2028 = vadd.f32 %v1847, %v2015
      %s2029 = scalar_lea.vmem %s1, 640
      %v2030 = vld [vmem:[%s2029] sm:$0xf]
      %v2031 = vld [vmem:[%s2029 + $0x4] sm:$0xf]
      %v2032 = vld [vmem:[%s2029 + $0x8] sm:$0xf]
      %v2033 = vld [vmem:[%s2029 + $0xc] sm:$0xf]
      %v2034 = vld [vmem:[%s2029 + $0x10] sm:$0xf]
      %v2035 = vld [vmem:[%s2029 + $0x14] sm:$0xf]
      %v2036 = vld [vmem:[%s2029 + $0x18] sm:$0xf]
      %v2037 = vld [vmem:[%s2029 + $0x1c] sm:$0xf]
      %v2038 = vld [vmem:[%s2029 + $0x20] sm:$0xf]
      %v2039 = vld [vmem:[%s2029 + $0x24] sm:$0xf]
      %v2040 = vld [vmem:[%s2029 + $0x28] sm:$0xf]
      %v2041 = vld [vmem:[%s2029 + $0x2c] sm:$0xf]
      %v2042 = vld [vmem:[%s2029 + $0x30] sm:$0xf]
      %v2043 = vld [vmem:[%s2029 + $0x34] sm:$0xf]
      %v2044 = vld [vmem:[%s2029 + $0x38] sm:$0xf]
      %v2045 = vld [vmem:[%s2029 + $0x3c] sm:$0xf]
      %v2047 = vshrl.u32 %v1535, 16
      %v2049 = vrot.slane %v2047, 1
      %v2050 = vshll.u32 %v1535, 16
      %v2052 = vrot.slane %v2050, 2
      %v2053 = vor.u32 %v2049, %v2052
      %v2054 = vrot.slane %v994, 1
      %v2055 = vrot.slane %v990, 2
      %v2056 = vor.u32 %v2054, %v2055
      %v2057 = vsel %vm1865, %v2053, %v2056
      %v2058 = vrot.slane %v1002, 1
      %v2059 = vrot.slane %v998, 2
      %v2060 = vor.u32 %v2058, %v2059
      %v2061 = vsel %vm1865, %v2056, %v2060
      %v2062 = vrot.slane %v1010, 1
      %v2063 = vrot.slane %v1006, 2
      %v2064 = vor.u32 %v2062, %v2063
      %v2065 = vsel %vm1865, %v2060, %v2064
      %v2067 = vshrl.u32 %v1536, 16
      %v2069 = vrot.slane %v2067, 1
      %v2070 = vshll.u32 %v1536, 16
      %v2072 = vrot.slane %v2070, 2
      %v2073 = vor.u32 %v2069, %v2072
      %v2074 = vsel %vm1865, %v2064, %v2073
      %v2096 = vunpack.c.l.b16 %v2030
      %v2097 = vunpack.c.l.b16 %v2031
      %v2098 = vunpack.c.l.b16 %v2032
      %v2099 = vunpack.c.l.b16 %v2033
      %v2100 = vunpack.c.l.b16 %v2034
      %v2101 = vunpack.c.l.b16 %v2035
      %v2102 = vunpack.c.l.b16 %v2036
      %v2103 = vunpack.c.l.b16 %v2037
      %v2104 = vunpack.c.l.b16 %v2038
      %v2105 = vunpack.c.l.b16 %v2039
      %v2106 = vunpack.c.l.b16 %v2040
      %v2107 = vunpack.c.l.b16 %v2041
      %v2108 = vunpack.c.l.b16 %v2042
      %v2109 = vunpack.c.l.b16 %v2043
      %v2110 = vunpack.c.l.b16 %v2044
      %v2111 = vunpack.c.l.b16 %v2045
      %v2112 = vpack.c.b16 %v2097, %v2096
      %v2113 = vpack.c.b16 %v2099, %v2098
      %v2114 = vpack.c.b16 %v2101, %v2100
      %v2115 = vpack.c.b16 %v2103, %v2102
      %v2116 = vpack.c.b16 %v2105, %v2104
      %v2117 = vpack.c.b16 %v2107, %v2106
      %v2118 = vpack.c.b16 %v2109, %v2108
      %v2119 = vpack.c.b16 %v2111, %v2110
      %2128 = vmatprep.subr.bf16.mxu0 0
      %2129 = vmatpush1.bf16.msra.mxu0 %v2112
      %2130 = vmatprep.subr.bf16.mxu0 0
      %2131 = vmatpush1.bf16.msra.mxu0 %v2113
      %2132 = vmatprep.subr.bf16.mxu0 0
      %2133 = vmatpush1.bf16.msra.mxu0 %v2114
      %2134 = vmatprep.subr.bf16.mxu0 0
      %2135 = vmatpush1.bf16.msra.mxu0 %v2115
      %2136 = vmatprep.subr.bf16.mxu0 0
      %2137 = vmatpush1.bf16.msra.mxu0 %v2116
      %2138 = vmatprep.subr.bf16.mxu0 0
      %2139 = vmatpush1.bf16.msra.mxu0 %v2117
      %2140 = vmatprep.subr.bf16.mxu0 0
      %2141 = vmatpush1.bf16.msra.mxu0 %v2118
      %2142 = vmatprep.subr.bf16.mxu0 0
      %2143 = vmatpush1.bf16.msra.mxu0 %v2119
      %2144 = vmatprep.subr.bf16.mxu0 0
      %2145 = vmatpush1.bf16.msra.mxu0 0
      %2146 = vmatprep.subr.bf16.mxu0 0
      %2147 = vmatpush1.bf16.msra.mxu0 0
      %2148 = vmatprep.subr.bf16.mxu0 0
      %2149 = vmatpush1.bf16.msra.mxu0 0
      %2150 = vmatprep.subr.bf16.mxu0 0
      %2151 = vmatpush1.bf16.msra.mxu0 0
      %2152 = vmatprep.subr.bf16.mxu0 0
      %2153 = vmatpush1.bf16.msra.mxu0 0
      %2154 = vmatprep.subr.bf16.mxu0 0
      %2155 = vmatpush1.bf16.msra.mxu0 0
      %2156 = vmatprep.subr.bf16.mxu0 0
      %2157 = vmatpush1.bf16.msra.mxu0 0
      %2158 = vmatprep.subr.bf16.mxu0 0
      %2159 = vmatpush1.bf16.msra.mxu0 0
      %2160 = vmatprep.mubr.bf16.mxu0 0
      %2161 = vmatmul.mubr.bf16.gmra.mrb[0].mxu0 %v2057
      %v2162 = vpop.f32.mrb[0].mxu0
      %v2163 = vadd.f32 0.0, %v2162
      %v2164 = vpop.f32.mrb[0].mxu0
      %v2165 = vpop.f32.mrb[0].mxu0
      %v2166 = vadd.f32 0.0, %v2165
      %v2167 = vpop.f32.mrb[0].mxu0
      %2168 = vmatprep.mubr.bf16.mxu0 0
      %2169 = vmatmul.mubr.bf16.gmra.mrb[0].mxu0 %v2061
      %v2170 = vpop.f32.mrb[0].mxu0
      %v2171 = vadd.f32 0.0, %v2170
      %v2172 = vpop.f32.mrb[0].mxu0
      %v2173 = vpop.f32.mrb[0].mxu0
      %v2174 = vadd.f32 0.0, %v2173
      %v2175 = vpop.f32.mrb[0].mxu0
      %2176 = vmatprep.mubr.bf16.mxu0 0
      %2177 = vmatmul.mubr.bf16.gmra.mrb[0].mxu0 %v2065
      %v2178 = vpop.f32.mrb[0].mxu0
      %v2179 = vadd.f32 0.0, %v2178
      %v2180 = vpop.f32.mrb[0].mxu0
      %v2181 = vpop.f32.mrb[0].mxu0
      %v2182 = vadd.f32 0.0, %v2181
      %v2183 = vpop.f32.mrb[0].mxu0
      %2184 = vmatprep.mubr.bf16.mxu0 0
      %2185 = vmatmul.mubr.bf16.gmra.mrb[0].mxu0 %v2074
      %v2186 = vpop.f32.mrb[0].mxu0
      %v2187 = vadd.f32 0.0, %v2186
      %v2188 = vpop.f32.mrb[0].mxu0
      %v2189 = vpop.f32.mrb[0].mxu0
      %v2190 = vadd.f32 0.0, %v2189
      %v2191 = vpop.f32.mrb[0].mxu0
      %2192 = vmatprep.mubr.bf16.mxu0 0
      %2193 = vmatmul.mubr.bf16.gmra.mrb[0].mxu0 %v2069
      %v2194 = vpop.f32.mrb[0].mxu0
      %v2195 = vadd.f32 0.0, %v2194
      %v2196 = vpop.f32.mrb[0].mxu0
      %v2197 = vpop.f32.mrb[0].mxu0
      %v2198 = vpop.f32.mrb[0].mxu0
      %2199 = vdwg.mxu0
      %v2200 = vadd.f32 %v2020, %v2163
      %v2201 = vadd.f32 %v2021, %v2166
      %v2202 = vadd.f32 %v2022, %v2171
      %v2203 = vadd.f32 %v2023, %v2174
      %v2204 = vadd.f32 %v2024, %v2179
      %v2205 = vadd.f32 %v2025, %v2182
      %v2206 = vadd.f32 %v2026, %v2187
      %v2207 = vadd.f32 %v2027, %v2190
      %v2208 = vadd.f32 %v2028, %v2195
      %s2209 = scalar_lea.vmem %s1, 704
      %v2210 = vld [vmem:[%s2209] sm:$0xf]
      %v2211 = vld [vmem:[%s2209 + $0x4] sm:$0xf]
      %v2212 = vld [vmem:[%s2209 + $0x8] sm:$0xf]
      %v2213 = vld [vmem:[%s2209 + $0xc] sm:$0xf]
      %v2214 = vld [vmem:[%s2209 + $0x10] sm:$0xf]
      %v2215 = vld [vmem:[%s2209 + $0x14] sm:$0xf]
      %v2216 = vld [vmem:[%s2209 + $0x18] sm:$0xf]
      %v2217 = vld [vmem:[%s2209 + $0x1c] sm:$0xf]
      %v2218 = vld [vmem:[%s2209 + $0x20] sm:$0xf]
      %v2219 = vld [vmem:[%s2209 + $0x24] sm:$0xf]
      %v2220 = vld [vmem:[%s2209 + $0x28] sm:$0xf]
      %v2221 = vld [vmem:[%s2209 + $0x2c] sm:$0xf]
      %v2222 = vld [vmem:[%s2209 + $0x30] sm:$0xf]
      %v2223 = vld [vmem:[%s2209 + $0x34] sm:$0xf]
      %v2224 = vld [vmem:[%s2209 + $0x38] sm:$0xf]
      %v2225 = vld [vmem:[%s2209 + $0x3c] sm:$0xf]
      %v2227 = vshrl.u32 %v1703, 16
      %v2229 = vrot.slane %v2227, 1
      %v2230 = vshll.u32 %v1703, 16
      %v2232 = vrot.slane %v2230, 2
      %v2233 = vor.u32 %v2229, %v2232
      %v2234 = vrot.slane %v1183, 1
      %v2235 = vrot.slane %v1179, 2
      %v2236 = vor.u32 %v2234, %v2235
      %v2237 = vsel %vm1865, %v2233, %v2236
      %v2238 = vrot.slane %v1191, 1
      %v2239 = vrot.slane %v1187, 2
      %v2240 = vor.u32 %v2238, %v2239
      %v2241 = vsel %vm1865, %v2236, %v2240
      %v2242 = vrot.slane %v1199, 1
      %v2243 = vrot.slane %v1195, 2
      %v2244 = vor.u32 %v2242, %v2243
      %v2245 = vsel %vm1865, %v2240, %v2244
      %v2247 = vshrl.u32 %v1704, 16
      %v2249 = vrot.slane %v2247, 1
      %v2250 = vshll.u32 %v1704, 16
      %v2252 = vrot.slane %v2250, 2
      %v2253 = vor.u32 %v2249, %v2252
      %v2254 = vsel %vm1865, %v2244, %v2253
      %v2276 = vunpack.c.l.b16 %v2210
      %v2277 = vunpack.c.l.b16 %v2211
      %v2278 = vunpack.c.l.b16 %v2212
      %v2279 = vunpack.c.l.b16 %v2213
      %v2280 = vunpack.c.l.b16 %v2214
      %v2281 = vunpack.c.l.b16 %v2215
      %v2282 = vunpack.c.l.b16 %v2216
      %v2283 = vunpack.c.l.b16 %v2217
      %v2284 = vunpack.c.l.b16 %v2218
      %v2285 = vunpack.c.l.b16 %v2219
      %v2286 = vunpack.c.l.b16 %v2220
      %v2287 = vunpack.c.l.b16 %v2221
      %v2288 = vunpack.c.l.b16 %v2222
      %v2289 = vunpack.c.l.b16 %v2223
      %v2290 = vunpack.c.l.b16 %v2224
      %v2291 = vunpack.c.l.b16 %v2225
      %v2292 = vpack.c.b16 %v2277, %v2276
      %v2293 = vpack.c.b16 %v2279, %v2278
      %v2294 = vpack.c.b16 %v2281, %v2280
      %v2295 = vpack.c.b16 %v2283, %v2282
      %v2296 = vpack.c.b16 %v2285, %v2284
      %v2297 = vpack.c.b16 %v2287, %v2286
      %v2298 = vpack.c.b16 %v2289, %v2288
      %v2299 = vpack.c.b16 %v2291, %v2290
      %2308 = vmatprep.subr.bf16.mxu0 0
      %2309 = vmatpush1.bf16.msra.mxu0 %v2292
      %2310 = vmatprep.subr.bf16.mxu0 0
      %2311 = vmatpush1.bf16.msra.mxu0 %v2293
      %2312 = vmatprep.subr.bf16.mxu0 0
      %2313 = vmatpush1.bf16.msra.mxu0 %v2294
      %2314 = vmatprep.subr.bf16.mxu0 0
      %2315 = vmatpush1.bf16.msra.mxu0 %v2295
      %2316 = vmatprep.subr.bf16.mxu0 0
      %2317 = vmatpush1.bf16.msra.mxu0 %v2296
      %2318 = vmatprep.subr.bf16.mxu0 0
      %2319 = vmatpush1.bf16.msra.mxu0 %v2297
      %2320 = vmatprep.subr.bf16.mxu0 0
      %2321 = vmatpush1.bf16.msra.mxu0 %v2298
      %2322 = vmatprep.subr.bf16.mxu0 0
      %2323 = vmatpush1.bf16.msra.mxu0 %v2299
      %2324 = vmatprep.subr.bf16.mxu0 0
      %2325 = vmatpush1.bf16.msra.mxu0 0
      %2326 = vmatprep.subr.bf16.mxu0 0
      %2327 = vmatpush1.bf16.msra.mxu0 0
      %2328 = vmatprep.subr.bf16.mxu0 0
      %2329 = vmatpush1.bf16.msra.mxu0 0
      %2330 = vmatprep.subr.bf16.mxu0 0
      %2331 = vmatpush1.bf16.msra.mxu0 0
      %2332 = vmatprep.subr.bf16.mxu0 0
      %2333 = vmatpush1.bf16.msra.mxu0 0
      %2334 = vmatprep.subr.bf16.mxu0 0
      %2335 = vmatpush1.bf16.msra.mxu0 0
      %2336 = vmatprep.subr.bf16.mxu0 0
      %2337 = vmatpush1.bf16.msra.mxu0 0
      %2338 = vmatprep.subr.bf16.mxu0 0
      %2339 = vmatpush1.bf16.msra.mxu0 0
      %2340 = vmatprep.mubr.bf16.mxu0 0
      %2341 = vmatmul.mubr.bf16.gmra.mrb[0].mxu0 %v2237
      %v2342 = vpop.f32.mrb[0].mxu0
      %v2343 = vadd.f32 0.0, %v2342
      %v2344 = vpop.f32.mrb[0].mxu0
      %v2345 = vpop.f32.mrb[0].mxu0
      %v2346 = vadd.f32 0.0, %v2345
      %v2347 = vpop.f32.mrb[0].mxu0
      %2348 = vmatprep.mubr.bf16.mxu0 0
      %2349 = vmatmul.mubr.bf16.gmra.mrb[0].mxu0 %v2241
      %v2350 = vpop.f32.mrb[0].mxu0
      %v2351 = vadd.f32 0.0, %v2350
      %v2352 = vpop.f32.mrb[0].mxu0
      %v2353 = vpop.f32.mrb[0].mxu0
      %v2354 = vadd.f32 0.0, %v2353
      %v2355 = vpop.f32.mrb[0].mxu0
      %2356 = vmatprep.mubr.bf16.mxu0 0
      %2357 = vmatmul.mubr.bf16.gmra.mrb[0].mxu0 %v2245
      %v2358 = vpop.f32.mrb[0].mxu0
      %v2359 = vadd.f32 0.0, %v2358
      %v2360 = vpop.f32.mrb[0].mxu0
      %v2361 = vpop.f32.mrb[0].mxu0
      %v2362 = vadd.f32 0.0, %v2361
      %v2363 = vpop.f32.mrb[0].mxu0
      %2364 = vmatprep.mubr.bf16.mxu0 0
      %2365 = vmatmul.mubr.bf16.gmra.mrb[0].mxu0 %v2254
      %v2366 = vpop.f32.mrb[0].mxu0
      %v2367 = vadd.f32 0.0, %v2366
      %v2368 = vpop.f32.mrb[0].mxu0
      %v2369 = vpop.f32.mrb[0].mxu0
      %v2370 = vadd.f32 0.0, %v2369
      %v2371 = vpop.f32.mrb[0].mxu0
      %2372 = vmatprep.mubr.bf16.mxu0 0
      %2373 = vmatmul.mubr.bf16.gmra.mrb[0].mxu0 %v2249
      %v2374 = vpop.f32.mrb[0].mxu0
      %v2375 = vadd.f32 0.0, %v2374
      %v2376 = vpop.f32.mrb[0].mxu0
      %v2377 = vpop.f32.mrb[0].mxu0
      %v2378 = vpop.f32.mrb[0].mxu0
      %2379 = vdwg.mxu0
      %v2380 = vadd.f32 %v2200, %v2343
      %v2381 = vadd.f32 %v2201, %v2346
      %v2382 = vadd.f32 %v2202, %v2351
      %v2383 = vadd.f32 %v2203, %v2354
      %v2384 = vadd.f32 %v2204, %v2359
      %v2385 = vadd.f32 %v2205, %v2362
      %v2386 = vadd.f32 %v2206, %v2367
      %v2387 = vadd.f32 %v2207, %v2370
      %v2388 = vadd.f32 %v2208, %v2375
      %v2389 = vld [vmem:[%s230] sm:$0xc]
      %v2390 = vld [vmem:[%s230 + $0x20] sm:$0x7]
      %s2391 = scalar_lea.vmem %s1, 768
      %v2392 = vld [vmem:[%s2391] sm:$0xf]
      %v2393 = vld [vmem:[%s2391 + $0x4] sm:$0xf]
      %v2394 = vld [vmem:[%s2391 + $0x8] sm:$0xf]
      %v2395 = vld [vmem:[%s2391 + $0xc] sm:$0xf]
      %v2396 = vld [vmem:[%s2391 + $0x10] sm:$0xf]
      %v2397 = vld [vmem:[%s2391 + $0x14] sm:$0xf]
      %v2398 = vld [vmem:[%s2391 + $0x18] sm:$0xf]
      %v2399 = vld [vmem:[%s2391 + $0x1c] sm:$0xf]
      %v2400 = vld [vmem:[%s2391 + $0x20] sm:$0xf]
      %v2401 = vld [vmem:[%s2391 + $0x24] sm:$0xf]
      %v2402 = vld [vmem:[%s2391 + $0x28] sm:$0xf]
      %v2403 = vld [vmem:[%s2391 + $0x2c] sm:$0xf]
      %v2404 = vld [vmem:[%s2391 + $0x30] sm:$0xf]
      %v2405 = vld [vmem:[%s2391 + $0x34] sm:$0xf]
      %v2406 = vld [vmem:[%s2391 + $0x38] sm:$0xf]
      %v2407 = vld [vmem:[%s2391 + $0x3c] sm:$0xf]
      %v2410 = vunpack.c.l.b16 %v2389
      %v2411 = vunpack.c.l.b16 %v2390
      %v2412 = vpack.c.b16 %v453, %v2410
      %v2413 = vpack.c.b16 %v2411, %v2411
      %vm2414 = vcmask 1045504
      %v2415 = vrot.slane %v2412, 2
      %v2416 = vrot.slane %v462, 2
      %v2417 = vsel %vm2414, %v2415, %v2416
      %v2418 = vrot.slane %v463, 2
      %v2419 = vsel %vm2414, %v2416, %v2418
      %v2420 = vrot.slane %v464, 2
      %v2421 = vsel %vm2414, %v2418, %v2420
      %v2422 = vrot.slane %v2413, 2
      %v2423 = vsel %vm2414, %v2420, %v2422
      %v2445 = vunpack.c.l.b16 %v2392
      %v2446 = vunpack.c.l.b16 %v2393
      %v2447 = vunpack.c.l.b16 %v2394
      %v2448 = vunpack.c.l.b16 %v2395
      %v2449 = vunpack.c.l.b16 %v2396
      %v2450 = vunpack.c.l.b16 %v2397
      %v2451 = vunpack.c.l.b16 %v2398
      %v2452 = vunpack.c.l.b16 %v2399
      %v2453 = vunpack.c.l.b16 %v2400
      %v2454 = vunpack.c.l.b16 %v2401
      %v2455 = vunpack.c.l.b16 %v2402
      %v2456 = vunpack.c.l.b16 %v2403
      %v2457 = vunpack.c.l.b16 %v2404
      %v2458 = vunpack.c.l.b16 %v2405
      %v2459 = vunpack.c.l.b16 %v2406
      %v2460 = vunpack.c.l.b16 %v2407
      %v2461 = vpack.c.b16 %v2446, %v2445
      %v2462 = vpack.c.b16 %v2448, %v2447
      %v2463 = vpack.c.b16 %v2450, %v2449
      %v2464 = vpack.c.b16 %v2452, %v2451
      %v2465 = vpack.c.b16 %v2454, %v2453
      %v2466 = vpack.c.b16 %v2456, %v2455
      %v2467 = vpack.c.b16 %v2458, %v2457
      %v2468 = vpack.c.b16 %v2460, %v2459
      %2477 = vmatprep.subr.bf16.mxu0 0
      %2478 = vmatpush1.bf16.msra.mxu0 %v2461
      %2479 = vmatprep.subr.bf16.mxu0 0
      %2480 = vmatpush1.bf16.msra.mxu0 %v2462
      %2481 = vmatprep.subr.bf16.mxu0 0
      %2482 = vmatpush1.bf16.msra.mxu0 %v2463
      %2483 = vmatprep.subr.bf16.mxu0 0
      %2484 = vmatpush1.bf16.msra.mxu0 %v2464
      %2485 = vmatprep.subr.bf16.mxu0 0
      %2486 = vmatpush1.bf16.msra.mxu0 %v2465
      %2487 = vmatprep.subr.bf16.mxu0 0
      %2488 = vmatpush1.bf16.msra.mxu0 %v2466
      %2489 = vmatprep.subr.bf16.mxu0 0
      %2490 = vmatpush1.bf16.msra.mxu0 %v2467
      %2491 = vmatprep.subr.bf16.mxu0 0
      %2492 = vmatpush1.bf16.msra.mxu0 %v2468
      %2493 = vmatprep.subr.bf16.mxu0 0
      %2494 = vmatpush1.bf16.msra.mxu0 0
      %2495 = vmatprep.subr.bf16.mxu0 0
      %2496 = vmatpush1.bf16.msra.mxu0 0
      %2497 = vmatprep.subr.bf16.mxu0 0
      %2498 = vmatpush1.bf16.msra.mxu0 0
      %2499 = vmatprep.subr.bf16.mxu0 0
      %2500 = vmatpush1.bf16.msra.mxu0 0
      %2501 = vmatprep.subr.bf16.mxu0 0
      %2502 = vmatpush1.bf16.msra.mxu0 0
      %2503 = vmatprep.subr.bf16.mxu0 0
      %2504 = vmatpush1.bf16.msra.mxu0 0
      %2505 = vmatprep.subr.bf16.mxu0 0
      %2506 = vmatpush1.bf16.msra.mxu0 0
      %2507 = vmatprep.subr.bf16.mxu0 0
      %2508 = vmatpush1.bf16.msra.mxu0 0
      %2509 = vmatprep.mubr.bf16.mxu0 0
      %2510 = vmatmul.mubr.bf16.gmra.mrb[0].mxu0 %v2417
      %v2511 = vpop.f32.mrb[0].mxu0
      %v2512 = vadd.f32 0.0, %v2511
      %v2513 = vpop.f32.mrb[0].mxu0
      %v2514 = vpop.f32.mrb[0].mxu0
      %v2515 = vadd.f32 0.0, %v2514
      %v2516 = vpop.f32.mrb[0].mxu0
      %2517 = vmatprep.mubr.bf16.mxu0 0
      %2518 = vmatmul.mubr.bf16.gmra.mrb[0].mxu0 %v2419
      %v2519 = vpop.f32.mrb[0].mxu0
      %v2520 = vadd.f32 0.0, %v2519
      %v2521 = vpop.f32.mrb[0].mxu0
      %v2522 = vpop.f32.mrb[0].mxu0
      %v2523 = vadd.f32 0.0, %v2522
      %v2524 = vpop.f32.mrb[0].mxu0
      %2525 = vmatprep.mubr.bf16.mxu0 0
      %2526 = vmatmul.mubr.bf16.gmra.mrb[0].mxu0 %v2421
      %v2527 = vpop.f32.mrb[0].mxu0
      %v2528 = vadd.f32 0.0, %v2527
      %v2529 = vpop.f32.mrb[0].mxu0
      %v2530 = vpop.f32.mrb[0].mxu0
      %v2531 = vadd.f32 0.0, %v2530
      %v2532 = vpop.f32.mrb[0].mxu0
      %2533 = vmatprep.mubr.bf16.mxu0 0
      %2534 = vmatmul.mubr.bf16.gmra.mrb[0].mxu0 %v2423
      %v2535 = vpop.f32.mrb[0].mxu0
      %v2536 = vadd.f32 0.0, %v2535
      %v2537 = vpop.f32.mrb[0].mxu0
      %v2538 = vpop.f32.mrb[0].mxu0
      %v2539 = vadd.f32 0.0, %v2538
      %v2540 = vpop.f32.mrb[0].mxu0
      %2541 = vmatprep.mubr.bf16.mxu0 0
      %2542 = vmatmul.mubr.bf16.gmra.mrb[0].mxu0 %v2422
      %v2543 = vpop.f32.mrb[0].mxu0
      %v2544 = vadd.f32 0.0, %v2543
      %v2545 = vpop.f32.mrb[0].mxu0
      %v2546 = vpop.f32.mrb[0].mxu0
      %v2547 = vpop.f32.mrb[0].mxu0
      %2548 = vdwg.mxu0
      %v2549 = vadd.f32 %v2380, %v2512
      %v2550 = vadd.f32 %v2381, %v2515
      %v2551 = vadd.f32 %v2382, %v2520
      %v2552 = vadd.f32 %v2383, %v2523
      %v2553 = vadd.f32 %v2384, %v2528
      %v2554 = vadd.f32 %v2385, %v2531
      %v2555 = vadd.f32 %v2386, %v2536
      %v2556 = vadd.f32 %v2387, %v2539
      %v2557 = vadd.f32 %v2388, %v2544
      %v2558 = vld [vmem:[%s268] sm:$0xc]
      %v2559 = vld [vmem:[%s268 + $0x20] sm:$0x7]
      %s2560 = scalar_lea.vmem %s1, 832
      %v2561 = vld [vmem:[%s2560] sm:$0xf]
      %v2562 = vld [vmem:[%s2560 + $0x4] sm:$0xf]
      %v2563 = vld [vmem:[%s2560 + $0x8] sm:$0xf]
      %v2564 = vld [vmem:[%s2560 + $0xc] sm:$0xf]
      %v2565 = vld [vmem:[%s2560 + $0x10] sm:$0xf]
      %v2566 = vld [vmem:[%s2560 + $0x14] sm:$0xf]
      %v2567 = vld [vmem:[%s2560 + $0x18] sm:$0xf]
      %v2568 = vld [vmem:[%s2560 + $0x1c] sm:$0xf]
      %v2569 = vld [vmem:[%s2560 + $0x20] sm:$0xf]
      %v2570 = vld [vmem:[%s2560 + $0x24] sm:$0xf]
      %v2571 = vld [vmem:[%s2560 + $0x28] sm:$0xf]
      %v2572 = vld [vmem:[%s2560 + $0x2c] sm:$0xf]
      %v2573 = vld [vmem:[%s2560 + $0x30] sm:$0xf]
      %v2574 = vld [vmem:[%s2560 + $0x34] sm:$0xf]
      %v2575 = vld [vmem:[%s2560 + $0x38] sm:$0xf]
      %v2576 = vld [vmem:[%s2560 + $0x3c] sm:$0xf]
      %v2579 = vunpack.c.l.b16 %v2558
      %v2580 = vunpack.c.l.b16 %v2559
      %v2581 = vpack.c.b16 %v305, %v2579
      %v2582 = vpack.c.b16 %v2580, %v2580
      %v2583 = vrot.slane %v2581, 2
      %v2584 = vrot.slane %v314, 2
      %v2585 = vsel %vm2414, %v2583, %v2584
      %v2586 = vrot.slane %v315, 2
      %v2587 = vsel %vm2414, %v2584, %v2586
      %v2588 = vrot.slane %v316, 2
      %v2589 = vsel %vm2414, %v2586, %v2588
      %v2590 = vrot.slane %v2582, 2
      %v2591 = vsel %vm2414, %v2588, %v2590
      %v2613 = vunpack.c.l.b16 %v2561
      %v2614 = vunpack.c.l.b16 %v2562
      %v2615 = vunpack.c.l.b16 %v2563
      %v2616 = vunpack.c.l.b16 %v2564
      %v2617 = vunpack.c.l.b16 %v2565
      %v2618 = vunpack.c.l.b16 %v2566
      %v2619 = vunpack.c.l.b16 %v2567
      %v2620 = vunpack.c.l.b16 %v2568
      %v2621 = vunpack.c.l.b16 %v2569
      %v2622 = vunpack.c.l.b16 %v2570
      %v2623 = vunpack.c.l.b16 %v2571
      %v2624 = vunpack.c.l.b16 %v2572
      %v2625 = vunpack.c.l.b16 %v2573
      %v2626 = vunpack.c.l.b16 %v2574
      %v2627 = vunpack.c.l.b16 %v2575
      %v2628 = vunpack.c.l.b16 %v2576
      %v2629 = vpack.c.b16 %v2614, %v2613
      %v2630 = vpack.c.b16 %v2616, %v2615
      %v2631 = vpack.c.b16 %v2618, %v2617
      %v2632 = vpack.c.b16 %v2620, %v2619
      %v2633 = vpack.c.b16 %v2622, %v2621
      %v2634 = vpack.c.b16 %v2624, %v2623
      %v2635 = vpack.c.b16 %v2626, %v2625
      %v2636 = vpack.c.b16 %v2628, %v2627
      %2645 = vmatprep.subr.bf16.mxu0 0
      %2646 = vmatpush1.bf16.msra.mxu0 %v2629
      %2647 = vmatprep.subr.bf16.mxu0 0
      %2648 = vmatpush1.bf16.msra.mxu0 %v2630
      %2649 = vmatprep.subr.bf16.mxu0 0
      %2650 = vmatpush1.bf16.msra.mxu0 %v2631
      %2651 = vmatprep.subr.bf16.mxu0 0
      %2652 = vmatpush1.bf16.msra.mxu0 %v2632
      %2653 = vmatprep.subr.bf16.mxu0 0
      %2654 = vmatpush1.bf16.msra.mxu0 %v2633
      %2655 = vmatprep.subr.bf16.mxu0 0
      %2656 = vmatpush1.bf16.msra.mxu0 %v2634
      %2657 = vmatprep.subr.bf16.mxu0 0
      %2658 = vmatpush1.bf16.msra.mxu0 %v2635
      %2659 = vmatprep.subr.bf16.mxu0 0
      %2660 = vmatpush1.bf16.msra.mxu0 %v2636
      %2661 = vmatprep.subr.bf16.mxu0 0
      %2662 = vmatpush1.bf16.msra.mxu0 0
      %2663 = vmatprep.subr.bf16.mxu0 0
      %2664 = vmatpush1.bf16.msra.mxu0 0
      %2665 = vmatprep.subr.bf16.mxu0 0
      %2666 = vmatpush1.bf16.msra.mxu0 0
      %2667 = vmatprep.subr.bf16.mxu0 0
      %2668 = vmatpush1.bf16.msra.mxu0 0
      %2669 = vmatprep.subr.bf16.mxu0 0
      %2670 = vmatpush1.bf16.msra.mxu0 0
      %2671 = vmatprep.subr.bf16.mxu0 0
      %2672 = vmatpush1.bf16.msra.mxu0 0
      %2673 = vmatprep.subr.bf16.mxu0 0
      %2674 = vmatpush1.bf16.msra.mxu0 0
      %2675 = vmatprep.subr.bf16.mxu0 0
      %2676 = vmatpush1.bf16.msra.mxu0 0
      %2677 = vmatprep.mubr.bf16.mxu0 0
      %2678 = vmatmul.mubr.bf16.gmra.mrb[0].mxu0 %v2585
      %v2679 = vpop.f32.mrb[0].mxu0
      %v2680 = vadd.f32 0.0, %v2679
      %v2681 = vpop.f32.mrb[0].mxu0
      %v2682 = vpop.f32.mrb[0].mxu0
      %v2683 = vadd.f32 0.0, %v2682
      %v2684 = vpop.f32.mrb[0].mxu0
      %2685 = vmatprep.mubr.bf16.mxu0 0
      %2686 = vmatmul.mubr.bf16.gmra.mrb[0].mxu0 %v2587
      %v2687 = vpop.f32.mrb[0].mxu0
      %v2688 = vadd.f32 0.0, %v2687
      %v2689 = vpop.f32.mrb[0].mxu0
      %v2690 = vpop.f32.mrb[0].mxu0
      %v2691 = vadd.f32 0.0, %v2690
      %v2692 = vpop.f32.mrb[0].mxu0
      %2693 = vmatprep.mubr.bf16.mxu0 0
      %2694 = vmatmul.mubr.bf16.gmra.mrb[0].mxu0 %v2589
      %v2695 = vpop.f32.mrb[0].mxu0
      %v2696 = vadd.f32 0.0, %v2695
      %v2697 = vpop.f32.mrb[0].mxu0
      %v2698 = vpop.f32.mrb[0].mxu0
      %v2699 = vadd.f32 0.0, %v2698
      %v2700 = vpop.f32.mrb[0].mxu0
      %2701 = vmatprep.mubr.bf16.mxu0 0
      %2702 = vmatmul.mubr.bf16.gmra.mrb[0].mxu0 %v2591
      %v2703 = vpop.f32.mrb[0].mxu0
      %v2704 = vadd.f32 0.0, %v2703
      %v2705 = vpop.f32.mrb[0].mxu0
      %v2706 = vpop.f32.mrb[0].mxu0
      %v2707 = vadd.f32 0.0, %v2706
      %v2708 = vpop.f32.mrb[0].mxu0
      %2709 = vmatprep.mubr.bf16.mxu0 0
      %2710 = vmatmul.mubr.bf16.gmra.mrb[0].mxu0 %v2590
      %v2711 = vpop.f32.mrb[0].mxu0
      %v2712 = vadd.f32 0.0, %v2711
      %v2713 = vpop.f32.mrb[0].mxu0
      %v2714 = vpop.f32.mrb[0].mxu0
      %v2715 = vpop.f32.mrb[0].mxu0
      %2716 = vdwg.mxu0
      %v2717 = vadd.f32 %v2549, %v2680
      %v2718 = vadd.f32 %v2550, %v2683
      %v2719 = vadd.f32 %v2551, %v2688
      %v2720 = vadd.f32 %v2552, %v2691
      %v2721 = vadd.f32 %v2553, %v2696
      %v2722 = vadd.f32 %v2554, %v2699
      %v2723 = vadd.f32 %v2555, %v2704
      %v2724 = vadd.f32 %v2556, %v2707
      %v2725 = vadd.f32 %v2557, %v2712
      %v2726 = vld [vmem:[%s591] sm:$0xc]
      %v2727 = vld [vmem:[%s591 + $0x20] sm:$0x7]
      %s2728 = scalar_lea.vmem %s1, 896
      %v2729 = vld [vmem:[%s2728] sm:$0xf]
      %v2730 = vld [vmem:[%s2728 + $0x4] sm:$0xf]
      %v2731 = vld [vmem:[%s2728 + $0x8] sm:$0xf]
      %v2732 = vld [vmem:[%s2728 + $0xc] sm:$0xf]
      %v2733 = vld [vmem:[%s2728 + $0x10] sm:$0xf]
      %v2734 = vld [vmem:[%s2728 + $0x14] sm:$0xf]
      %v2735 = vld [vmem:[%s2728 + $0x18] sm:$0xf]
      %v2736 = vld [vmem:[%s2728 + $0x1c] sm:$0xf]
      %v2737 = vld [vmem:[%s2728 + $0x20] sm:$0xf]
      %v2738 = vld [vmem:[%s2728 + $0x24] sm:$0xf]
      %v2739 = vld [vmem:[%s2728 + $0x28] sm:$0xf]
      %v2740 = vld [vmem:[%s2728 + $0x2c] sm:$0xf]
      %v2741 = vld [vmem:[%s2728 + $0x30] sm:$0xf]
      %v2742 = vld [vmem:[%s2728 + $0x34] sm:$0xf]
      %v2743 = vld [vmem:[%s2728 + $0x38] sm:$0xf]
      %v2744 = vld [vmem:[%s2728 + $0x3c] sm:$0xf]
      %v2747 = vunpack.c.l.b16 %v2726
      %v2748 = vunpack.c.l.b16 %v2727
      %v2749 = vpack.c.b16 %v628, %v2747
      %v2750 = vpack.c.b16 %v2748, %v2748
      %v2751 = vrot.slane %v2749, 2
      %v2752 = vrot.slane %v637, 2
      %v2753 = vsel %vm2414, %v2751, %v2752
      %v2754 = vrot.slane %v638, 2
      %v2755 = vsel %vm2414, %v2752, %v2754
      %v2756 = vrot.slane %v639, 2
      %v2757 = vsel %vm2414, %v2754, %v2756
      %v2758 = vrot.slane %v2750, 2
      %v2759 = vsel %vm2414, %v2756, %v2758
      %v2781 = vunpack.c.l.b16 %v2729
      %v2782 = vunpack.c.l.b16 %v2730
      %v2783 = vunpack.c.l.b16 %v2731
      %v2784 = vunpack.c.l.b16 %v2732
      %v2785 = vunpack.c.l.b16 %v2733
      %v2786 = vunpack.c.l.b16 %v2734
      %v2787 = vunpack.c.l.b16 %v2735
      %v2788 = vunpack.c.l.b16 %v2736
      %v2789 = vunpack.c.l.b16 %v2737
      %v2790 = vunpack.c.l.b16 %v2738
      %v2791 = vunpack.c.l.b16 %v2739
      %v2792 = vunpack.c.l.b16 %v2740
      %v2793 = vunpack.c.l.b16 %v2741
      %v2794 = vunpack.c.l.b16 %v2742
      %v2795 = vunpack.c.l.b16 %v2743
      %v2796 = vunpack.c.l.b16 %v2744
      %v2797 = vpack.c.b16 %v2782, %v2781
      %v2798 = vpack.c.b16 %v2784, %v2783
      %v2799 = vpack.c.b16 %v2786, %v2785
      %v2800 = vpack.c.b16 %v2788, %v2787
      %v2801 = vpack.c.b16 %v2790, %v2789
      %v2802 = vpack.c.b16 %v2792, %v2791
      %v2803 = vpack.c.b16 %v2794, %v2793
      %v2804 = vpack.c.b16 %v2796, %v2795
      %2813 = vmatprep.subr.bf16.mxu0 0
      %2814 = vmatpush1.bf16.msra.mxu0 %v2797
      %2815 = vmatprep.subr.bf16.mxu0 0
      %2816 = vmatpush1.bf16.msra.mxu0 %v2798
      %2817 = vmatprep.subr.bf16.mxu0 0
      %2818 = vmatpush1.bf16.msra.mxu0 %v2799
      %2819 = vmatprep.subr.bf16.mxu0 0
      %2820 = vmatpush1.bf16.msra.mxu0 %v2800
      %2821 = vmatprep.subr.bf16.mxu0 0
      %2822 = vmatpush1.bf16.msra.mxu0 %v2801
      %2823 = vmatprep.subr.bf16.mxu0 0
      %2824 = vmatpush1.bf16.msra.mxu0 %v2802
      %2825 = vmatprep.subr.bf16.mxu0 0
      %2826 = vmatpush1.bf16.msra.mxu0 %v2803
      %2827 = vmatprep.subr.bf16.mxu0 0
      %2828 = vmatpush1.bf16.msra.mxu0 %v2804
      %2829 = vmatprep.subr.bf16.mxu0 0
      %2830 = vmatpush1.bf16.msra.mxu0 0
      %2831 = vmatprep.subr.bf16.mxu0 0
      %2832 = vmatpush1.bf16.msra.mxu0 0
      %2833 = vmatprep.subr.bf16.mxu0 0
      %2834 = vmatpush1.bf16.msra.mxu0 0
      %2835 = vmatprep.subr.bf16.mxu0 0
      %2836 = vmatpush1.bf16.msra.mxu0 0
      %2837 = vmatprep.subr.bf16.mxu0 0
      %2838 = vmatpush1.bf16.msra.mxu0 0
      %2839 = vmatprep.subr.bf16.mxu0 0
      %2840 = vmatpush1.bf16.msra.mxu0 0
      %2841 = vmatprep.subr.bf16.mxu0 0
      %2842 = vmatpush1.bf16.msra.mxu0 0
      %2843 = vmatprep.subr.bf16.mxu0 0
      %2844 = vmatpush1.bf16.msra.mxu0 0
      %2845 = vmatprep.mubr.bf16.mxu0 0
      %2846 = vmatmul.mubr.bf16.gmra.mrb[0].mxu0 %v2753
      %v2847 = vpop.f32.mrb[0].mxu0
      %v2848 = vadd.f32 0.0, %v2847
      %v2849 = vpop.f32.mrb[0].mxu0
      %v2850 = vpop.f32.mrb[0].mxu0
      %v2851 = vadd.f32 0.0, %v2850
      %v2852 = vpop.f32.mrb[0].mxu0
      %2853 = vmatprep.mubr.bf16.mxu0 0
      %2854 = vmatmul.mubr.bf16.gmra.mrb[0].mxu0 %v2755
      %v2855 = vpop.f32.mrb[0].mxu0
      %v2856 = vadd.f32 0.0, %v2855
      %v2857 = vpop.f32.mrb[0].mxu0
      %v2858 = vpop.f32.mrb[0].mxu0
      %v2859 = vadd.f32 0.0, %v2858
      %v2860 = vpop.f32.mrb[0].mxu0
      %2861 = vmatprep.mubr.bf16.mxu0 0
      %2862 = vmatmul.mubr.bf16.gmra.mrb[0].mxu0 %v2757
      %v2863 = vpop.f32.mrb[0].mxu0
      %v2864 = vadd.f32 0.0, %v2863
      %v2865 = vpop.f32.mrb[0].mxu0
      %v2866 = vpop.f32.mrb[0].mxu0
      %v2867 = vadd.f32 0.0, %v2866
      %v2868 = vpop.f32.mrb[0].mxu0
      %2869 = vmatprep.mubr.bf16.mxu0 0
      %2870 = vmatmul.mubr.bf16.gmra.mrb[0].mxu0 %v2759
      %v2871 = vpop.f32.mrb[0].mxu0
      %v2872 = vadd.f32 0.0, %v2871
      %v2873 = vpop.f32.mrb[0].mxu0
      %v2874 = vpop.f32.mrb[0].mxu0
      %v2875 = vadd.f32 0.0, %v2874
      %v2876 = vpop.f32.mrb[0].mxu0
      %2877 = vmatprep.mubr.bf16.mxu0 0
      %2878 = vmatmul.mubr.bf16.gmra.mrb[0].mxu0 %v2758
      %v2879 = vpop.f32.mrb[0].mxu0
      %v2880 = vadd.f32 0.0, %v2879
      %v2881 = vpop.f32.mrb[0].mxu0
      %v2882 = vpop.f32.mrb[0].mxu0
      %v2883 = vpop.f32.mrb[0].mxu0
      %2884 = vdwg.mxu0
      %v2885 = vadd.f32 %v2717, %v2848
      %v2886 = vadd.f32 %v2718, %v2851
      %v2887 = vadd.f32 %v2719, %v2856
      %v2888 = vadd.f32 %v2720, %v2859
      %v2889 = vadd.f32 %v2721, %v2864
      %v2890 = vadd.f32 %v2722, %v2867
      %v2891 = vadd.f32 %v2723, %v2872
      %v2892 = vadd.f32 %v2724, %v2875
      %v2893 = vadd.f32 %v2725, %v2880
      %s2894 = scalar_lea.vmem %s1, 960
      %v2895 = vld [vmem:[%s2894] sm:$0xf]
      %v2896 = vld [vmem:[%s2894 + $0x4] sm:$0xf]
      %v2897 = vld [vmem:[%s2894 + $0x8] sm:$0xf]
      %v2898 = vld [vmem:[%s2894 + $0xc] sm:$0xf]
      %v2899 = vld [vmem:[%s2894 + $0x10] sm:$0xf]
      %v2900 = vld [vmem:[%s2894 + $0x14] sm:$0xf]
      %v2901 = vld [vmem:[%s2894 + $0x18] sm:$0xf]
      %v2902 = vld [vmem:[%s2894 + $0x1c] sm:$0xf]
      %v2903 = vld [vmem:[%s2894 + $0x20] sm:$0xf]
      %v2904 = vld [vmem:[%s2894 + $0x24] sm:$0xf]
      %v2905 = vld [vmem:[%s2894 + $0x28] sm:$0xf]
      %v2906 = vld [vmem:[%s2894 + $0x2c] sm:$0xf]
      %v2907 = vld [vmem:[%s2894 + $0x30] sm:$0xf]
      %v2908 = vld [vmem:[%s2894 + $0x34] sm:$0xf]
      %v2909 = vld [vmem:[%s2894 + $0x38] sm:$0xf]
      %v2910 = vld [vmem:[%s2894 + $0x3c] sm:$0xf]
      %vm2911 = vsmask.f32 5376
      %v2913 = vshrl.u32 %v2412, 16
      %v2915 = vrot.slane %v2913, 2
      %v2916 = vshll.u32 %v2412, 16
      %v2918 = vrot.slane %v2916, 3
      %v2919 = vor.u32 %v2915, %v2918
      %v2920 = vrot.slane %v805, 2
      %v2921 = vrot.slane %v801, 3
      %v2922 = vor.u32 %v2920, %v2921
      %v2923 = vsel %vm2911, %v2919, %v2922
      %v2924 = vrot.slane %v813, 2
      %v2925 = vrot.slane %v809, 3
      %v2926 = vor.u32 %v2924, %v2925
      %v2927 = vsel %vm2911, %v2922, %v2926
      %v2928 = vrot.slane %v821, 2
      %v2929 = vrot.slane %v817, 3
      %v2930 = vor.u32 %v2928, %v2929
      %v2931 = vsel %vm2911, %v2926, %v2930
      %v2933 = vshrl.u32 %v2413, 16
      %v2935 = vrot.slane %v2933, 2
      %v2936 = vshll.u32 %v2413, 16
      %v2938 = vrot.slane %v2936, 3
      %v2939 = vor.u32 %v2935, %v2938
      %v2940 = vsel %vm2911, %v2930, %v2939
      %v2962 = vunpack.c.l.b16 %v2895
      %v2963 = vunpack.c.l.b16 %v2896
      %v2964 = vunpack.c.l.b16 %v2897
      %v2965 = vunpack.c.l.b16 %v2898
      %v2966 = vunpack.c.l.b16 %v2899
      %v2967 = vunpack.c.l.b16 %v2900
      %v2968 = vunpack.c.l.b16 %v2901
      %v2969 = vunpack.c.l.b16 %v2902
      %v2970 = vunpack.c.l.b16 %v2903
      %v2971 = vunpack.c.l.b16 %v2904
      %v2972 = vunpack.c.l.b16 %v2905
      %v2973 = vunpack.c.l.b16 %v2906
      %v2974 = vunpack.c.l.b16 %v2907
      %v2975 = vunpack.c.l.b16 %v2908
      %v2976 = vunpack.c.l.b16 %v2909
      %v2977 = vunpack.c.l.b16 %v2910
      %v2978 = vpack.c.b16 %v2963, %v2962
      %v2979 = vpack.c.b16 %v2965, %v2964
      %v2980 = vpack.c.b16 %v2967, %v2966
      %v2981 = vpack.c.b16 %v2969, %v2968
      %v2982 = vpack.c.b16 %v2971, %v2970
      %v2983 = vpack.c.b16 %v2973, %v2972
      %v2984 = vpack.c.b16 %v2975, %v2974
      %v2985 = vpack.c.b16 %v2977, %v2976
      %2994 = vmatprep.subr.bf16.mxu0 0
      %2995 = vmatpush1.bf16.msra.mxu0 %v2978
      %2996 = vmatprep.subr.bf16.mxu0 0
      %2997 = vmatpush1.bf16.msra.mxu0 %v2979
      %2998 = vmatprep.subr.bf16.mxu0 0
      %2999 = vmatpush1.bf16.msra.mxu0 %v2980
      %3000 = vmatprep.subr.bf16.mxu0 0
      %3001 = vmatpush1.bf16.msra.mxu0 %v2981
      %3002 = vmatprep.subr.bf16.mxu0 0
      %3003 = vmatpush1.bf16.msra.mxu0 %v2982
      %3004 = vmatprep.subr.bf16.mxu0 0
      %3005 = vmatpush1.bf16.msra.mxu0 %v2983
      %3006 = vmatprep.subr.bf16.mxu0 0
      %3007 = vmatpush1.bf16.msra.mxu0 %v2984
      %3008 = vmatprep.subr.bf16.mxu0 0
      %3009 = vmatpush1.bf16.msra.mxu0 %v2985
      %3010 = vmatprep.subr.bf16.mxu0 0
      %3011 = vmatpush1.bf16.msra.mxu0 0
      %3012 = vmatprep.subr.bf16.mxu0 0
      %3013 = vmatpush1.bf16.msra.mxu0 0
      %3014 = vmatprep.subr.bf16.mxu0 0
      %3015 = vmatpush1.bf16.msra.mxu0 0
      %3016 = vmatprep.subr.bf16.mxu0 0
      %3017 = vmatpush1.bf16.msra.mxu0 0
      %3018 = vmatprep.subr.bf16.mxu0 0
      %3019 = vmatpush1.bf16.msra.mxu0 0
      %3020 = vmatprep.subr.bf16.mxu0 0
      %3021 = vmatpush1.bf16.msra.mxu0 0
      %3022 = vmatprep.subr.bf16.mxu0 0
      %3023 = vmatpush1.bf16.msra.mxu0 0
      %3024 = vmatprep.subr.bf16.mxu0 0
      %3025 = vmatpush1.bf16.msra.mxu0 0
      %3026 = vmatprep.mubr.bf16.mxu0 0
      %3027 = vmatmul.mubr.bf16.gmra.mrb[0].mxu0 %v2923
      %v3028 = vpop.f32.mrb[0].mxu0
      %v3029 = vadd.f32 0.0, %v3028
      %v3030 = vpop.f32.mrb[0].mxu0
      %v3031 = vpop.f32.mrb[0].mxu0
      %v3032 = vadd.f32 0.0, %v3031
      %v3033 = vpop.f32.mrb[0].mxu0
      %3034 = vmatprep.mubr.bf16.mxu0 0
      %3035 = vmatmul.mubr.bf16.gmra.mrb[0].mxu0 %v2927
      %v3036 = vpop.f32.mrb[0].mxu0
      %v3037 = vadd.f32 0.0, %v3036
      %v3038 = vpop.f32.mrb[0].mxu0
      %v3039 = vpop.f32.mrb[0].mxu0
      %v3040 = vadd.f32 0.0, %v3039
      %v3041 = vpop.f32.mrb[0].mxu0
      %3042 = vmatprep.mubr.bf16.mxu0 0
      %3043 = vmatmul.mubr.bf16.gmra.mrb[0].mxu0 %v2931
      %v3044 = vpop.f32.mrb[0].mxu0
      %v3045 = vadd.f32 0.0, %v3044
      %v3046 = vpop.f32.mrb[0].mxu0
      %v3047 = vpop.f32.mrb[0].mxu0
      %v3048 = vadd.f32 0.0, %v3047
      %v3049 = vpop.f32.mrb[0].mxu0
      %3050 = vmatprep.mubr.bf16.mxu0 0
      %3051 = vmatmul.mubr.bf16.gmra.mrb[0].mxu0 %v2940
      %v3052 = vpop.f32.mrb[0].mxu0
      %v3053 = vadd.f32 0.0, %v3052
      %v3054 = vpop.f32.mrb[0].mxu0
      %v3055 = vpop.f32.mrb[0].mxu0
      %v3056 = vadd.f32 0.0, %v3055
      %v3057 = vpop.f32.mrb[0].mxu0
      %3058 = vmatprep.mubr.bf16.mxu0 0
      %3059 = vmatmul.mubr.bf16.gmra.mrb[0].mxu0 %v2935
      %v3060 = vpop.f32.mrb[0].mxu0
      %v3061 = vadd.f32 0.0, %v3060
      %v3062 = vpop.f32.mrb[0].mxu0
      %v3063 = vpop.f32.mrb[0].mxu0
      %v3064 = vpop.f32.mrb[0].mxu0
      %3065 = vdwg.mxu0
      %v3066 = vadd.f32 %v2885, %v3029
      %v3067 = vadd.f32 %v2886, %v3032
      %v3068 = vadd.f32 %v2887, %v3037
      %v3069 = vadd.f32 %v2888, %v3040
      %v3070 = vadd.f32 %v2889, %v3045
      %v3071 = vadd.f32 %v2890, %v3048
      %v3072 = vadd.f32 %v2891, %v3053
      %v3073 = vadd.f32 %v2892, %v3056
      %v3074 = vadd.f32 %v2893, %v3061
      %s3075 = scalar_lea.vmem %s1, 1024
      %v3076 = vld [vmem:[%s3075] sm:$0xf]
      %v3077 = vld [vmem:[%s3075 + $0x4] sm:$0xf]
      %v3078 = vld [vmem:[%s3075 + $0x8] sm:$0xf]
      %v3079 = vld [vmem:[%s3075 + $0xc] sm:$0xf]
      %v3080 = vld [vmem:[%s3075 + $0x10] sm:$0xf]
      %v3081 = vld [vmem:[%s3075 + $0x14] sm:$0xf]
      %v3082 = vld [vmem:[%s3075 + $0x18] sm:$0xf]
      %v3083 = vld [vmem:[%s3075 + $0x1c] sm:$0xf]
      %v3084 = vld [vmem:[%s3075 + $0x20] sm:$0xf]
      %v3085 = vld [vmem:[%s3075 + $0x24] sm:$0xf]
      %v3086 = vld [vmem:[%s3075 + $0x28] sm:$0xf]
      %v3087 = vld [vmem:[%s3075 + $0x2c] sm:$0xf]
      %v3088 = vld [vmem:[%s3075 + $0x30] sm:$0xf]
      %v3089 = vld [vmem:[%s3075 + $0x34] sm:$0xf]
      %v3090 = vld [vmem:[%s3075 + $0x38] sm:$0xf]
      %v3091 = vld [vmem:[%s3075 + $0x3c] sm:$0xf]
      %v3093 = vshrl.u32 %v2581, 16
      %v3095 = vrot.slane %v3093, 2
      %v3096 = vshll.u32 %v2581, 16
      %v3098 = vrot.slane %v3096, 3
      %v3099 = vor.u32 %v3095, %v3098
      %v3100 = vrot.slane %v994, 2
      %v3101 = vrot.slane %v990, 3
      %v3102 = vor.u32 %v3100, %v3101
      %v3103 = vsel %vm2911, %v3099, %v3102
      %v3104 = vrot.slane %v1002, 2
      %v3105 = vrot.slane %v998, 3
      %v3106 = vor.u32 %v3104, %v3105
      %v3107 = vsel %vm2911, %v3102, %v3106
      %v3108 = vrot.slane %v1010, 2
      %v3109 = vrot.slane %v1006, 3
      %v3110 = vor.u32 %v3108, %v3109
      %v3111 = vsel %vm2911, %v3106, %v3110
      %v3113 = vshrl.u32 %v2582, 16
      %v3115 = vrot.slane %v3113, 2
      %v3116 = vshll.u32 %v2582, 16
      %v3118 = vrot.slane %v3116, 3
      %v3119 = vor.u32 %v3115, %v3118
      %v3120 = vsel %vm2911, %v3110, %v3119
      %v3142 = vunpack.c.l.b16 %v3076
      %v3143 = vunpack.c.l.b16 %v3077
      %v3144 = vunpack.c.l.b16 %v3078
      %v3145 = vunpack.c.l.b16 %v3079
      %v3146 = vunpack.c.l.b16 %v3080
      %v3147 = vunpack.c.l.b16 %v3081
      %v3148 = vunpack.c.l.b16 %v3082
      %v3149 = vunpack.c.l.b16 %v3083
      %v3150 = vunpack.c.l.b16 %v3084
      %v3151 = vunpack.c.l.b16 %v3085
      %v3152 = vunpack.c.l.b16 %v3086
      %v3153 = vunpack.c.l.b16 %v3087
      %v3154 = vunpack.c.l.b16 %v3088
      %v3155 = vunpack.c.l.b16 %v3089
      %v3156 = vunpack.c.l.b16 %v3090
      %v3157 = vunpack.c.l.b16 %v3091
      %v3158 = vpack.c.b16 %v3143, %v3142
      %v3159 = vpack.c.b16 %v3145, %v3144
      %v3160 = vpack.c.b16 %v3147, %v3146
      %v3161 = vpack.c.b16 %v3149, %v3148
      %v3162 = vpack.c.b16 %v3151, %v3150
      %v3163 = vpack.c.b16 %v3153, %v3152
      %v3164 = vpack.c.b16 %v3155, %v3154
      %v3165 = vpack.c.b16 %v3157, %v3156
      %3174 = vmatprep.subr.bf16.mxu0 0
      %3175 = vmatpush1.bf16.msra.mxu0 %v3158
      %3176 = vmatprep.subr.bf16.mxu0 0
      %3177 = vmatpush1.bf16.msra.mxu0 %v3159
      %3178 = vmatprep.subr.bf16.mxu0 0
      %3179 = vmatpush1.bf16.msra.mxu0 %v3160
      %3180 = vmatprep.subr.bf16.mxu0 0
      %3181 = vmatpush1.bf16.msra.mxu0 %v3161
      %3182 = vmatprep.subr.bf16.mxu0 0
      %3183 = vmatpush1.bf16.msra.mxu0 %v3162
      %3184 = vmatprep.subr.bf16.mxu0 0
      %3185 = vmatpush1.bf16.msra.mxu0 %v3163
      %3186 = vmatprep.subr.bf16.mxu0 0
      %3187 = vmatpush1.bf16.msra.mxu0 %v3164
      %3188 = vmatprep.subr.bf16.mxu0 0
      %3189 = vmatpush1.bf16.msra.mxu0 %v3165
      %3190 = vmatprep.subr.bf16.mxu0 0
      %3191 = vmatpush1.bf16.msra.mxu0 0
      %3192 = vmatprep.subr.bf16.mxu0 0
      %3193 = vmatpush1.bf16.msra.mxu0 0
      %3194 = vmatprep.subr.bf16.mxu0 0
      %3195 = vmatpush1.bf16.msra.mxu0 0
      %3196 = vmatprep.subr.bf16.mxu0 0
      %3197 = vmatpush1.bf16.msra.mxu0 0
      %3198 = vmatprep.subr.bf16.mxu0 0
      %3199 = vmatpush1.bf16.msra.mxu0 0
      %3200 = vmatprep.subr.bf16.mxu0 0
      %3201 = vmatpush1.bf16.msra.mxu0 0
      %3202 = vmatprep.subr.bf16.mxu0 0
      %3203 = vmatpush1.bf16.msra.mxu0 0
      %3204 = vmatprep.subr.bf16.mxu0 0
      %3205 = vmatpush1.bf16.msra.mxu0 0
      %3206 = vmatprep.mubr.bf16.mxu0 0
      %3207 = vmatmul.mubr.bf16.gmra.mrb[0].mxu0 %v3103
      %v3208 = vpop.f32.mrb[0].mxu0
      %v3209 = vadd.f32 0.0, %v3208
      %v3210 = vpop.f32.mrb[0].mxu0
      %v3211 = vpop.f32.mrb[0].mxu0
      %v3212 = vadd.f32 0.0, %v3211
      %v3213 = vpop.f32.mrb[0].mxu0
      %3214 = vmatprep.mubr.bf16.mxu0 0
      %3215 = vmatmul.mubr.bf16.gmra.mrb[0].mxu0 %v3107
      %v3216 = vpop.f32.mrb[0].mxu0
      %v3217 = vadd.f32 0.0, %v3216
      %v3218 = vpop.f32.mrb[0].mxu0
      %v3219 = vpop.f32.mrb[0].mxu0
      %v3220 = vadd.f32 0.0, %v3219
      %v3221 = vpop.f32.mrb[0].mxu0
      %3222 = vmatprep.mubr.bf16.mxu0 0
      %3223 = vmatmul.mubr.bf16.gmra.mrb[0].mxu0 %v3111
      %v3224 = vpop.f32.mrb[0].mxu0
      %v3225 = vadd.f32 0.0, %v3224
      %v3226 = vpop.f32.mrb[0].mxu0
      %v3227 = vpop.f32.mrb[0].mxu0
      %v3228 = vadd.f32 0.0, %v3227
      %v3229 = vpop.f32.mrb[0].mxu0
      %3230 = vmatprep.mubr.bf16.mxu0 0
      %3231 = vmatmul.mubr.bf16.gmra.mrb[0].mxu0 %v3120
      %v3232 = vpop.f32.mrb[0].mxu0
      %v3233 = vadd.f32 0.0, %v3232
      %v3234 = vpop.f32.mrb[0].mxu0
      %v3235 = vpop.f32.mrb[0].mxu0
      %v3236 = vadd.f32 0.0, %v3235
      %v3237 = vpop.f32.mrb[0].mxu0
      %3238 = vmatprep.mubr.bf16.mxu0 0
      %3239 = vmatmul.mubr.bf16.gmra.mrb[0].mxu0 %v3115
      %v3240 = vpop.f32.mrb[0].mxu0
      %v3241 = vadd.f32 0.0, %v3240
      %v3242 = vpop.f32.mrb[0].mxu0
      %v3243 = vpop.f32.mrb[0].mxu0
      %v3244 = vpop.f32.mrb[0].mxu0
      %3245 = vdwg.mxu0
      %v3246 = vadd.f32 %v3066, %v3209
      %v3247 = vadd.f32 %v3067, %v3212
      %v3248 = vadd.f32 %v3068, %v3217
      %v3249 = vadd.f32 %v3069, %v3220
      %v3250 = vadd.f32 %v3070, %v3225
      %v3251 = vadd.f32 %v3071, %v3228
      %v3252 = vadd.f32 %v3072, %v3233
      %v3253 = vadd.f32 %v3073, %v3236
      %v3254 = vadd.f32 %v3074, %v3241
      %s3255 = scalar_lea.vmem %s1, 1088
      %v3256 = vld [vmem:[%s3255] sm:$0xf]
      %v3257 = vld [vmem:[%s3255 + $0x4] sm:$0xf]
      %v3258 = vld [vmem:[%s3255 + $0x8] sm:$0xf]
      %v3259 = vld [vmem:[%s3255 + $0xc] sm:$0xf]
      %v3260 = vld [vmem:[%s3255 + $0x10] sm:$0xf]
      %v3261 = vld [vmem:[%s3255 + $0x14] sm:$0xf]
      %v3262 = vld [vmem:[%s3255 + $0x18] sm:$0xf]
      %v3263 = vld [vmem:[%s3255 + $0x1c] sm:$0xf]
      %v3264 = vld [vmem:[%s3255 + $0x20] sm:$0xf]
      %v3265 = vld [vmem:[%s3255 + $0x24] sm:$0xf]
      %v3266 = vld [vmem:[%s3255 + $0x28] sm:$0xf]
      %v3267 = vld [vmem:[%s3255 + $0x2c] sm:$0xf]
      %v3268 = vld [vmem:[%s3255 + $0x30] sm:$0xf]
      %v3269 = vld [vmem:[%s3255 + $0x34] sm:$0xf]
      %v3270 = vld [vmem:[%s3255 + $0x38] sm:$0xf]
      %v3271 = vld [vmem:[%s3255 + $0x3c] sm:$0xf]
      %v3273 = vshrl.u32 %v2749, 16
      %v3275 = vrot.slane %v3273, 2
      %v3276 = vshll.u32 %v2749, 16
      %v3278 = vrot.slane %v3276, 3
      %v3279 = vor.u32 %v3275, %v3278
      %v3280 = vrot.slane %v1183, 2
      %v3281 = vrot.slane %v1179, 3
      %v3282 = vor.u32 %v3280, %v3281
      %v3283 = vsel %vm2911, %v3279, %v3282
      %v3284 = vrot.slane %v1191, 2
      %v3285 = vrot.slane %v1187, 3
      %v3286 = vor.u32 %v3284, %v3285
      %v3287 = vsel %vm2911, %v3282, %v3286
      %v3288 = vrot.slane %v1199, 2
      %v3289 = vrot.slane %v1195, 3
      %v3290 = vor.u32 %v3288, %v3289
      %v3291 = vsel %vm2911, %v3286, %v3290
      %v3293 = vshrl.u32 %v2750, 16
      %v3295 = vrot.slane %v3293, 2
      %v3296 = vshll.u32 %v2750, 16
      %v3298 = vrot.slane %v3296, 3
      %v3299 = vor.u32 %v3295, %v3298
      %v3300 = vsel %vm2911, %v3290, %v3299
      %v3322 = vunpack.c.l.b16 %v3256
      %v3323 = vunpack.c.l.b16 %v3257
      %v3324 = vunpack.c.l.b16 %v3258
      %v3325 = vunpack.c.l.b16 %v3259
      %v3326 = vunpack.c.l.b16 %v3260
      %v3327 = vunpack.c.l.b16 %v3261
      %v3328 = vunpack.c.l.b16 %v3262
      %v3329 = vunpack.c.l.b16 %v3263
      %v3330 = vunpack.c.l.b16 %v3264
      %v3331 = vunpack.c.l.b16 %v3265
      %v3332 = vunpack.c.l.b16 %v3266
      %v3333 = vunpack.c.l.b16 %v3267
      %v3334 = vunpack.c.l.b16 %v3268
      %v3335 = vunpack.c.l.b16 %v3269
      %v3336 = vunpack.c.l.b16 %v3270
      %v3337 = vunpack.c.l.b16 %v3271
      %v3338 = vpack.c.b16 %v3323, %v3322
      %v3339 = vpack.c.b16 %v3325, %v3324
      %v3340 = vpack.c.b16 %v3327, %v3326
      %v3341 = vpack.c.b16 %v3329, %v3328
      %v3342 = vpack.c.b16 %v3331, %v3330
      %v3343 = vpack.c.b16 %v3333, %v3332
      %v3344 = vpack.c.b16 %v3335, %v3334
      %v3345 = vpack.c.b16 %v3337, %v3336
      %3354 = vmatprep.subr.bf16.mxu0 0
      %3355 = vmatpush1.bf16.msra.mxu0 %v3338
      %3356 = vmatprep.subr.bf16.mxu0 0
      %3357 = vmatpush1.bf16.msra.mxu0 %v3339
      %3358 = vmatprep.subr.bf16.mxu0 0
      %3359 = vmatpush1.bf16.msra.mxu0 %v3340
      %3360 = vmatprep.subr.bf16.mxu0 0
      %3361 = vmatpush1.bf16.msra.mxu0 %v3341
      %3362 = vmatprep.subr.bf16.mxu0 0
      %3363 = vmatpush1.bf16.msra.mxu0 %v3342
      %3364 = vmatprep.subr.bf16.mxu0 0
      %3365 = vmatpush1.bf16.msra.mxu0 %v3343
      %3366 = vmatprep.subr.bf16.mxu0 0
      %3367 = vmatpush1.bf16.msra.mxu0 %v3344
      %3368 = vmatprep.subr.bf16.mxu0 0
      %3369 = vmatpush1.bf16.msra.mxu0 %v3345
      %3370 = vmatprep.subr.bf16.mxu0 0
      %3371 = vmatpush1.bf16.msra.mxu0 0
      %3372 = vmatprep.subr.bf16.mxu0 0
      %3373 = vmatpush1.bf16.msra.mxu0 0
      %3374 = vmatprep.subr.bf16.mxu0 0
      %3375 = vmatpush1.bf16.msra.mxu0 0
      %3376 = vmatprep.subr.bf16.mxu0 0
      %3377 = vmatpush1.bf16.msra.mxu0 0
      %3378 = vmatprep.subr.bf16.mxu0 0
      %3379 = vmatpush1.bf16.msra.mxu0 0
      %3380 = vmatprep.subr.bf16.mxu0 0
      %3381 = vmatpush1.bf16.msra.mxu0 0
      %3382 = vmatprep.subr.bf16.mxu0 0
      %3383 = vmatpush1.bf16.msra.mxu0 0
      %3384 = vmatprep.subr.bf16.mxu0 0
      %3385 = vmatpush1.bf16.msra.mxu0 0
      %3386 = vmatprep.mubr.bf16.mxu0 0
      %3387 = vmatmul.mubr.bf16.gmra.mrb[0].mxu0 %v3283
      %v3388 = vpop.f32.mrb[0].mxu0
      %v3389 = vadd.f32 0.0, %v3388
      %v3390 = vpop.f32.mrb[0].mxu0
      %v3391 = vpop.f32.mrb[0].mxu0
      %v3392 = vadd.f32 0.0, %v3391
      %v3393 = vpop.f32.mrb[0].mxu0
      %3394 = vmatprep.mubr.bf16.mxu0 0
      %3395 = vmatmul.mubr.bf16.gmra.mrb[0].mxu0 %v3287
      %v3396 = vpop.f32.mrb[0].mxu0
      %v3397 = vadd.f32 0.0, %v3396
      %v3398 = vpop.f32.mrb[0].mxu0
      %v3399 = vpop.f32.mrb[0].mxu0
      %v3400 = vadd.f32 0.0, %v3399
      %v3401 = vpop.f32.mrb[0].mxu0
      %3402 = vmatprep.mubr.bf16.mxu0 0
      %3403 = vmatmul.mubr.bf16.gmra.mrb[0].mxu0 %v3291
      %v3404 = vpop.f32.mrb[0].mxu0
      %v3405 = vadd.f32 0.0, %v3404
      %v3406 = vpop.f32.mrb[0].mxu0
      %v3407 = vpop.f32.mrb[0].mxu0
      %v3408 = vadd.f32 0.0, %v3407
      %v3409 = vpop.f32.mrb[0].mxu0
      %3410 = vmatprep.mubr.bf16.mxu0 0
      %3411 = vmatmul.mubr.bf16.gmra.mrb[0].mxu0 %v3300
      %v3412 = vpop.f32.mrb[0].mxu0
      %v3413 = vadd.f32 0.0, %v3412
      %v3414 = vpop.f32.mrb[0].mxu0
      %v3415 = vpop.f32.mrb[0].mxu0
      %v3416 = vadd.f32 0.0, %v3415
      %v3417 = vpop.f32.mrb[0].mxu0
      %3418 = vmatprep.mubr.bf16.mxu0 0
      %3419 = vmatmul.mubr.bf16.gmra.mrb[0].mxu0 %v3295
      %v3420 = vpop.f32.mrb[0].mxu0
      %v3421 = vadd.f32 0.0, %v3420
      %v3422 = vpop.f32.mrb[0].mxu0
      %v3423 = vpop.f32.mrb[0].mxu0
      %v3424 = vpop.f32.mrb[0].mxu0
      %3425 = vdwg.mxu0
      %v3426 = vadd.f32 %v3246, %v3389
      %v3427 = vadd.f32 %v3247, %v3392
      %v3428 = vadd.f32 %v3248, %v3397
      %v3429 = vadd.f32 %v3249, %v3400
      %v3430 = vadd.f32 %v3250, %v3405
      %v3431 = vadd.f32 %v3251, %v3408
      %v3432 = vadd.f32 %v3252, %v3413
      %v3433 = vadd.f32 %v3253, %v3416
      %v3434 = vadd.f32 %v3254, %v3421
      %v3435 = vld [vmem:[%s230] sm:$0x8]
      %v3436 = vld [vmem:[%s230 + $0x20] sm:$0xf]
      %s3437 = scalar_lea.vmem %s1, 1152
      %v3438 = vld [vmem:[%s3437] sm:$0xf]
      %v3439 = vld [vmem:[%s3437 + $0x4] sm:$0xf]
      %v3440 = vld [vmem:[%s3437 + $0x8] sm:$0xf]
      %v3441 = vld [vmem:[%s3437 + $0xc] sm:$0xf]
      %v3442 = vld [vmem:[%s3437 + $0x10] sm:$0xf]
      %v3443 = vld [vmem:[%s3437 + $0x14] sm:$0xf]
      %v3444 = vld [vmem:[%s3437 + $0x18] sm:$0xf]
      %v3445 = vld [vmem:[%s3437 + $0x1c] sm:$0xf]
      %v3446 = vld [vmem:[%s3437 + $0x20] sm:$0xf]
      %v3447 = vld [vmem:[%s3437 + $0x24] sm:$0xf]
      %v3448 = vld [vmem:[%s3437 + $0x28] sm:$0xf]
      %v3449 = vld [vmem:[%s3437 + $0x2c] sm:$0xf]
      %v3450 = vld [vmem:[%s3437 + $0x30] sm:$0xf]
      %v3451 = vld [vmem:[%s3437 + $0x34] sm:$0xf]
      %v3452 = vld [vmem:[%s3437 + $0x38] sm:$0xf]
      %v3453 = vld [vmem:[%s3437 + $0x3c] sm:$0xf]
      %v3456 = vunpack.c.l.b16 %v3435
      %v3457 = vunpack.c.l.b16 %v3436
      %v3458 = vpack.c.b16 %v453, %v3456
      %v3459 = vpack.c.b16 %v3457, %v3457
      %vm3460 = vcmask 1044480
      %v3461 = vrot.slane %v3458, 3
      %v3462 = vrot.slane %v462, 3
      %v3463 = vsel %vm3460, %v3461, %v3462
      %v3464 = vrot.slane %v463, 3
      %v3465 = vsel %vm3460, %v3462, %v3464
      %v3466 = vrot.slane %v464, 3
      %v3467 = vsel %vm3460, %v3464, %v3466
      %v3468 = vrot.slane %v3459, 3
      %v3469 = vsel %vm3460, %v3466, %v3468
      %v3491 = vunpack.c.l.b16 %v3438
      %v3492 = vunpack.c.l.b16 %v3439
      %v3493 = vunpack.c.l.b16 %v3440
      %v3494 = vunpack.c.l.b16 %v3441
      %v3495 = vunpack.c.l.b16 %v3442
      %v3496 = vunpack.c.l.b16 %v3443
      %v3497 = vunpack.c.l.b16 %v3444
      %v3498 = vunpack.c.l.b16 %v3445
      %v3499 = vunpack.c.l.b16 %v3446
      %v3500 = vunpack.c.l.b16 %v3447
      %v3501 = vunpack.c.l.b16 %v3448
      %v3502 = vunpack.c.l.b16 %v3449
      %v3503 = vunpack.c.l.b16 %v3450
      %v3504 = vunpack.c.l.b16 %v3451
      %v3505 = vunpack.c.l.b16 %v3452
      %v3506 = vunpack.c.l.b16 %v3453
      %v3507 = vpack.c.b16 %v3492, %v3491
      %v3508 = vpack.c.b16 %v3494, %v3493
      %v3509 = vpack.c.b16 %v3496, %v3495
      %v3510 = vpack.c.b16 %v3498, %v3497
      %v3511 = vpack.c.b16 %v3500, %v3499
      %v3512 = vpack.c.b16 %v3502, %v3501
      %v3513 = vpack.c.b16 %v3504, %v3503
      %v3514 = vpack.c.b16 %v3506, %v3505
      %3523 = vmatprep.subr.bf16.mxu0 0
      %3524 = vmatpush1.bf16.msra.mxu0 %v3507
      %3525 = vmatprep.subr.bf16.mxu0 0
      %3526 = vmatpush1.bf16.msra.mxu0 %v3508
      %3527 = vmatprep.subr.bf16.mxu0 0
      %3528 = vmatpush1.bf16.msra.mxu0 %v3509
      %3529 = vmatprep.subr.bf16.mxu0 0
      %3530 = vmatpush1.bf16.msra.mxu0 %v3510
      %3531 = vmatprep.subr.bf16.mxu0 0
      %3532 = vmatpush1.bf16.msra.mxu0 %v3511
      %3533 = vmatprep.subr.bf16.mxu0 0
      %3534 = vmatpush1.bf16.msra.mxu0 %v3512
      %3535 = vmatprep.subr.bf16.mxu0 0
      %3536 = vmatpush1.bf16.msra.mxu0 %v3513
      %3537 = vmatprep.subr.bf16.mxu0 0
      %3538 = vmatpush1.bf16.msra.mxu0 %v3514
      %3539 = vmatprep.subr.bf16.mxu0 0
      %3540 = vmatpush1.bf16.msra.mxu0 0
      %3541 = vmatprep.subr.bf16.mxu0 0
      %3542 = vmatpush1.bf16.msra.mxu0 0
      %3543 = vmatprep.subr.bf16.mxu0 0
      %3544 = vmatpush1.bf16.msra.mxu0 0
      %3545 = vmatprep.subr.bf16.mxu0 0
      %3546 = vmatpush1.bf16.msra.mxu0 0
      %3547 = vmatprep.subr.bf16.mxu0 0
      %3548 = vmatpush1.bf16.msra.mxu0 0
      %3549 = vmatprep.subr.bf16.mxu0 0
      %3550 = vmatpush1.bf16.msra.mxu0 0
      %3551 = vmatprep.subr.bf16.mxu0 0
      %3552 = vmatpush1.bf16.msra.mxu0 0
      %3553 = vmatprep.subr.bf16.mxu0 0
      %3554 = vmatpush1.bf16.msra.mxu0 0
      %3555 = vmatprep.mubr.bf16.mxu0 0
      %3556 = vmatmul.mubr.bf16.gmra.mrb[0].mxu0 %v3463
      %v3557 = vpop.f32.mrb[0].mxu0
      %v3558 = vadd.f32 0.0, %v3557
      %v3559 = vpop.f32.mrb[0].mxu0
      %v3560 = vpop.f32.mrb[0].mxu0
      %v3561 = vadd.f32 0.0, %v3560
      %v3562 = vpop.f32.mrb[0].mxu0
      %3563 = vmatprep.mubr.bf16.mxu0 0
      %3564 = vmatmul.mubr.bf16.gmra.mrb[0].mxu0 %v3465
      %v3565 = vpop.f32.mrb[0].mxu0
      %v3566 = vadd.f32 0.0, %v3565
      %v3567 = vpop.f32.mrb[0].mxu0
      %v3568 = vpop.f32.mrb[0].mxu0
      %v3569 = vadd.f32 0.0, %v3568
      %v3570 = vpop.f32.mrb[0].mxu0
      %3571 = vmatprep.mubr.bf16.mxu0 0
      %3572 = vmatmul.mubr.bf16.gmra.mrb[0].mxu0 %v3467
      %v3573 = vpop.f32.mrb[0].mxu0
      %v3574 = vadd.f32 0.0, %v3573
      %v3575 = vpop.f32.mrb[0].mxu0
      %v3576 = vpop.f32.mrb[0].mxu0
      %v3577 = vadd.f32 0.0, %v3576
      %v3578 = vpop.f32.mrb[0].mxu0
      %3579 = vmatprep.mubr.bf16.mxu0 0
      %3580 = vmatmul.mubr.bf16.gmra.mrb[0].mxu0 %v3469
      %v3581 = vpop.f32.mrb[0].mxu0
      %v3582 = vadd.f32 0.0, %v3581
      %v3583 = vpop.f32.mrb[0].mxu0
      %v3584 = vpop.f32.mrb[0].mxu0
      %v3585 = vadd.f32 0.0, %v3584
      %v3586 = vpop.f32.mrb[0].mxu0
      %3587 = vmatprep.mubr.bf16.mxu0 0
      %3588 = vmatmul.mubr.bf16.gmra.mrb[0].mxu0 %v3468
      %v3589 = vpop.f32.mrb[0].mxu0
      %v3590 = vadd.f32 0.0, %v3589
      %v3591 = vpop.f32.mrb[0].mxu0
      %v3592 = vpop.f32.mrb[0].mxu0
      %v3593 = vpop.f32.mrb[0].mxu0
      %3594 = vdwg.mxu0
      %v3595 = vadd.f32 %v3426, %v3558
      %v3596 = vadd.f32 %v3427, %v3561
      %v3597 = vadd.f32 %v3428, %v3566
      %v3598 = vadd.f32 %v3429, %v3569
      %v3599 = vadd.f32 %v3430, %v3574
      %v3600 = vadd.f32 %v3431, %v3577
      %v3601 = vadd.f32 %v3432, %v3582
      %v3602 = vadd.f32 %v3433, %v3585
      %v3603 = vadd.f32 %v3434, %v3590
      %v3604 = vld [vmem:[%s268] sm:$0x8]
      %v3605 = vld [vmem:[%s268 + $0x20] sm:$0xf]
      %s3606 = scalar_lea.vmem %s1, 1216
      %v3607 = vld [vmem:[%s3606] sm:$0xf]
      %v3608 = vld [vmem:[%s3606 + $0x4] sm:$0xf]
      %v3609 = vld [vmem:[%s3606 + $0x8] sm:$0xf]
      %v3610 = vld [vmem:[%s3606 + $0xc] sm:$0xf]
      %v3611 = vld [vmem:[%s3606 + $0x10] sm:$0xf]
      %v3612 = vld [vmem:[%s3606 + $0x14] sm:$0xf]
      %v3613 = vld [vmem:[%s3606 + $0x18] sm:$0xf]
      %v3614 = vld [vmem:[%s3606 + $0x1c] sm:$0xf]
      %v3615 = vld [vmem:[%s3606 + $0x20] sm:$0xf]
      %v3616 = vld [vmem:[%s3606 + $0x24] sm:$0xf]
      %v3617 = vld [vmem:[%s3606 + $0x28] sm:$0xf]
      %v3618 = vld [vmem:[%s3606 + $0x2c] sm:$0xf]
      %v3619 = vld [vmem:[%s3606 + $0x30] sm:$0xf]
      %v3620 = vld [vmem:[%s3606 + $0x34] sm:$0xf]
      %v3621 = vld [vmem:[%s3606 + $0x38] sm:$0xf]
      %v3622 = vld [vmem:[%s3606 + $0x3c] sm:$0xf]
      %v3625 = vunpack.c.l.b16 %v3604
      %v3626 = vunpack.c.l.b16 %v3605
      %v3627 = vpack.c.b16 %v305, %v3625
      %v3628 = vpack.c.b16 %v3626, %v3626
      %v3629 = vrot.slane %v3627, 3
      %v3630 = vrot.slane %v314, 3
      %v3631 = vsel %vm3460, %v3629, %v3630
      %v3632 = vrot.slane %v315, 3
      %v3633 = vsel %vm3460, %v3630, %v3632
      %v3634 = vrot.slane %v316, 3
      %v3635 = vsel %vm3460, %v3632, %v3634
      %v3636 = vrot.slane %v3628, 3
      %v3637 = vsel %vm3460, %v3634, %v3636
      %v3659 = vunpack.c.l.b16 %v3607
      %v3660 = vunpack.c.l.b16 %v3608
      %v3661 = vunpack.c.l.b16 %v3609
      %v3662 = vunpack.c.l.b16 %v3610
      %v3663 = vunpack.c.l.b16 %v3611
      %v3664 = vunpack.c.l.b16 %v3612
      %v3665 = vunpack.c.l.b16 %v3613
      %v3666 = vunpack.c.l.b16 %v3614
      %v3667 = vunpack.c.l.b16 %v3615
      %v3668 = vunpack.c.l.b16 %v3616
      %v3669 = vunpack.c.l.b16 %v3617
      %v3670 = vunpack.c.l.b16 %v3618
      %v3671 = vunpack.c.l.b16 %v3619
      %v3672 = vunpack.c.l.b16 %v3620
      %v3673 = vunpack.c.l.b16 %v3621
      %v3674 = vunpack.c.l.b16 %v3622
      %v3675 = vpack.c.b16 %v3660, %v3659
      %v3676 = vpack.c.b16 %v3662, %v3661
      %v3677 = vpack.c.b16 %v3664, %v3663
      %v3678 = vpack.c.b16 %v3666, %v3665
      %v3679 = vpack.c.b16 %v3668, %v3667
      %v3680 = vpack.c.b16 %v3670, %v3669
      %v3681 = vpack.c.b16 %v3672, %v3671
      %v3682 = vpack.c.b16 %v3674, %v3673
      %3691 = vmatprep.subr.bf16.mxu0 0
      %3692 = vmatpush1.bf16.msra.mxu0 %v3675
      %3693 = vmatprep.subr.bf16.mxu0 0
      %3694 = vmatpush1.bf16.msra.mxu0 %v3676
      %3695 = vmatprep.subr.bf16.mxu0 0
      %3696 = vmatpush1.bf16.msra.mxu0 %v3677
      %3697 = vmatprep.subr.bf16.mxu0 0
      %3698 = vmatpush1.bf16.msra.mxu0 %v3678
      %3699 = vmatprep.subr.bf16.mxu0 0
      %3700 = vmatpush1.bf16.msra.mxu0 %v3679
      %3701 = vmatprep.subr.bf16.mxu0 0
      %3702 = vmatpush1.bf16.msra.mxu0 %v3680
      %3703 = vmatprep.subr.bf16.mxu0 0
      %3704 = vmatpush1.bf16.msra.mxu0 %v3681
      %3705 = vmatprep.subr.bf16.mxu0 0
      %3706 = vmatpush1.bf16.msra.mxu0 %v3682
      %3707 = vmatprep.subr.bf16.mxu0 0
      %3708 = vmatpush1.bf16.msra.mxu0 0
      %3709 = vmatprep.subr.bf16.mxu0 0
      %3710 = vmatpush1.bf16.msra.mxu0 0
      %3711 = vmatprep.subr.bf16.mxu0 0
      %3712 = vmatpush1.bf16.msra.mxu0 0
      %3713 = vmatprep.subr.bf16.mxu0 0
      %3714 = vmatpush1.bf16.msra.mxu0 0
      %3715 = vmatprep.subr.bf16.mxu0 0
      %3716 = vmatpush1.bf16.msra.mxu0 0
      %3717 = vmatprep.subr.bf16.mxu0 0
      %3718 = vmatpush1.bf16.msra.mxu0 0
      %3719 = vmatprep.subr.bf16.mxu0 0
      %3720 = vmatpush1.bf16.msra.mxu0 0
      %3721 = vmatprep.subr.bf16.mxu0 0
      %3722 = vmatpush1.bf16.msra.mxu0 0
      %3723 = vmatprep.mubr.bf16.mxu0 0
      %3724 = vmatmul.mubr.bf16.gmra.mrb[0].mxu0 %v3631
      %v3725 = vpop.f32.mrb[0].mxu0
      %v3726 = vadd.f32 0.0, %v3725
      %v3727 = vpop.f32.mrb[0].mxu0
      %v3728 = vpop.f32.mrb[0].mxu0
      %v3729 = vadd.f32 0.0, %v3728
      %v3730 = vpop.f32.mrb[0].mxu0
      %3731 = vmatprep.mubr.bf16.mxu0 0
      %3732 = vmatmul.mubr.bf16.gmra.mrb[0].mxu0 %v3633
      %v3733 = vpop.f32.mrb[0].mxu0
      %v3734 = vadd.f32 0.0, %v3733
      %v3735 = vpop.f32.mrb[0].mxu0
      %v3736 = vpop.f32.mrb[0].mxu0
      %v3737 = vadd.f32 0.0, %v3736
      %v3738 = vpop.f32.mrb[0].mxu0
      %3739 = vmatprep.mubr.bf16.mxu0 0
      %3740 = vmatmul.mubr.bf16.gmra.mrb[0].mxu0 %v3635
      %v3741 = vpop.f32.mrb[0].mxu0
      %v3742 = vadd.f32 0.0, %v3741
      %v3743 = vpop.f32.mrb[0].mxu0
      %v3744 = vpop.f32.mrb[0].mxu0
      %v3745 = vadd.f32 0.0, %v3744
      %v3746 = vpop.f32.mrb[0].mxu0
      %3747 = vmatprep.mubr.bf16.mxu0 0
      %3748 = vmatmul.mubr.bf16.gmra.mrb[0].mxu0 %v3637
      %v3749 = vpop.f32.mrb[0].mxu0
      %v3750 = vadd.f32 0.0, %v3749
      %v3751 = vpop.f32.mrb[0].mxu0
      %v3752 = vpop.f32.mrb[0].mxu0
      %v3753 = vadd.f32 0.0, %v3752
      %v3754 = vpop.f32.mrb[0].mxu0
      %3755 = vmatprep.mubr.bf16.mxu0 0
      %3756 = vmatmul.mubr.bf16.gmra.mrb[0].mxu0 %v3636
      %v3757 = vpop.f32.mrb[0].mxu0
      %v3758 = vadd.f32 0.0, %v3757
      %v3759 = vpop.f32.mrb[0].mxu0
      %v3760 = vpop.f32.mrb[0].mxu0
      %v3761 = vpop.f32.mrb[0].mxu0
      %3762 = vdwg.mxu0
      %v3763 = vadd.f32 %v3595, %v3726
      %v3764 = vadd.f32 %v3596, %v3729
      %v3765 = vadd.f32 %v3597, %v3734
      %v3766 = vadd.f32 %v3598, %v3737
      %v3767 = vadd.f32 %v3599, %v3742
      %v3768 = vadd.f32 %v3600, %v3745
      %v3769 = vadd.f32 %v3601, %v3750
      %v3770 = vadd.f32 %v3602, %v3753
      %v3771 = vadd.f32 %v3603, %v3758
      %v3772 = vld [vmem:[%s591] sm:$0x8]
      %v3773 = vld [vmem:[%s591 + $0x20] sm:$0xf]
      %s3774 = scalar_lea.vmem %s1, 1280
      %v3775 = vld [vmem:[%s3774] sm:$0xf]
      %v3776 = vld [vmem:[%s3774 + $0x4] sm:$0xf]
      %v3777 = vld [vmem:[%s3774 + $0x8] sm:$0xf]
      %v3778 = vld [vmem:[%s3774 + $0xc] sm:$0xf]
      %v3779 = vld [vmem:[%s3774 + $0x10] sm:$0xf]
      %v3780 = vld [vmem:[%s3774 + $0x14] sm:$0xf]
      %v3781 = vld [vmem:[%s3774 + $0x18] sm:$0xf]
      %v3782 = vld [vmem:[%s3774 + $0x1c] sm:$0xf]
      %v3783 = vld [vmem:[%s3774 + $0x20] sm:$0xf]
      %v3784 = vld [vmem:[%s3774 + $0x24] sm:$0xf]
      %v3785 = vld [vmem:[%s3774 + $0x28] sm:$0xf]
      %v3786 = vld [vmem:[%s3774 + $0x2c] sm:$0xf]
      %v3787 = vld [vmem:[%s3774 + $0x30] sm:$0xf]
      %v3788 = vld [vmem:[%s3774 + $0x34] sm:$0xf]
      %v3789 = vld [vmem:[%s3774 + $0x38] sm:$0xf]
      %v3790 = vld [vmem:[%s3774 + $0x3c] sm:$0xf]
      %v3793 = vunpack.c.l.b16 %v3772
      %v3794 = vunpack.c.l.b16 %v3773
      %v3795 = vpack.c.b16 %v628, %v3793
      %v3796 = vpack.c.b16 %v3794, %v3794
      %v3797 = vrot.slane %v3795, 3
      %v3798 = vrot.slane %v637, 3
      %v3799 = vsel %vm3460, %v3797, %v3798
      %v3800 = vrot.slane %v638, 3
      %v3801 = vsel %vm3460, %v3798, %v3800
      %v3802 = vrot.slane %v639, 3
      %v3803 = vsel %vm3460, %v3800, %v3802
      %v3804 = vrot.slane %v3796, 3
      %v3805 = vsel %vm3460, %v3802, %v3804
      %v3827 = vunpack.c.l.b16 %v3775
      %v3828 = vunpack.c.l.b16 %v3776
      %v3829 = vunpack.c.l.b16 %v3777
      %v3830 = vunpack.c.l.b16 %v3778
      %v3831 = vunpack.c.l.b16 %v3779
      %v3832 = vunpack.c.l.b16 %v3780
      %v3833 = vunpack.c.l.b16 %v3781
      %v3834 = vunpack.c.l.b16 %v3782
      %v3835 = vunpack.c.l.b16 %v3783
      %v3836 = vunpack.c.l.b16 %v3784
      %v3837 = vunpack.c.l.b16 %v3785
      %v3838 = vunpack.c.l.b16 %v3786
      %v3839 = vunpack.c.l.b16 %v3787
      %v3840 = vunpack.c.l.b16 %v3788
      %v3841 = vunpack.c.l.b16 %v3789
      %v3842 = vunpack.c.l.b16 %v3790
      %v3843 = vpack.c.b16 %v3828, %v3827
      %v3844 = vpack.c.b16 %v3830, %v3829
      %v3845 = vpack.c.b16 %v3832, %v3831
      %v3846 = vpack.c.b16 %v3834, %v3833
      %v3847 = vpack.c.b16 %v3836, %v3835
      %v3848 = vpack.c.b16 %v3838, %v3837
      %v3849 = vpack.c.b16 %v3840, %v3839
      %v3850 = vpack.c.b16 %v3842, %v3841
      %3859 = vmatprep.subr.bf16.mxu0 0
      %3860 = vmatpush1.bf16.msra.mxu0 %v3843
      %3861 = vmatprep.subr.bf16.mxu0 0
      %3862 = vmatpush1.bf16.msra.mxu0 %v3844
      %3863 = vmatprep.subr.bf16.mxu0 0
      %3864 = vmatpush1.bf16.msra.mxu0 %v3845
      %3865 = vmatprep.subr.bf16.mxu0 0
      %3866 = vmatpush1.bf16.msra.mxu0 %v3846
      %3867 = vmatprep.subr.bf16.mxu0 0
      %3868 = vmatpush1.bf16.msra.mxu0 %v3847
      %3869 = vmatprep.subr.bf16.mxu0 0
      %3870 = vmatpush1.bf16.msra.mxu0 %v3848
      %3871 = vmatprep.subr.bf16.mxu0 0
      %3872 = vmatpush1.bf16.msra.mxu0 %v3849
      %3873 = vmatprep.subr.bf16.mxu0 0
      %3874 = vmatpush1.bf16.msra.mxu0 %v3850
      %3875 = vmatprep.subr.bf16.mxu0 0
      %3876 = vmatpush1.bf16.msra.mxu0 0
      %3877 = vmatprep.subr.bf16.mxu0 0
      %3878 = vmatpush1.bf16.msra.mxu0 0
      %3879 = vmatprep.subr.bf16.mxu0 0
      %3880 = vmatpush1.bf16.msra.mxu0 0
      %3881 = vmatprep.subr.bf16.mxu0 0
      %3882 = vmatpush1.bf16.msra.mxu0 0
      %3883 = vmatprep.subr.bf16.mxu0 0
      %3884 = vmatpush1.bf16.msra.mxu0 0
      %3885 = vmatprep.subr.bf16.mxu0 0
      %3886 = vmatpush1.bf16.msra.mxu0 0
      %3887 = vmatprep.subr.bf16.mxu0 0
      %3888 = vmatpush1.bf16.msra.mxu0 0
      %3889 = vmatprep.subr.bf16.mxu0 0
      %3890 = vmatpush1.bf16.msra.mxu0 0
      %3891 = vmatprep.mubr.bf16.mxu0 0
      %3892 = vmatmul.mubr.bf16.gmra.mrb[0].mxu0 %v3799
      %v3893 = vpop.f32.mrb[0].mxu0
      %v3894 = vadd.f32 0.0, %v3893
      %v3895 = vpop.f32.mrb[0].mxu0
      %v3896 = vpop.f32.mrb[0].mxu0
      %v3897 = vadd.f32 0.0, %v3896
      %v3898 = vpop.f32.mrb[0].mxu0
      %3899 = vmatprep.mubr.bf16.mxu0 0
      %3900 = vmatmul.mubr.bf16.gmra.mrb[0].mxu0 %v3801
      %v3901 = vpop.f32.mrb[0].mxu0
      %v3902 = vadd.f32 0.0, %v3901
      %v3903 = vpop.f32.mrb[0].mxu0
      %v3904 = vpop.f32.mrb[0].mxu0
      %v3905 = vadd.f32 0.0, %v3904
      %v3906 = vpop.f32.mrb[0].mxu0
      %3907 = vmatprep.mubr.bf16.mxu0 0
      %3908 = vmatmul.mubr.bf16.gmra.mrb[0].mxu0 %v3803
      %v3909 = vpop.f32.mrb[0].mxu0
      %v3910 = vadd.f32 0.0, %v3909
      %v3911 = vpop.f32.mrb[0].mxu0
      %v3912 = vpop.f32.mrb[0].mxu0
      %v3913 = vadd.f32 0.0, %v3912
      %v3914 = vpop.f32.mrb[0].mxu0
      %3915 = vmatprep.mubr.bf16.mxu0 0
      %3916 = vmatmul.mubr.bf16.gmra.mrb[0].mxu0 %v3805
      %v3917 = vpop.f32.mrb[0].mxu0
      %v3918 = vadd.f32 0.0, %v3917
      %v3919 = vpop.f32.mrb[0].mxu0
      %v3920 = vpop.f32.mrb[0].mxu0
      %v3921 = vadd.f32 0.0, %v3920
      %v3922 = vpop.f32.mrb[0].mxu0
      %3923 = vmatprep.mubr.bf16.mxu0 0
      %3924 = vmatmul.mubr.bf16.gmra.mrb[0].mxu0 %v3804
      %v3925 = vpop.f32.mrb[0].mxu0
      %v3926 = vadd.f32 0.0, %v3925
      %v3927 = vpop.f32.mrb[0].mxu0
      %v3928 = vpop.f32.mrb[0].mxu0
      %v3929 = vpop.f32.mrb[0].mxu0
      %3930 = vdwg.mxu0
      %v3931 = vadd.f32 %v3763, %v3894
      %v3932 = vadd.f32 %v3764, %v3897
      %v3933 = vadd.f32 %v3765, %v3902
      %v3934 = vadd.f32 %v3766, %v3905
      %v3935 = vadd.f32 %v3767, %v3910
      %v3936 = vadd.f32 %v3768, %v3913
      %v3937 = vadd.f32 %v3769, %v3918
      %v3938 = vadd.f32 %v3770, %v3921
      %v3939 = vadd.f32 %v3771, %v3926
      %s3940 = scalar_lea.vmem %s1, 1344
      %v3941 = vld [vmem:[%s3940] sm:$0xf]
      %v3942 = vld [vmem:[%s3940 + $0x4] sm:$0xf]
      %v3943 = vld [vmem:[%s3940 + $0x8] sm:$0xf]
      %v3944 = vld [vmem:[%s3940 + $0xc] sm:$0xf]
      %v3945 = vld [vmem:[%s3940 + $0x10] sm:$0xf]
      %v3946 = vld [vmem:[%s3940 + $0x14] sm:$0xf]
      %v3947 = vld [vmem:[%s3940 + $0x18] sm:$0xf]
      %v3948 = vld [vmem:[%s3940 + $0x1c] sm:$0xf]
      %v3949 = vld [vmem:[%s3940 + $0x20] sm:$0xf]
      %v3950 = vld [vmem:[%s3940 + $0x24] sm:$0xf]
      %v3951 = vld [vmem:[%s3940 + $0x28] sm:$0xf]
      %v3952 = vld [vmem:[%s3940 + $0x2c] sm:$0xf]
      %v3953 = vld [vmem:[%s3940 + $0x30] sm:$0xf]
      %v3954 = vld [vmem:[%s3940 + $0x34] sm:$0xf]
      %v3955 = vld [vmem:[%s3940 + $0x38] sm:$0xf]
      %v3956 = vld [vmem:[%s3940 + $0x3c] sm:$0xf]
      %vm3957 = vsmask.f32 4352
      %v3959 = vshrl.u32 %v3458, 16
      %v3961 = vrot.slane %v3959, 3
      %v3962 = vshll.u32 %v3458, 16
      %v3964 = vrot.slane %v3962, 4
      %v3965 = vor.u32 %v3961, %v3964
      %v3966 = vrot.slane %v805, 3
      %v3967 = vrot.slane %v801, 4
      %v3968 = vor.u32 %v3966, %v3967
      %v3969 = vsel %vm3957, %v3965, %v3968
      %v3970 = vrot.slane %v813, 3
      %v3971 = vrot.slane %v809, 4
      %v3972 = vor.u32 %v3970, %v3971
      %v3973 = vsel %vm3957, %v3968, %v3972
      %v3974 = vrot.slane %v821, 3
      %v3975 = vrot.slane %v817, 4
      %v3976 = vor.u32 %v3974, %v3975
      %v3977 = vsel %vm3957, %v3972, %v3976
      %v3979 = vshrl.u32 %v3459, 16
      %v3981 = vrot.slane %v3979, 3
      %v3982 = vshll.u32 %v3459, 16
      %v3984 = vrot.slane %v3982, 4
      %v3985 = vor.u32 %v3981, %v3984
      %v3986 = vsel %vm3957, %v3976, %v3985
      %v4008 = vunpack.c.l.b16 %v3941
      %v4009 = vunpack.c.l.b16 %v3942
      %v4010 = vunpack.c.l.b16 %v3943
      %v4011 = vunpack.c.l.b16 %v3944
      %v4012 = vunpack.c.l.b16 %v3945
      %v4013 = vunpack.c.l.b16 %v3946
      %v4014 = vunpack.c.l.b16 %v3947
      %v4015 = vunpack.c.l.b16 %v3948
      %v4016 = vunpack.c.l.b16 %v3949
      %v4017 = vunpack.c.l.b16 %v3950
      %v4018 = vunpack.c.l.b16 %v3951
      %v4019 = vunpack.c.l.b16 %v3952
      %v4020 = vunpack.c.l.b16 %v3953
      %v4021 = vunpack.c.l.b16 %v3954
      %v4022 = vunpack.c.l.b16 %v3955
      %v4023 = vunpack.c.l.b16 %v3956
      %v4024 = vpack.c.b16 %v4009, %v4008
      %v4025 = vpack.c.b16 %v4011, %v4010
      %v4026 = vpack.c.b16 %v4013, %v4012
      %v4027 = vpack.c.b16 %v4015, %v4014
      %v4028 = vpack.c.b16 %v4017, %v4016
      %v4029 = vpack.c.b16 %v4019, %v4018
      %v4030 = vpack.c.b16 %v4021, %v4020
      %v4031 = vpack.c.b16 %v4023, %v4022
      %4040 = vmatprep.subr.bf16.mxu0 0
      %4041 = vmatpush1.bf16.msra.mxu0 %v4024
      %4042 = vmatprep.subr.bf16.mxu0 0
      %4043 = vmatpush1.bf16.msra.mxu0 %v4025
      %4044 = vmatprep.subr.bf16.mxu0 0
      %4045 = vmatpush1.bf16.msra.mxu0 %v4026
      %4046 = vmatprep.subr.bf16.mxu0 0
      %4047 = vmatpush1.bf16.msra.mxu0 %v4027
      %4048 = vmatprep.subr.bf16.mxu0 0
      %4049 = vmatpush1.bf16.msra.mxu0 %v4028
      %4050 = vmatprep.subr.bf16.mxu0 0
      %4051 = vmatpush1.bf16.msra.mxu0 %v4029
      %4052 = vmatprep.subr.bf16.mxu0 0
      %4053 = vmatpush1.bf16.msra.mxu0 %v4030
      %4054 = vmatprep.subr.bf16.mxu0 0
      %4055 = vmatpush1.bf16.msra.mxu0 %v4031
      %4056 = vmatprep.subr.bf16.mxu0 0
      %4057 = vmatpush1.bf16.msra.mxu0 0
      %4058 = vmatprep.subr.bf16.mxu0 0
      %4059 = vmatpush1.bf16.msra.mxu0 0
      %4060 = vmatprep.subr.bf16.mxu0 0
      %4061 = vmatpush1.bf16.msra.mxu0 0
      %4062 = vmatprep.subr.bf16.mxu0 0
      %4063 = vmatpush1.bf16.msra.mxu0 0
      %4064 = vmatprep.subr.bf16.mxu0 0
      %4065 = vmatpush1.bf16.msra.mxu0 0
      %4066 = vmatprep.subr.bf16.mxu0 0
      %4067 = vmatpush1.bf16.msra.mxu0 0
      %4068 = vmatprep.subr.bf16.mxu0 0
      %4069 = vmatpush1.bf16.msra.mxu0 0
      %4070 = vmatprep.subr.bf16.mxu0 0
      %4071 = vmatpush1.bf16.msra.mxu0 0
      %4072 = vmatprep.mubr.bf16.mxu0 0
      %4073 = vmatmul.mubr.bf16.gmra.mrb[0].mxu0 %v3969
      %v4074 = vpop.f32.mrb[0].mxu0
      %v4075 = vadd.f32 0.0, %v4074
      %v4076 = vpop.f32.mrb[0].mxu0
      %v4077 = vpop.f32.mrb[0].mxu0
      %v4078 = vadd.f32 0.0, %v4077
      %v4079 = vpop.f32.mrb[0].mxu0
      %4080 = vmatprep.mubr.bf16.mxu0 0
      %4081 = vmatmul.mubr.bf16.gmra.mrb[0].mxu0 %v3973
      %v4082 = vpop.f32.mrb[0].mxu0
      %v4083 = vadd.f32 0.0, %v4082
      %v4084 = vpop.f32.mrb[0].mxu0
      %v4085 = vpop.f32.mrb[0].mxu0
      %v4086 = vadd.f32 0.0, %v4085
      %v4087 = vpop.f32.mrb[0].mxu0
      %4088 = vmatprep.mubr.bf16.mxu0 0
      %4089 = vmatmul.mubr.bf16.gmra.mrb[0].mxu0 %v3977
      %v4090 = vpop.f32.mrb[0].mxu0
      %v4091 = vadd.f32 0.0, %v4090
      %v4092 = vpop.f32.mrb[0].mxu0
      %v4093 = vpop.f32.mrb[0].mxu0
      %v4094 = vadd.f32 0.0, %v4093
      %v4095 = vpop.f32.mrb[0].mxu0
      %4096 = vmatprep.mubr.bf16.mxu0 0
      %4097 = vmatmul.mubr.bf16.gmra.mrb[0].mxu0 %v3986
      %v4098 = vpop.f32.mrb[0].mxu0
      %v4099 = vadd.f32 0.0, %v4098
      %v4100 = vpop.f32.mrb[0].mxu0
      %v4101 = vpop.f32.mrb[0].mxu0
      %v4102 = vadd.f32 0.0, %v4101
      %v4103 = vpop.f32.mrb[0].mxu0
      %4104 = vmatprep.mubr.bf16.mxu0 0
      %4105 = vmatmul.mubr.bf16.gmra.mrb[0].mxu0 %v3981
      %v4106 = vpop.f32.mrb[0].mxu0
      %v4107 = vadd.f32 0.0, %v4106
      %v4108 = vpop.f32.mrb[0].mxu0
      %v4109 = vpop.f32.mrb[0].mxu0
      %v4110 = vpop.f32.mrb[0].mxu0
      %4111 = vdwg.mxu0
      %v4112 = vadd.f32 %v3931, %v4075
      %v4113 = vadd.f32 %v3932, %v4078
      %v4114 = vadd.f32 %v3933, %v4083
      %v4115 = vadd.f32 %v3934, %v4086
      %v4116 = vadd.f32 %v3935, %v4091
      %v4117 = vadd.f32 %v3936, %v4094
      %v4118 = vadd.f32 %v3937, %v4099
      %v4119 = vadd.f32 %v3938, %v4102
      %v4120 = vadd.f32 %v3939, %v4107
      %s4121 = scalar_lea.vmem %s1, 1408
      %v4122 = vld [vmem:[%s4121] sm:$0xf]
      %v4123 = vld [vmem:[%s4121 + $0x4] sm:$0xf]
      %v4124 = vld [vmem:[%s4121 + $0x8] sm:$0xf]
      %v4125 = vld [vmem:[%s4121 + $0xc] sm:$0xf]
      %v4126 = vld [vmem:[%s4121 + $0x10] sm:$0xf]
      %v4127 = vld [vmem:[%s4121 + $0x14] sm:$0xf]
      %v4128 = vld [vmem:[%s4121 + $0x18] sm:$0xf]
      %v4129 = vld [vmem:[%s4121 + $0x1c] sm:$0xf]
      %v4130 = vld [vmem:[%s4121 + $0x20] sm:$0xf]
      %v4131 = vld [vmem:[%s4121 + $0x24] sm:$0xf]
      %v4132 = vld [vmem:[%s4121 + $0x28] sm:$0xf]
      %v4133 = vld [vmem:[%s4121 + $0x2c] sm:$0xf]
      %v4134 = vld [vmem:[%s4121 + $0x30] sm:$0xf]
      %v4135 = vld [vmem:[%s4121 + $0x34] sm:$0xf]
      %v4136 = vld [vmem:[%s4121 + $0x38] sm:$0xf]
      %v4137 = vld [vmem:[%s4121 + $0x3c] sm:$0xf]
      %v4139 = vshrl.u32 %v3627, 16
      %v4141 = vrot.slane %v4139, 3
      %v4142 = vshll.u32 %v3627, 16
      %v4144 = vrot.slane %v4142, 4
      %v4145 = vor.u32 %v4141, %v4144
      %v4146 = vrot.slane %v994, 3
      %v4147 = vrot.slane %v990, 4
      %v4148 = vor.u32 %v4146, %v4147
      %v4149 = vsel %vm3957, %v4145, %v4148
      %v4150 = vrot.slane %v1002, 3
      %v4151 = vrot.slane %v998, 4
      %v4152 = vor.u32 %v4150, %v4151
      %v4153 = vsel %vm3957, %v4148, %v4152
      %v4154 = vrot.slane %v1010, 3
      %v4155 = vrot.slane %v1006, 4
      %v4156 = vor.u32 %v4154, %v4155
      %v4157 = vsel %vm3957, %v4152, %v4156
      %v4159 = vshrl.u32 %v3628, 16
      %v4161 = vrot.slane %v4159, 3
      %v4162 = vshll.u32 %v3628, 16
      %v4164 = vrot.slane %v4162, 4
      %v4165 = vor.u32 %v4161, %v4164
      %v4166 = vsel %vm3957, %v4156, %v4165
      %v4188 = vunpack.c.l.b16 %v4122
      %v4189 = vunpack.c.l.b16 %v4123
      %v4190 = vunpack.c.l.b16 %v4124
      %v4191 = vunpack.c.l.b16 %v4125
      %v4192 = vunpack.c.l.b16 %v4126
      %v4193 = vunpack.c.l.b16 %v4127
      %v4194 = vunpack.c.l.b16 %v4128
      %v4195 = vunpack.c.l.b16 %v4129
      %v4196 = vunpack.c.l.b16 %v4130
      %v4197 = vunpack.c.l.b16 %v4131
      %v4198 = vunpack.c.l.b16 %v4132
      %v4199 = vunpack.c.l.b16 %v4133
      %v4200 = vunpack.c.l.b16 %v4134
      %v4201 = vunpack.c.l.b16 %v4135
      %v4202 = vunpack.c.l.b16 %v4136
      %v4203 = vunpack.c.l.b16 %v4137
      %v4204 = vpack.c.b16 %v4189, %v4188
      %v4205 = vpack.c.b16 %v4191, %v4190
      %v4206 = vpack.c.b16 %v4193, %v4192
      %v4207 = vpack.c.b16 %v4195, %v4194
      %v4208 = vpack.c.b16 %v4197, %v4196
      %v4209 = vpack.c.b16 %v4199, %v4198
      %v4210 = vpack.c.b16 %v4201, %v4200
      %v4211 = vpack.c.b16 %v4203, %v4202
      %4220 = vmatprep.subr.bf16.mxu0 0
      %4221 = vmatpush1.bf16.msra.mxu0 %v4204
      %4222 = vmatprep.subr.bf16.mxu0 0
      %4223 = vmatpush1.bf16.msra.mxu0 %v4205
      %4224 = vmatprep.subr.bf16.mxu0 0
      %4225 = vmatpush1.bf16.msra.mxu0 %v4206
      %4226 = vmatprep.subr.bf16.mxu0 0
      %4227 = vmatpush1.bf16.msra.mxu0 %v4207
      %4228 = vmatprep.subr.bf16.mxu0 0
      %4229 = vmatpush1.bf16.msra.mxu0 %v4208
      %4230 = vmatprep.subr.bf16.mxu0 0
      %4231 = vmatpush1.bf16.msra.mxu0 %v4209
      %4232 = vmatprep.subr.bf16.mxu0 0
      %4233 = vmatpush1.bf16.msra.mxu0 %v4210
      %4234 = vmatprep.subr.bf16.mxu0 0
      %4235 = vmatpush1.bf16.msra.mxu0 %v4211
      %4236 = vmatprep.subr.bf16.mxu0 0
      %4237 = vmatpush1.bf16.msra.mxu0 0
      %4238 = vmatprep.subr.bf16.mxu0 0
      %4239 = vmatpush1.bf16.msra.mxu0 0
      %4240 = vmatprep.subr.bf16.mxu0 0
      %4241 = vmatpush1.bf16.msra.mxu0 0
      %4242 = vmatprep.subr.bf16.mxu0 0
      %4243 = vmatpush1.bf16.msra.mxu0 0
      %4244 = vmatprep.subr.bf16.mxu0 0
      %4245 = vmatpush1.bf16.msra.mxu0 0
      %4246 = vmatprep.subr.bf16.mxu0 0
      %4247 = vmatpush1.bf16.msra.mxu0 0
      %4248 = vmatprep.subr.bf16.mxu0 0
      %4249 = vmatpush1.bf16.msra.mxu0 0
      %4250 = vmatprep.subr.bf16.mxu0 0
      %4251 = vmatpush1.bf16.msra.mxu0 0
      %4252 = vmatprep.mubr.bf16.mxu0 0
      %4253 = vmatmul.mubr.bf16.gmra.mrb[0].mxu0 %v4149
      %v4254 = vpop.f32.mrb[0].mxu0
      %v4255 = vadd.f32 0.0, %v4254
      %v4256 = vpop.f32.mrb[0].mxu0
      %v4257 = vpop.f32.mrb[0].mxu0
      %v4258 = vadd.f32 0.0, %v4257
      %v4259 = vpop.f32.mrb[0].mxu0
      %4260 = vmatprep.mubr.bf16.mxu0 0
      %4261 = vmatmul.mubr.bf16.gmra.mrb[0].mxu0 %v4153
      %v4262 = vpop.f32.mrb[0].mxu0
      %v4263 = vadd.f32 0.0, %v4262
      %v4264 = vpop.f32.mrb[0].mxu0
      %v4265 = vpop.f32.mrb[0].mxu0
      %v4266 = vadd.f32 0.0, %v4265
      %v4267 = vpop.f32.mrb[0].mxu0
      %4268 = vmatprep.mubr.bf16.mxu0 0
      %4269 = vmatmul.mubr.bf16.gmra.mrb[0].mxu0 %v4157
      %v4270 = vpop.f32.mrb[0].mxu0
      %v4271 = vadd.f32 0.0, %v4270
      %v4272 = vpop.f32.mrb[0].mxu0
      %v4273 = vpop.f32.mrb[0].mxu0
      %v4274 = vadd.f32 0.0, %v4273
      %v4275 = vpop.f32.mrb[0].mxu0
      %4276 = vmatprep.mubr.bf16.mxu0 0
      %4277 = vmatmul.mubr.bf16.gmra.mrb[0].mxu0 %v4166
      %v4278 = vpop.f32.mrb[0].mxu0
      %v4279 = vadd.f32 0.0, %v4278
      %v4280 = vpop.f32.mrb[0].mxu0
      %v4281 = vpop.f32.mrb[0].mxu0
      %v4282 = vadd.f32 0.0, %v4281
      %v4283 = vpop.f32.mrb[0].mxu0
      %4284 = vmatprep.mubr.bf16.mxu0 0
      %4285 = vmatmul.mubr.bf16.gmra.mrb[0].mxu0 %v4161
      %v4286 = vpop.f32.mrb[0].mxu0
      %v4287 = vadd.f32 0.0, %v4286
      %v4288 = vpop.f32.mrb[0].mxu0
      %v4289 = vpop.f32.mrb[0].mxu0
      %v4290 = vpop.f32.mrb[0].mxu0
      %4291 = vdwg.mxu0
      %v4292 = vadd.f32 %v4112, %v4255
      %v4293 = vadd.f32 %v4113, %v4258
      %v4294 = vadd.f32 %v4114, %v4263
      %v4295 = vadd.f32 %v4115, %v4266
      %v4296 = vadd.f32 %v4116, %v4271
      %v4297 = vadd.f32 %v4117, %v4274
      %v4298 = vadd.f32 %v4118, %v4279
      %v4299 = vadd.f32 %v4119, %v4282
      %v4300 = vadd.f32 %v4120, %v4287
      %s4301 = scalar_lea.vmem %s1, 1472
      %v4302 = vld [vmem:[%s4301] sm:$0xf]
      %v4303 = vld [vmem:[%s4301 + $0x4] sm:$0xf]
      %v4304 = vld [vmem:[%s4301 + $0x8] sm:$0xf]
      %v4305 = vld [vmem:[%s4301 + $0xc] sm:$0xf]
      %v4306 = vld [vmem:[%s4301 + $0x10] sm:$0xf]
      %v4307 = vld [vmem:[%s4301 + $0x14] sm:$0xf]
      %v4308 = vld [vmem:[%s4301 + $0x18] sm:$0xf]
      %v4309 = vld [vmem:[%s4301 + $0x1c] sm:$0xf]
      %v4310 = vld [vmem:[%s4301 + $0x20] sm:$0xf]
      %v4311 = vld [vmem:[%s4301 + $0x24] sm:$0xf]
      %v4312 = vld [vmem:[%s4301 + $0x28] sm:$0xf]
      %v4313 = vld [vmem:[%s4301 + $0x2c] sm:$0xf]
      %v4314 = vld [vmem:[%s4301 + $0x30] sm:$0xf]
      %v4315 = vld [vmem:[%s4301 + $0x34] sm:$0xf]
      %v4316 = vld [vmem:[%s4301 + $0x38] sm:$0xf]
      %v4317 = vld [vmem:[%s4301 + $0x3c] sm:$0xf]
      %v4319 = vshrl.u32 %v3795, 16
      %v4321 = vrot.slane %v4319, 3
      %v4322 = vshll.u32 %v3795, 16
      %v4324 = vrot.slane %v4322, 4
      %v4325 = vor.u32 %v4321, %v4324
      %v4326 = vrot.slane %v1183, 3
      %v4327 = vrot.slane %v1179, 4
      %v4328 = vor.u32 %v4326, %v4327
      %v4329 = vsel %vm3957, %v4325, %v4328
      %v4330 = vrot.slane %v1191, 3
      %v4331 = vrot.slane %v1187, 4
      %v4332 = vor.u32 %v4330, %v4331
      %v4333 = vsel %vm3957, %v4328, %v4332
      %v4334 = vrot.slane %v1199, 3
      %v4335 = vrot.slane %v1195, 4
      %v4336 = vor.u32 %v4334, %v4335
      %v4337 = vsel %vm3957, %v4332, %v4336
      %v4339 = vshrl.u32 %v3796, 16
      %v4341 = vrot.slane %v4339, 3
      %v4342 = vshll.u32 %v3796, 16
      %v4344 = vrot.slane %v4342, 4
      %v4345 = vor.u32 %v4341, %v4344
      %v4346 = vsel %vm3957, %v4336, %v4345
      %v4368 = vunpack.c.l.b16 %v4302
      %v4369 = vunpack.c.l.b16 %v4303
      %v4370 = vunpack.c.l.b16 %v4304
      %v4371 = vunpack.c.l.b16 %v4305
      %v4372 = vunpack.c.l.b16 %v4306
      %v4373 = vunpack.c.l.b16 %v4307
      %v4374 = vunpack.c.l.b16 %v4308
      %v4375 = vunpack.c.l.b16 %v4309
      %v4376 = vunpack.c.l.b16 %v4310
      %v4377 = vunpack.c.l.b16 %v4311
      %v4378 = vunpack.c.l.b16 %v4312
      %v4379 = vunpack.c.l.b16 %v4313
      %v4380 = vunpack.c.l.b16 %v4314
      %v4381 = vunpack.c.l.b16 %v4315
      %v4382 = vunpack.c.l.b16 %v4316
      %v4383 = vunpack.c.l.b16 %v4317
      %v4384 = vpack.c.b16 %v4369, %v4368
      %v4385 = vpack.c.b16 %v4371, %v4370
      %v4386 = vpack.c.b16 %v4373, %v4372
      %v4387 = vpack.c.b16 %v4375, %v4374
      %v4388 = vpack.c.b16 %v4377, %v4376
      %v4389 = vpack.c.b16 %v4379, %v4378
      %v4390 = vpack.c.b16 %v4381, %v4380
      %v4391 = vpack.c.b16 %v4383, %v4382
      %4400 = vmatprep.subr.bf16.mxu0 0
      %4401 = vmatpush1.bf16.msra.mxu0 %v4384
      %4402 = vmatprep.subr.bf16.mxu0 0
      %4403 = vmatpush1.bf16.msra.mxu0 %v4385
      %4404 = vmatprep.subr.bf16.mxu0 0
      %4405 = vmatpush1.bf16.msra.mxu0 %v4386
      %4406 = vmatprep.subr.bf16.mxu0 0
      %4407 = vmatpush1.bf16.msra.mxu0 %v4387
      %4408 = vmatprep.subr.bf16.mxu0 0
      %4409 = vmatpush1.bf16.msra.mxu0 %v4388
      %4410 = vmatprep.subr.bf16.mxu0 0
      %4411 = vmatpush1.bf16.msra.mxu0 %v4389
      %4412 = vmatprep.subr.bf16.mxu0 0
      %4413 = vmatpush1.bf16.msra.mxu0 %v4390
      %4414 = vmatprep.subr.bf16.mxu0 0
      %4415 = vmatpush1.bf16.msra.mxu0 %v4391
      %4416 = vmatprep.subr.bf16.mxu0 0
      %4417 = vmatpush1.bf16.msra.mxu0 0
      %4418 = vmatprep.subr.bf16.mxu0 0
      %4419 = vmatpush1.bf16.msra.mxu0 0
      %4420 = vmatprep.subr.bf16.mxu0 0
      %4421 = vmatpush1.bf16.msra.mxu0 0
      %4422 = vmatprep.subr.bf16.mxu0 0
      %4423 = vmatpush1.bf16.msra.mxu0 0
      %4424 = vmatprep.subr.bf16.mxu0 0
      %4425 = vmatpush1.bf16.msra.mxu0 0
      %4426 = vmatprep.subr.bf16.mxu0 0
      %4427 = vmatpush1.bf16.msra.mxu0 0
      %4428 = vmatprep.subr.bf16.mxu0 0
      %4429 = vmatpush1.bf16.msra.mxu0 0
      %4430 = vmatprep.subr.bf16.mxu0 0
      %4431 = vmatpush1.bf16.msra.mxu0 0
      %4432 = vmatprep.mubr.bf16.mxu0 0
      %4433 = vmatmul.mubr.bf16.gmra.mrb[0].mxu0 %v4329
      %v4434 = vpop.f32.mrb[0].mxu0
      %v4435 = vadd.f32 0.0, %v4434
      %v4436 = vpop.f32.mrb[0].mxu0
      %v4437 = vpop.f32.mrb[0].mxu0
      %v4438 = vadd.f32 0.0, %v4437
      %v4439 = vpop.f32.mrb[0].mxu0
      %4440 = vmatprep.mubr.bf16.mxu0 0
      %4441 = vmatmul.mubr.bf16.gmra.mrb[0].mxu0 %v4333
      %v4442 = vpop.f32.mrb[0].mxu0
      %v4443 = vadd.f32 0.0, %v4442
      %v4444 = vpop.f32.mrb[0].mxu0
      %v4445 = vpop.f32.mrb[0].mxu0
      %v4446 = vadd.f32 0.0, %v4445
      %v4447 = vpop.f32.mrb[0].mxu0
      %4448 = vmatprep.mubr.bf16.mxu0 0
      %4449 = vmatmul.mubr.bf16.gmra.mrb[0].mxu0 %v4337
      %v4450 = vpop.f32.mrb[0].mxu0
      %v4451 = vadd.f32 0.0, %v4450
      %v4452 = vpop.f32.mrb[0].mxu0
      %v4453 = vpop.f32.mrb[0].mxu0
      %v4454 = vadd.f32 0.0, %v4453
      %v4455 = vpop.f32.mrb[0].mxu0
      %4456 = vmatprep.mubr.bf16.mxu0 0
      %4457 = vmatmul.mubr.bf16.gmra.mrb[0].mxu0 %v4346
      %v4458 = vpop.f32.mrb[0].mxu0
      %v4459 = vadd.f32 0.0, %v4458
      %v4460 = vpop.f32.mrb[0].mxu0
      %v4461 = vpop.f32.mrb[0].mxu0
      %v4462 = vadd.f32 0.0, %v4461
      %v4463 = vpop.f32.mrb[0].mxu0
      %4464 = vmatprep.mubr.bf16.mxu0 0
      %4465 = vmatmul.mubr.bf16.gmra.mrb[0].mxu0 %v4341
      %v4466 = vpop.f32.mrb[0].mxu0
      %v4467 = vadd.f32 0.0, %v4466
      %v4468 = vpop.f32.mrb[0].mxu0
      %v4469 = vpop.f32.mrb[0].mxu0
      %v4470 = vpop.f32.mrb[0].mxu0
      %4471 = vdwg.mxu0
      %v4472 = vadd.f32 %v4292, %v4435
      %v4473 = vadd.f32 %v4293, %v4438
      %v4474 = vadd.f32 %v4294, %v4443
      %v4475 = vadd.f32 %v4295, %v4446
      %v4476 = vadd.f32 %v4296, %v4451
      %v4477 = vadd.f32 %v4297, %v4454
      %v4478 = vadd.f32 %v4298, %v4459
      %v4479 = vadd.f32 %v4299, %v4462
      %v4480 = vadd.f32 %v4300, %v4467
      %v4481 = vld [vmem:[%s230 + $0x4] sm:$0xf]
      %v4482 = vld [vmem:[%s230 + $0x8] sm:$0xf]
      %v4483 = vld [vmem:[%s230 + $0xc] sm:$0xf]
      %v4484 = vld [vmem:[%s230 + $0x10] sm:$0xf]
      %v4485 = vld [vmem:[%s230 + $0x14] sm:$0xf]
      %v4486 = vld [vmem:[%s230 + $0x18] sm:$0xf]
      %v4487 = vld [vmem:[%s230 + $0x1c] sm:$0xf]
      %v4488 = vld [vmem:[%s230 + $0x20] sm:$0xf]
      %v4489 = vld [vmem:[%s230 + $0x24] sm:$0x1]
      %s4490 = scalar_lea.vmem %s1, 1536
      %v4491 = vld [vmem:[%s4490] sm:$0xf]
      %v4492 = vld [vmem:[%s4490 + $0x4] sm:$0xf]
      %v4493 = vld [vmem:[%s4490 + $0x8] sm:$0xf]
      %v4494 = vld [vmem:[%s4490 + $0xc] sm:$0xf]
      %v4495 = vld [vmem:[%s4490 + $0x10] sm:$0xf]
      %v4496 = vld [vmem:[%s4490 + $0x14] sm:$0xf]
      %v4497 = vld [vmem:[%s4490 + $0x18] sm:$0xf]
      %v4498 = vld [vmem:[%s4490 + $0x1c] sm:$0xf]
      %v4499 = vld [vmem:[%s4490 + $0x20] sm:$0xf]
      %v4500 = vld [vmem:[%s4490 + $0x24] sm:$0xf]
      %v4501 = vld [vmem:[%s4490 + $0x28] sm:$0xf]
      %v4502 = vld [vmem:[%s4490 + $0x2c] sm:$0xf]
      %v4503 = vld [vmem:[%s4490 + $0x30] sm:$0xf]
      %v4504 = vld [vmem:[%s4490 + $0x34] sm:$0xf]
      %v4505 = vld [vmem:[%s4490 + $0x38] sm:$0xf]
      %v4506 = vld [vmem:[%s4490 + $0x3c] sm:$0xf]
      %v4516 = vunpack.c.l.b16 %v4481
      %v4517 = vunpack.c.l.b16 %v4482
      %v4518 = vunpack.c.l.b16 %v4483
      %v4519 = vunpack.c.l.b16 %v4484
      %v4520 = vunpack.c.l.b16 %v4485
      %v4521 = vunpack.c.l.b16 %v4486
      %v4522 = vunpack.c.l.b16 %v4487
      %v4523 = vunpack.c.l.b16 %v4488
      %v4524 = vunpack.c.l.b16 %v4489
      %v4525 = vpack.c.b16 %v4517, %v4516
      %v4526 = vpack.c.b16 %v4519, %v4518
      %v4527 = vpack.c.b16 %v4521, %v4520
      %v4528 = vpack.c.b16 %v4523, %v4522
      %v4529 = vpack.c.b16 %v4524, %v4524
      %v4551 = vunpack.c.l.b16 %v4491
      %v4552 = vunpack.c.l.b16 %v4492
      %v4553 = vunpack.c.l.b16 %v4493
      %v4554 = vunpack.c.l.b16 %v4494
      %v4555 = vunpack.c.l.b16 %v4495
      %v4556 = vunpack.c.l.b16 %v4496
      %v4557 = vunpack.c.l.b16 %v4497
      %v4558 = vunpack.c.l.b16 %v4498
      %v4559 = vunpack.c.l.b16 %v4499
      %v4560 = vunpack.c.l.b16 %v4500
      %v4561 = vunpack.c.l.b16 %v4501
      %v4562 = vunpack.c.l.b16 %v4502
      %v4563 = vunpack.c.l.b16 %v4503
      %v4564 = vunpack.c.l.b16 %v4504
      %v4565 = vunpack.c.l.b16 %v4505
      %v4566 = vunpack.c.l.b16 %v4506
      %v4567 = vpack.c.b16 %v4552, %v4551
      %v4568 = vpack.c.b16 %v4554, %v4553
      %v4569 = vpack.c.b16 %v4556, %v4555
      %v4570 = vpack.c.b16 %v4558, %v4557
      %v4571 = vpack.c.b16 %v4560, %v4559
      %v4572 = vpack.c.b16 %v4562, %v4561
      %v4573 = vpack.c.b16 %v4564, %v4563
      %v4574 = vpack.c.b16 %v4566, %v4565
      %4583 = vmatprep.subr.bf16.mxu0 0
      %4584 = vmatpush1.bf16.msra.mxu0 %v4567
      %4585 = vmatprep.subr.bf16.mxu0 0
      %4586 = vmatpush1.bf16.msra.mxu0 %v4568
      %4587 = vmatprep.subr.bf16.mxu0 0
      %4588 = vmatpush1.bf16.msra.mxu0 %v4569
      %4589 = vmatprep.subr.bf16.mxu0 0
      %4590 = vmatpush1.bf16.msra.mxu0 %v4570
      %4591 = vmatprep.subr.bf16.mxu0 0
      %4592 = vmatpush1.bf16.msra.mxu0 %v4571
      %4593 = vmatprep.subr.bf16.mxu0 0
      %4594 = vmatpush1.bf16.msra.mxu0 %v4572
      %4595 = vmatprep.subr.bf16.mxu0 0
      %4596 = vmatpush1.bf16.msra.mxu0 %v4573
      %4597 = vmatprep.subr.bf16.mxu0 0
      %4598 = vmatpush1.bf16.msra.mxu0 %v4574
      %4599 = vmatprep.subr.bf16.mxu0 0
      %4600 = vmatpush1.bf16.msra.mxu0 0
      %4601 = vmatprep.subr.bf16.mxu0 0
      %4602 = vmatpush1.bf16.msra.mxu0 0
      %4603 = vmatprep.subr.bf16.mxu0 0
      %4604 = vmatpush1.bf16.msra.mxu0 0
      %4605 = vmatprep.subr.bf16.mxu0 0
      %4606 = vmatpush1.bf16.msra.mxu0 0
      %4607 = vmatprep.subr.bf16.mxu0 0
      %4608 = vmatpush1.bf16.msra.mxu0 0
      %4609 = vmatprep.subr.bf16.mxu0 0
      %4610 = vmatpush1.bf16.msra.mxu0 0
      %4611 = vmatprep.subr.bf16.mxu0 0
      %4612 = vmatpush1.bf16.msra.mxu0 0
      %4613 = vmatprep.subr.bf16.mxu0 0
      %4614 = vmatpush1.bf16.msra.mxu0 0
      %4615 = vmatprep.mubr.bf16.mxu0 0
      %4616 = vmatmul.mubr.bf16.gmra.mrb[0].mxu0 %v4525
      %v4617 = vpop.f32.mrb[0].mxu0
      %v4618 = vadd.f32 0.0, %v4617
      %v4619 = vpop.f32.mrb[0].mxu0
      %v4620 = vpop.f32.mrb[0].mxu0
      %v4621 = vadd.f32 0.0, %v4620
      %v4622 = vpop.f32.mrb[0].mxu0
      %4623 = vmatprep.mubr.bf16.mxu0 0
      %4624 = vmatmul.mubr.bf16.gmra.mrb[0].mxu0 %v4526
      %v4625 = vpop.f32.mrb[0].mxu0
      %v4626 = vadd.f32 0.0, %v4625
      %v4627 = vpop.f32.mrb[0].mxu0
      %v4628 = vpop.f32.mrb[0].mxu0
      %v4629 = vadd.f32 0.0, %v4628
      %v4630 = vpop.f32.mrb[0].mxu0
      %4631 = vmatprep.mubr.bf16.mxu0 0
      %4632 = vmatmul.mubr.bf16.gmra.mrb[0].mxu0 %v4527
      %v4633 = vpop.f32.mrb[0].mxu0
      %v4634 = vadd.f32 0.0, %v4633
      %v4635 = vpop.f32.mrb[0].mxu0
      %v4636 = vpop.f32.mrb[0].mxu0
      %v4637 = vadd.f32 0.0, %v4636
      %v4638 = vpop.f32.mrb[0].mxu0
      %4639 = vmatprep.mubr.bf16.mxu0 0
      %4640 = vmatmul.mubr.bf16.gmra.mrb[0].mxu0 %v4528
      %v4641 = vpop.f32.mrb[0].mxu0
      %v4642 = vadd.f32 0.0, %v4641
      %v4643 = vpop.f32.mrb[0].mxu0
      %v4644 = vpop.f32.mrb[0].mxu0
      %v4645 = vadd.f32 0.0, %v4644
      %v4646 = vpop.f32.mrb[0].mxu0
      %4647 = vmatprep.mubr.bf16.mxu0 0
      %4648 = vmatmul.mubr.bf16.gmra.mrb[0].mxu0 %v4529
      %v4649 = vpop.f32.mrb[0].mxu0
      %v4650 = vadd.f32 0.0, %v4649
      %v4651 = vpop.f32.mrb[0].mxu0
      %v4652 = vpop.f32.mrb[0].mxu0
      %v4653 = vpop.f32.mrb[0].mxu0
      %4654 = vdwg.mxu0
      %v4655 = vadd.f32 %v4472, %v4618
      %v4656 = vadd.f32 %v4473, %v4621
      %v4657 = vadd.f32 %v4474, %v4626
      %v4658 = vadd.f32 %v4475, %v4629
      %v4659 = vadd.f32 %v4476, %v4634
      %v4660 = vadd.f32 %v4477, %v4637
      %v4661 = vadd.f32 %v4478, %v4642
      %v4662 = vadd.f32 %v4479, %v4645
      %v4663 = vadd.f32 %v4480, %v4650
      %v4664 = vld [vmem:[%s268 + $0x4] sm:$0xf]
      %v4665 = vld [vmem:[%s268 + $0x8] sm:$0xf]
      %v4666 = vld [vmem:[%s268 + $0xc] sm:$0xf]
      %v4667 = vld [vmem:[%s268 + $0x10] sm:$0xf]
      %v4668 = vld [vmem:[%s268 + $0x14] sm:$0xf]
      %v4669 = vld [vmem:[%s268 + $0x18] sm:$0xf]
      %v4670 = vld [vmem:[%s268 + $0x1c] sm:$0xf]
      %v4671 = vld [vmem:[%s268 + $0x20] sm:$0xf]
      %v4672 = vld [vmem:[%s268 + $0x24] sm:$0x1]
      %s4673 = scalar_lea.vmem %s1, 1600
      %v4674 = vld [vmem:[%s4673] sm:$0xf]
      %v4675 = vld [vmem:[%s4673 + $0x4] sm:$0xf]
      %v4676 = vld [vmem:[%s4673 + $0x8] sm:$0xf]
      %v4677 = vld [vmem:[%s4673 + $0xc] sm:$0xf]
      %v4678 = vld [vmem:[%s4673 + $0x10] sm:$0xf]
      %v4679 = vld [vmem:[%s4673 + $0x14] sm:$0xf]
      %v4680 = vld [vmem:[%s4673 + $0x18] sm:$0xf]
      %v4681 = vld [vmem:[%s4673 + $0x1c] sm:$0xf]
      %v4682 = vld [vmem:[%s4673 + $0x20] sm:$0xf]
      %v4683 = vld [vmem:[%s4673 + $0x24] sm:$0xf]
      %v4684 = vld [vmem:[%s4673 + $0x28] sm:$0xf]
      %v4685 = vld [vmem:[%s4673 + $0x2c] sm:$0xf]
      %v4686 = vld [vmem:[%s4673 + $0x30] sm:$0xf]
      %v4687 = vld [vmem:[%s4673 + $0x34] sm:$0xf]
      %v4688 = vld [vmem:[%s4673 + $0x38] sm:$0xf]
      %v4689 = vld [vmem:[%s4673 + $0x3c] sm:$0xf]
      %v4699 = vunpack.c.l.b16 %v4664
      %v4700 = vunpack.c.l.b16 %v4665
      %v4701 = vunpack.c.l.b16 %v4666
      %v4702 = vunpack.c.l.b16 %v4667
      %v4703 = vunpack.c.l.b16 %v4668
      %v4704 = vunpack.c.l.b16 %v4669
      %v4705 = vunpack.c.l.b16 %v4670
      %v4706 = vunpack.c.l.b16 %v4671
      %v4707 = vunpack.c.l.b16 %v4672
      %v4708 = vpack.c.b16 %v4700, %v4699
      %v4709 = vpack.c.b16 %v4702, %v4701
      %v4710 = vpack.c.b16 %v4704, %v4703
      %v4711 = vpack.c.b16 %v4706, %v4705
      %v4712 = vpack.c.b16 %v4707, %v4707
      %v4734 = vunpack.c.l.b16 %v4674
      %v4735 = vunpack.c.l.b16 %v4675
      %v4736 = vunpack.c.l.b16 %v4676
      %v4737 = vunpack.c.l.b16 %v4677
      %v4738 = vunpack.c.l.b16 %v4678
      %v4739 = vunpack.c.l.b16 %v4679
      %v4740 = vunpack.c.l.b16 %v4680
      %v4741 = vunpack.c.l.b16 %v4681
      %v4742 = vunpack.c.l.b16 %v4682
      %v4743 = vunpack.c.l.b16 %v4683
      %v4744 = vunpack.c.l.b16 %v4684
      %v4745 = vunpack.c.l.b16 %v4685
      %v4746 = vunpack.c.l.b16 %v4686
      %v4747 = vunpack.c.l.b16 %v4687
      %v4748 = vunpack.c.l.b16 %v4688
      %v4749 = vunpack.c.l.b16 %v4689
      %v4750 = vpack.c.b16 %v4735, %v4734
      %v4751 = vpack.c.b16 %v4737, %v4736
      %v4752 = vpack.c.b16 %v4739, %v4738
      %v4753 = vpack.c.b16 %v4741, %v4740
      %v4754 = vpack.c.b16 %v4743, %v4742
      %v4755 = vpack.c.b16 %v4745, %v4744
      %v4756 = vpack.c.b16 %v4747, %v4746
      %v4757 = vpack.c.b16 %v4749, %v4748
      %4766 = vmatprep.subr.bf16.mxu0 0
      %4767 = vmatpush1.bf16.msra.mxu0 %v4750
      %4768 = vmatprep.subr.bf16.mxu0 0
      %4769 = vmatpush1.bf16.msra.mxu0 %v4751
      %4770 = vmatprep.subr.bf16.mxu0 0
      %4771 = vmatpush1.bf16.msra.mxu0 %v4752
      %4772 = vmatprep.subr.bf16.mxu0 0
      %4773 = vmatpush1.bf16.msra.mxu0 %v4753
      %4774 = vmatprep.subr.bf16.mxu0 0
      %4775 = vmatpush1.bf16.msra.mxu0 %v4754
      %4776 = vmatprep.subr.bf16.mxu0 0
      %4777 = vmatpush1.bf16.msra.mxu0 %v4755
      %4778 = vmatprep.subr.bf16.mxu0 0
      %4779 = vmatpush1.bf16.msra.mxu0 %v4756
      %4780 = vmatprep.subr.bf16.mxu0 0
      %4781 = vmatpush1.bf16.msra.mxu0 %v4757
      %4782 = vmatprep.subr.bf16.mxu0 0
      %4783 = vmatpush1.bf16.msra.mxu0 0
      %4784 = vmatprep.subr.bf16.mxu0 0
      %4785 = vmatpush1.bf16.msra.mxu0 0
      %4786 = vmatprep.subr.bf16.mxu0 0
      %4787 = vmatpush1.bf16.msra.mxu0 0
      %4788 = vmatprep.subr.bf16.mxu0 0
      %4789 = vmatpush1.bf16.msra.mxu0 0
      %4790 = vmatprep.subr.bf16.mxu0 0
      %4791 = vmatpush1.bf16.msra.mxu0 0
      %4792 = vmatprep.subr.bf16.mxu0 0
      %4793 = vmatpush1.bf16.msra.mxu0 0
      %4794 = vmatprep.subr.bf16.mxu0 0
      %4795 = vmatpush1.bf16.msra.mxu0 0
      %4796 = vmatprep.subr.bf16.mxu0 0
      %4797 = vmatpush1.bf16.msra.mxu0 0
      %4798 = vmatprep.mubr.bf16.mxu0 0
      %4799 = vmatmul.mubr.bf16.gmra.mrb[0].mxu0 %v4708
      %v4800 = vpop.f32.mrb[0].mxu0
      %v4801 = vadd.f32 0.0, %v4800
      %v4802 = vpop.f32.mrb[0].mxu0
      %v4803 = vpop.f32.mrb[0].mxu0
      %v4804 = vadd.f32 0.0, %v4803
      %v4805 = vpop.f32.mrb[0].mxu0
      %4806 = vmatprep.mubr.bf16.mxu0 0
      %4807 = vmatmul.mubr.bf16.gmra.mrb[0].mxu0 %v4709
      %v4808 = vpop.f32.mrb[0].mxu0
      %v4809 = vadd.f32 0.0, %v4808
      %v4810 = vpop.f32.mrb[0].mxu0
      %v4811 = vpop.f32.mrb[0].mxu0
      %v4812 = vadd.f32 0.0, %v4811
      %v4813 = vpop.f32.mrb[0].mxu0
      %4814 = vmatprep.mubr.bf16.mxu0 0
      %4815 = vmatmul.mubr.bf16.gmra.mrb[0].mxu0 %v4710
      %v4816 = vpop.f32.mrb[0].mxu0
      %v4817 = vadd.f32 0.0, %v4816
      %v4818 = vpop.f32.mrb[0].mxu0
      %v4819 = vpop.f32.mrb[0].mxu0
      %v4820 = vadd.f32 0.0, %v4819
      %v4821 = vpop.f32.mrb[0].mxu0
      %4822 = vmatprep.mubr.bf16.mxu0 0
      %4823 = vmatmul.mubr.bf16.gmra.mrb[0].mxu0 %v4711
      %v4824 = vpop.f32.mrb[0].mxu0
      %v4825 = vadd.f32 0.0, %v4824
      %v4826 = vpop.f32.mrb[0].mxu0
      %v4827 = vpop.f32.mrb[0].mxu0
      %v4828 = vadd.f32 0.0, %v4827
      %v4829 = vpop.f32.mrb[0].mxu0
      %4830 = vmatprep.mubr.bf16.mxu0 0
      %4831 = vmatmul.mubr.bf16.gmra.mrb[0].mxu0 %v4712
      %v4832 = vpop.f32.mrb[0].mxu0
      %v4833 = vadd.f32 0.0, %v4832
      %v4834 = vpop.f32.mrb[0].mxu0
      %v4835 = vpop.f32.mrb[0].mxu0
      %v4836 = vpop.f32.mrb[0].mxu0
      %4837 = vdwg.mxu0
      %v4838 = vadd.f32 %v4655, %v4801
      %v4839 = vadd.f32 %v4656, %v4804
      %v4840 = vadd.f32 %v4657, %v4809
      %v4841 = vadd.f32 %v4658, %v4812
      %v4842 = vadd.f32 %v4659, %v4817
      %v4843 = vadd.f32 %v4660, %v4820
      %v4844 = vadd.f32 %v4661, %v4825
      %v4845 = vadd.f32 %v4662, %v4828
      %v4846 = vadd.f32 %v4663, %v4833
      %v4847 = vld [vmem:[%s591 + $0x4] sm:$0xf]
      %v4848 = vld [vmem:[%s591 + $0x8] sm:$0xf]
      %v4849 = vld [vmem:[%s591 + $0xc] sm:$0xf]
      %v4850 = vld [vmem:[%s591 + $0x10] sm:$0xf]
      %v4851 = vld [vmem:[%s591 + $0x14] sm:$0xf]
      %v4852 = vld [vmem:[%s591 + $0x18] sm:$0xf]
      %v4853 = vld [vmem:[%s591 + $0x1c] sm:$0xf]
      %v4854 = vld [vmem:[%s591 + $0x20] sm:$0xf]
      %v4855 = vld [vmem:[%s591 + $0x24] sm:$0x1]
      %s4856 = scalar_lea.vmem %s1, 1664
      %v4857 = vld [vmem:[%s4856] sm:$0xf]
      %v4858 = vld [vmem:[%s4856 + $0x4] sm:$0xf]
      %v4859 = vld [vmem:[%s4856 + $0x8] sm:$0xf]
      %v4860 = vld [vmem:[%s4856 + $0xc] sm:$0xf]
      %v4861 = vld [vmem:[%s4856 + $0x10] sm:$0xf]
      %v4862 = vld [vmem:[%s4856 + $0x14] sm:$0xf]
      %v4863 = vld [vmem:[%s4856 + $0x18] sm:$0xf]
      %v4864 = vld [vmem:[%s4856 + $0x1c] sm:$0xf]
      %v4865 = vld [vmem:[%s4856 + $0x20] sm:$0xf]
      %v4866 = vld [vmem:[%s4856 + $0x24] sm:$0xf]
      %v4867 = vld [vmem:[%s4856 + $0x28] sm:$0xf]
      %v4868 = vld [vmem:[%s4856 + $0x2c] sm:$0xf]
      %v4869 = vld [vmem:[%s4856 + $0x30] sm:$0xf]
      %v4870 = vld [vmem:[%s4856 + $0x34] sm:$0xf]
      %v4871 = vld [vmem:[%s4856 + $0x38] sm:$0xf]
      %v4872 = vld [vmem:[%s4856 + $0x3c] sm:$0xf]
      %v4882 = vunpack.c.l.b16 %v4847
      %v4883 = vunpack.c.l.b16 %v4848
      %v4884 = vunpack.c.l.b16 %v4849
      %v4885 = vunpack.c.l.b16 %v4850
      %v4886 = vunpack.c.l.b16 %v4851
      %v4887 = vunpack.c.l.b16 %v4852
      %v4888 = vunpack.c.l.b16 %v4853
      %v4889 = vunpack.c.l.b16 %v4854
      %v4890 = vunpack.c.l.b16 %v4855
      %v4891 = vpack.c.b16 %v4883, %v4882
      %v4892 = vpack.c.b16 %v4885, %v4884
      %v4893 = vpack.c.b16 %v4887, %v4886
      %v4894 = vpack.c.b16 %v4889, %v4888
      %v4895 = vpack.c.b16 %v4890, %v4890
      %v4917 = vunpack.c.l.b16 %v4857
      %v4918 = vunpack.c.l.b16 %v4858
      %v4919 = vunpack.c.l.b16 %v4859
      %v4920 = vunpack.c.l.b16 %v4860
      %v4921 = vunpack.c.l.b16 %v4861
      %v4922 = vunpack.c.l.b16 %v4862
      %v4923 = vunpack.c.l.b16 %v4863
      %v4924 = vunpack.c.l.b16 %v4864
      %v4925 = vunpack.c.l.b16 %v4865
      %v4926 = vunpack.c.l.b16 %v4866
      %v4927 = vunpack.c.l.b16 %v4867
      %v4928 = vunpack.c.l.b16 %v4868
      %v4929 = vunpack.c.l.b16 %v4869
      %v4930 = vunpack.c.l.b16 %v4870
      %v4931 = vunpack.c.l.b16 %v4871
      %v4932 = vunpack.c.l.b16 %v4872
      %v4933 = vpack.c.b16 %v4918, %v4917
      %v4934 = vpack.c.b16 %v4920, %v4919
      %v4935 = vpack.c.b16 %v4922, %v4921
      %v4936 = vpack.c.b16 %v4924, %v4923
      %v4937 = vpack.c.b16 %v4926, %v4925
      %v4938 = vpack.c.b16 %v4928, %v4927
      %v4939 = vpack.c.b16 %v4930, %v4929
      %v4940 = vpack.c.b16 %v4932, %v4931
      %4949 = vmatprep.subr.bf16.mxu0 0
      %4950 = vmatpush1.bf16.msra.mxu0 %v4933
      %4951 = vmatprep.subr.bf16.mxu0 0
      %4952 = vmatpush1.bf16.msra.mxu0 %v4934
      %4953 = vmatprep.subr.bf16.mxu0 0
      %4954 = vmatpush1.bf16.msra.mxu0 %v4935
      %4955 = vmatprep.subr.bf16.mxu0 0
      %4956 = vmatpush1.bf16.msra.mxu0 %v4936
      %4957 = vmatprep.subr.bf16.mxu0 0
      %4958 = vmatpush1.bf16.msra.mxu0 %v4937
      %4959 = vmatprep.subr.bf16.mxu0 0
      %4960 = vmatpush1.bf16.msra.mxu0 %v4938
      %4961 = vmatprep.subr.bf16.mxu0 0
      %4962 = vmatpush1.bf16.msra.mxu0 %v4939
      %4963 = vmatprep.subr.bf16.mxu0 0
      %4964 = vmatpush1.bf16.msra.mxu0 %v4940
      %4965 = vmatprep.subr.bf16.mxu0 0
      %4966 = vmatpush1.bf16.msra.mxu0 0
      %4967 = vmatprep.subr.bf16.mxu0 0
      %4968 = vmatpush1.bf16.msra.mxu0 0
      %4969 = vmatprep.subr.bf16.mxu0 0
      %4970 = vmatpush1.bf16.msra.mxu0 0
      %4971 = vmatprep.subr.bf16.mxu0 0
      %4972 = vmatpush1.bf16.msra.mxu0 0
      %4973 = vmatprep.subr.bf16.mxu0 0
      %4974 = vmatpush1.bf16.msra.mxu0 0
      %4975 = vmatprep.subr.bf16.mxu0 0
      %4976 = vmatpush1.bf16.msra.mxu0 0
      %4977 = vmatprep.subr.bf16.mxu0 0
      %4978 = vmatpush1.bf16.msra.mxu0 0
      %4979 = vmatprep.subr.bf16.mxu0 0
      %4980 = vmatpush1.bf16.msra.mxu0 0
      %4981 = vmatprep.mubr.bf16.mxu0 0
      %4982 = vmatmul.mubr.bf16.gmra.mrb[0].mxu0 %v4891
      %v4983 = vpop.f32.mrb[0].mxu0
      %v4984 = vadd.f32 0.0, %v4983
      %v4985 = vpop.f32.mrb[0].mxu0
      %v4986 = vpop.f32.mrb[0].mxu0
      %v4987 = vadd.f32 0.0, %v4986
      %v4988 = vpop.f32.mrb[0].mxu0
      %4989 = vmatprep.mubr.bf16.mxu0 0
      %4990 = vmatmul.mubr.bf16.gmra.mrb[0].mxu0 %v4892
      %v4991 = vpop.f32.mrb[0].mxu0
      %v4992 = vadd.f32 0.0, %v4991
      %v4993 = vpop.f32.mrb[0].mxu0
      %v4994 = vpop.f32.mrb[0].mxu0
      %v4995 = vadd.f32 0.0, %v4994
      %v4996 = vpop.f32.mrb[0].mxu0
      %4997 = vmatprep.mubr.bf16.mxu0 0
      %4998 = vmatmul.mubr.bf16.gmra.mrb[0].mxu0 %v4893
      %v4999 = vpop.f32.mrb[0].mxu0
      %v5000 = vadd.f32 0.0, %v4999
      %v5001 = vpop.f32.mrb[0].mxu0
      %v5002 = vpop.f32.mrb[0].mxu0
      %v5003 = vadd.f32 0.0, %v5002
      %v5004 = vpop.f32.mrb[0].mxu0
      %5005 = vmatprep.mubr.bf16.mxu0 0
      %5006 = vmatmul.mubr.bf16.gmra.mrb[0].mxu0 %v4894
      %v5007 = vpop.f32.mrb[0].mxu0
      %v5008 = vadd.f32 0.0, %v5007
      %v5009 = vpop.f32.mrb[0].mxu0
      %v5010 = vpop.f32.mrb[0].mxu0
      %v5011 = vadd.f32 0.0, %v5010
      %v5012 = vpop.f32.mrb[0].mxu0
      %5013 = vmatprep.mubr.bf16.mxu0 0
      %5014 = vmatmul.mubr.bf16.gmra.mrb[0].mxu0 %v4895
      %v5015 = vpop.f32.mrb[0].mxu0
      %v5016 = vadd.f32 0.0, %v5015
      %v5017 = vpop.f32.mrb[0].mxu0
      %v5018 = vpop.f32.mrb[0].mxu0
      %v5019 = vpop.f32.mrb[0].mxu0
      %5020 = vdwg.mxu0
      %v5021 = vadd.f32 %v4838, %v4984
      %v5022 = vadd.f32 %v4839, %v4987
      %v5023 = vadd.f32 %v4840, %v4992
      %v5024 = vadd.f32 %v4841, %v4995
      %v5025 = vadd.f32 %v4842, %v5000
      %v5026 = vadd.f32 %v4843, %v5003
      %v5027 = vadd.f32 %v4844, %v5008
      %v5028 = vadd.f32 %v4845, %v5011
      %v5029 = vadd.f32 %v4846, %v5016
      %s5030 = scalar_lea.vmem %s1, 1728
      %v5031 = vld [vmem:[%s5030] sm:$0xf]
      %v5032 = vld [vmem:[%s5030 + $0x4] sm:$0xf]
      %v5033 = vld [vmem:[%s5030 + $0x8] sm:$0xf]
      %v5034 = vld [vmem:[%s5030 + $0xc] sm:$0xf]
      %v5035 = vld [vmem:[%s5030 + $0x10] sm:$0xf]
      %v5036 = vld [vmem:[%s5030 + $0x14] sm:$0xf]
      %v5037 = vld [vmem:[%s5030 + $0x18] sm:$0xf]
      %v5038 = vld [vmem:[%s5030 + $0x1c] sm:$0xf]
      %v5039 = vld [vmem:[%s5030 + $0x20] sm:$0xf]
      %v5040 = vld [vmem:[%s5030 + $0x24] sm:$0xf]
      %v5041 = vld [vmem:[%s5030 + $0x28] sm:$0xf]
      %v5042 = vld [vmem:[%s5030 + $0x2c] sm:$0xf]
      %v5043 = vld [vmem:[%s5030 + $0x30] sm:$0xf]
      %v5044 = vld [vmem:[%s5030 + $0x34] sm:$0xf]
      %v5045 = vld [vmem:[%s5030 + $0x38] sm:$0xf]
      %v5046 = vld [vmem:[%s5030 + $0x3c] sm:$0xf]
      %v5048 = vshrl.u32 %v4525, 16
      %v5050 = vshll.u32 %v4525, 16
      %v5052 = vrot.slane %v5050, 1
      %v5053 = vor.u32 %v5048, %v5052
      %v5055 = vshll.u32 %v4526, 16
      %v5057 = vrot.slane %v5055, 1
      %v5058 = vsel %vm792, %v5053, %v5057
      %v5059 = vshrl.u32 %v4526, 16
      %v5061 = vor.u32 %v5059, %v5057
      %v5063 = vshll.u32 %v4527, 16
      %v5065 = vrot.slane %v5063, 1
      %v5066 = vsel %vm792, %v5061, %v5065
      %v5067 = vshrl.u32 %v4527, 16
      %v5069 = vor.u32 %v5067, %v5065
      %v5071 = vshll.u32 %v4528, 16
      %v5073 = vrot.slane %v5071, 1
      %v5074 = vsel %vm792, %v5069, %v5073
      %v5075 = vshrl.u32 %v4528, 16
      %v5077 = vor.u32 %v5075, %v5073
      %v5079 = vshll.u32 %v4529, 16
      %v5081 = vrot.slane %v5079, 1
      %v5082 = vsel %vm792, %v5077, %v5081
      %v5083 = vshrl.u32 %v4529, 16
      %v5106 = vunpack.c.l.b16 %v5031
      %v5107 = vunpack.c.l.b16 %v5032
      %v5108 = vunpack.c.l.b16 %v5033
      %v5109 = vunpack.c.l.b16 %v5034
      %v5110 = vunpack.c.l.b16 %v5035
      %v5111 = vunpack.c.l.b16 %v5036
      %v5112 = vunpack.c.l.b16 %v5037
      %v5113 = vunpack.c.l.b16 %v5038
      %v5114 = vunpack.c.l.b16 %v5039
      %v5115 = vunpack.c.l.b16 %v5040
      %v5116 = vunpack.c.l.b16 %v5041
      %v5117 = vunpack.c.l.b16 %v5042
      %v5118 = vunpack.c.l.b16 %v5043
      %v5119 = vunpack.c.l.b16 %v5044
      %v5120 = vunpack.c.l.b16 %v5045
      %v5121 = vunpack.c.l.b16 %v5046
      %v5122 = vpack.c.b16 %v5107, %v5106
      %v5123 = vpack.c.b16 %v5109, %v5108
      %v5124 = vpack.c.b16 %v5111, %v5110
      %v5125 = vpack.c.b16 %v5113, %v5112
      %v5126 = vpack.c.b16 %v5115, %v5114
      %v5127 = vpack.c.b16 %v5117, %v5116
      %v5128 = vpack.c.b16 %v5119, %v5118
      %v5129 = vpack.c.b16 %v5121, %v5120
      %5138 = vmatprep.subr.bf16.mxu0 0
      %5139 = vmatpush1.bf16.msra.mxu0 %v5122
      %5140 = vmatprep.subr.bf16.mxu0 0
      %5141 = vmatpush1.bf16.msra.mxu0 %v5123
      %5142 = vmatprep.subr.bf16.mxu0 0
      %5143 = vmatpush1.bf16.msra.mxu0 %v5124
      %5144 = vmatprep.subr.bf16.mxu0 0
      %5145 = vmatpush1.bf16.msra.mxu0 %v5125
      %5146 = vmatprep.subr.bf16.mxu0 0
      %5147 = vmatpush1.bf16.msra.mxu0 %v5126
      %5148 = vmatprep.subr.bf16.mxu0 0
      %5149 = vmatpush1.bf16.msra.mxu0 %v5127
      %5150 = vmatprep.subr.bf16.mxu0 0
      %5151 = vmatpush1.bf16.msra.mxu0 %v5128
      %5152 = vmatprep.subr.bf16.mxu0 0
      %5153 = vmatpush1.bf16.msra.mxu0 %v5129
      %5154 = vmatprep.subr.bf16.mxu0 0
      %5155 = vmatpush1.bf16.msra.mxu0 0
      %5156 = vmatprep.subr.bf16.mxu0 0
      %5157 = vmatpush1.bf16.msra.mxu0 0
      %5158 = vmatprep.subr.bf16.mxu0 0
      %5159 = vmatpush1.bf16.msra.mxu0 0
      %5160 = vmatprep.subr.bf16.mxu0 0
      %5161 = vmatpush1.bf16.msra.mxu0 0
      %5162 = vmatprep.subr.bf16.mxu0 0
      %5163 = vmatpush1.bf16.msra.mxu0 0
      %5164 = vmatprep.subr.bf16.mxu0 0
      %5165 = vmatpush1.bf16.msra.mxu0 0
      %5166 = vmatprep.subr.bf16.mxu0 0
      %5167 = vmatpush1.bf16.msra.mxu0 0
      %5168 = vmatprep.subr.bf16.mxu0 0
      %5169 = vmatpush1.bf16.msra.mxu0 0
      %5170 = vmatprep.mubr.bf16.mxu0 0
      %5171 = vmatmul.mubr.bf16.gmra.mrb[0].mxu0 %v5058
      %v5172 = vpop.f32.mrb[0].mxu0
      %v5173 = vadd.f32 0.0, %v5172
      %v5174 = vpop.f32.mrb[0].mxu0
      %v5175 = vpop.f32.mrb[0].mxu0
      %v5176 = vadd.f32 0.0, %v5175
      %v5177 = vpop.f32.mrb[0].mxu0
      %5178 = vmatprep.mubr.bf16.mxu0 0
      %5179 = vmatmul.mubr.bf16.gmra.mrb[0].mxu0 %v5066
      %v5180 = vpop.f32.mrb[0].mxu0
      %v5181 = vadd.f32 0.0, %v5180
      %v5182 = vpop.f32.mrb[0].mxu0
      %v5183 = vpop.f32.mrb[0].mxu0
      %v5184 = vadd.f32 0.0, %v5183
      %v5185 = vpop.f32.mrb[0].mxu0
      %5186 = vmatprep.mubr.bf16.mxu0 0
      %5187 = vmatmul.mubr.bf16.gmra.mrb[0].mxu0 %v5074
      %v5188 = vpop.f32.mrb[0].mxu0
      %v5189 = vadd.f32 0.0, %v5188
      %v5190 = vpop.f32.mrb[0].mxu0
      %v5191 = vpop.f32.mrb[0].mxu0
      %v5192 = vadd.f32 0.0, %v5191
      %v5193 = vpop.f32.mrb[0].mxu0
      %5194 = vmatprep.mubr.bf16.mxu0 0
      %5195 = vmatmul.mubr.bf16.gmra.mrb[0].mxu0 %v5082
      %v5196 = vpop.f32.mrb[0].mxu0
      %v5197 = vadd.f32 0.0, %v5196
      %v5198 = vpop.f32.mrb[0].mxu0
      %v5199 = vpop.f32.mrb[0].mxu0
      %v5200 = vadd.f32 0.0, %v5199
      %v5201 = vpop.f32.mrb[0].mxu0
      %5202 = vmatprep.mubr.bf16.mxu0 0
      %5203 = vmatmul.mubr.bf16.gmra.mrb[0].mxu0 %v5083
      %v5204 = vpop.f32.mrb[0].mxu0
      %v5205 = vadd.f32 0.0, %v5204
      %v5206 = vpop.f32.mrb[0].mxu0
      %v5207 = vpop.f32.mrb[0].mxu0
      %v5208 = vpop.f32.mrb[0].mxu0
      %5209 = vdwg.mxu0
      %v5210 = vadd.f32 %v5021, %v5173
      %v5211 = vadd.f32 %v5022, %v5176
      %v5212 = vadd.f32 %v5023, %v5181
      %v5213 = vadd.f32 %v5024, %v5184
      %v5214 = vadd.f32 %v5025, %v5189
      %v5215 = vadd.f32 %v5026, %v5192
      %v5216 = vadd.f32 %v5027, %v5197
      %v5217 = vadd.f32 %v5028, %v5200
      %v5218 = vadd.f32 %v5029, %v5205
      %v5219 = vld [vmem:[%s2] sm:$0x1]
      %v5221 = vlaneseq
      %v5222 = vshrl.u32 %v5221, 7
      %v5223 = vsub.s32 0, %v5222
      %v5224 = vrot.slane %v5219, %v5223
      %v5226 = vadd.f32 %v5210, %v5224
      %v5227 = vadd.f32 %v5211, %v5224
      %v5228 = vadd.f32 %v5212, %v5224
      %v5229 = vadd.f32 %v5213, %v5224
      %v5230 = vadd.f32 %v5214, %v5224
      %v5231 = vadd.f32 %v5215, %v5224
      %v5232 = vadd.f32 %v5216, %v5224
      %v5233 = vadd.f32 %v5217, %v5224
      %v5234 = vadd.f32 %v5218, %v5224
      %5235 = vst [vmem:[%s235] sm:$0xff] %v5226
      %5236 = vst [vmem:[%s235 + $0x8] sm:$0xff] %v5227
      %5237 = vst [vmem:[%s235 + $0x10] sm:$0xff] %v5228
      %5238 = vst [vmem:[%s235 + $0x18] sm:$0xff] %v5229
      %5239 = vst [vmem:[%s235 + $0x20] sm:$0xff] %v5230
      %5240 = vst [vmem:[%s235 + $0x28] sm:$0xff] %v5231
      %5241 = vst [vmem:[%s235 + $0x30] sm:$0xff] %v5232
      %5242 = vst [vmem:[%s235 + $0x38] sm:$0xff] %v5233
      %5243 = vst [vmem:[%s235 + $0x40] sm:$0x1] %v5234
      %v5244 = vadd.f32 %v5226, %v5227
      %v5245 = vadd.f32 %v5244, %v5228
      %v5246 = vadd.f32 %v5245, %v5229
      %v5247 = vadd.f32 %v5246, %v5230
      %v5248 = vadd.f32 %v5247, %v5231
      %v5249 = vadd.f32 %v5248, %v5232
      %v5250 = vadd.f32 %v5249, %v5233
      %vm5251 = vcmask 1040384
      %v5252 = vsel %vm5251, %v5234, 0.0
      %v5253 = vadd.f32 %v5250, %v5252
      %v5254 = vrot.slane %v5253, 4
      %v5255 = vadd.f32 %v5253, %v5254
      %v5256 = vrot.slane %v5255, 2
      %v5257 = vadd.f32 %v5255, %v5256
      %v5258 = vrot.slane %v5257, 1
      %v5259 = vadd.f32 %v5257, %v5258
      %5260 = vst [vmem:[%s238] sm:$0x1] %v5259
      %v5261 = vmul.f32 %v5226, %v5226
      %v5262 = vmul.f32 %v5227, %v5227
      %v5263 = vmul.f32 %v5228, %v5228
      %v5264 = vmul.f32 %v5229, %v5229
      %v5265 = vmul.f32 %v5230, %v5230
      %v5266 = vmul.f32 %v5231, %v5231
      %v5267 = vmul.f32 %v5232, %v5232
      %v5268 = vmul.f32 %v5233, %v5233
      %v5269 = vmul.f32 %v5234, %v5234
      %v5270 = vadd.f32 %v5261, %v5262
      %v5271 = vadd.f32 %v5270, %v5263
      %v5272 = vadd.f32 %v5271, %v5264
      %v5273 = vadd.f32 %v5272, %v5265
      %v5274 = vadd.f32 %v5273, %v5266
      %v5275 = vadd.f32 %v5274, %v5267
      %v5276 = vadd.f32 %v5275, %v5268
      %v5277 = vsel %vm5251, %v5269, 0.0
      %v5278 = vadd.f32 %v5276, %v5277
      %v5279 = vrot.slane %v5278, 4
      %v5280 = vadd.f32 %v5278, %v5279
      %v5281 = vrot.slane %v5280, 2
      %v5282 = vadd.f32 %v5280, %v5281
      %v5283 = vrot.slane %v5282, 1
      %v5284 = vadd.f32 %v5282, %v5283
      %5285 = vst [vmem:[%s241] sm:$0x1] %v5284
      %p5286 = scmp.lt.s32.totalorder %s17, 1
      %s5287 = scalar_select %p5286, %s17, 1
      %s5288 = smul.addr %s5287, 9
      %s5289 = smul.addr %s5288, 8
      %s5290 = scalar_lea.vmem %s3, %s5289
      %p5291 = scmp.lt.s32.totalorder %s17, 1
      %s5292 = scalar_select %p5291, %s17, 1
      %s5293 = scalar_lea.vmem %s4, %s5292
      %p5294 = scmp.lt.s32.totalorder %s17, 1
      %s5295 = scalar_select %p5294, %s17, 1
      %s5296 = scalar_lea.vmem %s5, %s5295
      // Predicated region
      $region33: #{latent_model_forward.2} parent=31 // pred_check
        %p5297 = pneg %p103
      $region34: #{latent_model_forward.2} parent=31 // pred_check_branch
        %5299 = sbr.rel (%p5297) target = $region36
      $region35: #{latent_model_forward.2} parent=31 // pred_region
        _
      $region36: #{latent_model_forward.2} parent=31 // pred_fallthru
        _
      // Predicated region
      $region37: #{latent_model_forward.2} parent=31 // pred_check
        %p5300 = pneg %p129
      $region38: #{latent_model_forward.2} parent=31 // pred_check_branch
        %5302 = sbr.rel (%p5300) target = $region40
      $region39: #{latent_model_forward.2} parent=31 // pred_region
        _
      $region40: #{latent_model_forward.2} parent=31 // pred_fallthru
        _
      // Predicated region
      $region41: #{latent_model_forward.2} parent=31 // pred_check
        %p5303 = pneg %p155
      $region42: #{latent_model_forward.2} parent=31 // pred_check_branch
        %5305 = sbr.rel (%p5303) target = $region44
      $region43: #{latent_model_forward.2} parent=31 // pred_region
        _
      $region44: #{latent_model_forward.2} parent=31 // pred_fallthru
        _
    $region32: #{latent_model_forward.2} parent=5 // pred_fallthru
      _
    %p5306 = scmp.le.s32.totalorder 2, %s12
    // Predicated region
    $region45: #{latent_model_forward.2} parent=5 // pred_check
      %p5307 = pneg %p5306
    $region46: #{latent_model_forward.2} parent=5 // pred_check_branch
      %5309 = sbr.rel (%p5307) target = $region48
    $region47: #{latent_model_forward.2} parent=5 // pred_region
      %s5310 = ssub.s32 %s12, 2
      // Predicated region
      $region49: #{latent_model_forward.2} parent=47 // pred_check
        %p5311 = pneg %p109
      $region50: #{latent_model_forward.2} parent=47 // pred_check_branch
        %5313 = sbr.rel (%p5311) target = $region52
      $region51: #{latent_model_forward.2} parent=47 // pred_region
        %p5314 = scmp.lt.s32.totalorder %s18, 1
        %s5315 = scalar_select %p5314, %s18, 1
        %s5316 = smul.addr %s5315, 9
        %s5317 = smul.addr %s5316, 8
        %s5318 = scalar_lea.vmem %s3, %s5317
      $region52: #{latent_model_forward.2} parent=47 // pred_fallthru
        _
      // Predicated region
      $region53: #{latent_model_forward.2} parent=47 // pred_check
        %p5319 = pneg %p135
      $region54: #{latent_model_forward.2} parent=47 // pred_check_branch
        %5321 = sbr.rel (%p5319) target = $region56
      $region55: #{latent_model_forward.2} parent=47 // pred_region
        %p5322 = scmp.lt.s32.totalorder %s18, 1
        %s5323 = scalar_select %p5322, %s18, 1
        %s5324 = scalar_lea.vmem %s4, %s5323
      $region56: #{latent_model_forward.2} parent=47 // pred_fallthru
        _
      // Predicated region
      $region57: #{latent_model_forward.2} parent=47 // pred_check
        %p5325 = pneg %p161
      $region58: #{latent_model_forward.2} parent=47 // pred_check_branch
        %5327 = sbr.rel (%p5325) target = $region60
      $region59: #{latent_model_forward.2} parent=47 // pred_region
        %p5328 = scmp.lt.s32.totalorder %s18, 1
        %s5329 = scalar_select %p5328, %s18, 1
        %s5330 = scalar_lea.vmem %s5, %s5329
      $region60: #{latent_model_forward.2} parent=47 // pred_fallthru
        _
    $region48: #{latent_model_forward.2} parent=5 // pred_fallthru
      _
  $region6: #{latent_model_forward.2} parent=0 // loop_footer
    %s16 = sadd.s32 1, %s12
  $region7: #{latent_model_forward.2} parent=0 // loop_footer_branch
    %11 = sbr.rel target = $region3
  $region8: #{latent_model_forward.2} parent=0 // loop_exit
    _

</llo_original>
